<compile_context>
chip_gen: v7x
topology: tpu7x:2x2x1
jax: 0.10.0
libtpu: 0.0.40
codegen_flags: <defaults>
</compile_context>

<pallas_src>
import jax
import jax.numpy as jnp
from jax.experimental import pallas as pl
from jax.experimental.pallas import tpu as pltpu

NEG_SLOPE = 0.01      # nn.LeakyReLU() default
_L = 250              # valid length of every internal (phase-space) activation
_LP = 256             # lane-padded per-element window (multiple of 128)


# ----------------------------------------------------------------------------
# Parameters (deterministic synthetic init, PyTorch-style U(-1/sqrt(fan_in),.))
# ----------------------------------------------------------------------------
def _init(key, shape, fan_in):
    bound = 1.0 / jnp.sqrt(jnp.maximum(fan_in, 1.0))
    return jax.random.uniform(key, shape, jnp.float32, -bound, bound)


def init_params(key):
    ks = jax.random.split(key, 20)
    p = {}
    p["e1_w"] = _init(ks[0], (8, 1, 7), 1 * 7);   p["e1_b"] = _init(ks[1], (8,), 1 * 7)
    p["e2_w"] = _init(ks[2], (4, 8, 5), 8 * 5);   p["e2_b"] = _init(ks[3], (4,), 8 * 5)
    p["e3_w"] = _init(ks[4], (2, 4, 3), 4 * 3);   p["e3_b"] = _init(ks[5], (2,), 4 * 3)
    p["e4_w"] = _init(ks[6], (1, 2, 1), 2 * 1);   p["e4_b"] = _init(ks[7], (1,), 2 * 1)
    p["bn_w"] = _init(ks[8], (3, 250), 250);      p["bn_b"] = _init(ks[9], (3,), 250)
    p["dl_w"] = _init(ks[10], (250, 3), 3);       p["dl_b"] = _init(ks[11], (250,), 3)
    p["d1_w"] = _init(ks[12], (1, 2, 1), 1 * 1);  p["d1_b"] = _init(ks[13], (2,), 1 * 1)
    p["d2_w"] = _init(ks[14], (2, 4, 3), 2 * 3);  p["d2_b"] = _init(ks[15], (4,), 2 * 3)
    p["d3_w"] = _init(ks[16], (4, 8, 5), 4 * 5);  p["d3_b"] = _init(ks[17], (8,), 4 * 5)
    p["d4_w"] = _init(ks[18], (8, 1, 7), 8 * 7);  p["d4_b"] = _init(ks[19], (1,), 8 * 7)
    return p


# ----------------------------------------------------------------------------
# Fused Pallas kernel: B batch elements per grid step, everything in VMEM.
# Activations are (C, B*256) f32, one 256-lane window per element; lanes
# 250..255 of every window stay zero so lane rolls never leak across windows.
# ----------------------------------------------------------------------------
def _fused_kernel(x_ref,
                  we1_ref, be1_ref, we2_ref, be2_ref, we3_ref, be3_ref,
                  we4_ref, be4_ref, bnw_ref, bnb_ref, dlw_ref, dlb_ref,
                  wd1_ref, bd1_ref, wd2_ref, bd2_ref, wd3_ref, bd3_ref,
                  wd4_ref, bd4_ref, out_ref):
    L = out_ref.shape[-1]                                   # B * 256
    lane = jax.lax.broadcasted_iota(jnp.int32, (1, L), 1)
    valid = (lane % _LP) < _L                               # per-window tail mask

    def mm(w, a):
        return jnp.dot(w, a, preferred_element_type=jnp.float32)

    def stack3(a):
        # [value@(u-1); value@u; value@(u+1)] stacked along sublanes.
        # Rolls are circular, but window tails are zero so nothing leaks.
        n = a.shape[1]
        return jnp.concatenate(
            [pltpu.roll(a, 1, axis=1), a, pltpu.roll(a, n - 1, axis=1)], axis=0)

    def finish(acc, b_ref, relu=True):
        acc = acc + b_ref[...]
        if relu:
            acc = jnp.where(acc >= 0.0, acc, NEG_SLOPE * acc)
        return jnp.where(valid, acc, 0.0)

    # Encoder (polyphase, stride handled by the weight packing).
    x = x_ref[...]                                          # (8,  L) phases 0..3
    o1 = finish(mm(we1_ref[...], stack3(x)), be1_ref)       # (16, L) [o1e; o1o]
    o2 = finish(mm(we2_ref[...], stack3(o1)), be2_ref)      # (8,  L) ch 0..3 real
    o3 = finish(mm(we3_ref[...], stack3(o2)), be3_ref)      # (8,  L) ch 0..1 real
    h = finish(mm(we4_ref[...], o3), be4_ref)               # (1,  L)

    # BottleNeck Linear(250->3) and Decoder Linear(3->250), block-diag over B.
    z = mm(h, bnw_ref[...]) + bnb_ref[...]                  # (1, 3B)
    d0 = mm(z, dlw_ref[...]) + dlb_ref[...]                 # (1, L)

    # Decoder (transposed convs, polyphase).
    y1 = finish(wd1_ref[...] * d0, bd1_ref)                 # (8,  L) ch 0..1 real
    y2 = finish(mm(wd2_ref[...], stack3(y1)), bd2_ref)      # (8,  L) ch 0..3 real
    y3 = finish(mm(wd3_ref[...], stack3(y2)), bd3_ref)      # (16, L) [y3e; y3o]
    # Final ConvTranspose1d(8->1, k7, s2, p3, op1): 4 output phases, no act.
    out_ref[...] = mm(wd4_ref[...], stack3(y3)) + bd4_ref[...]   # (4, L)


# ----------------------------------------------------------------------------
# Wrapper-side weight packing: per-layer per-shift channel-mix matrices fused
# into one (Cout, 3*Cpad) matrix acting on [prev; self; next] sublane stacks.
# ----------------------------------------------------------------------------
def _padc(m, cols):
    out = jnp.zeros((m.shape[0], cols), jnp.float32)
    return out.at[:, :m.shape[1]].set(m)


def _padr(m, rows):
    out = jnp.zeros((rows, m.shape[1]), jnp.float32)
    return out.at[:m.shape[0], :].set(m)


def _pack_operands(p, B):
    f32 = jnp.float32
    g = lambda n: p[n].astype(f32)

    # Encoder Conv1d(1->8, k7, s2, p3): 4 input phases, 2 output parities.
    w1 = g("e1_w")[:, 0, :]                                 # (8, 7)
    k = [w1[:, i] for i in range(7)]
    z8 = jnp.zeros((8,), f32)
    e_m1 = jnp.stack([z8, k[0], k[1], k[2]], axis=1)        # (8, 4)
    e_0 = jnp.stack([k[3], k[4], k[5], k[6]], axis=1)
    o_m1 = jnp.stack([z8, z8, z8, k[0]], axis=1)
    o_0 = jnp.stack([k[1], k[2], k[3], k[4]], axis=1)
    o_p1 = jnp.stack([k[5], k[6], z8, z8], axis=1)
    z88 = jnp.zeros((8, 8), f32)
    we1 = jnp.concatenate([
        jnp.concatenate([_padc(e_m1, 8), _padc(e_0, 8), z88], axis=1),
        jnp.concatenate([_padc(o_m1, 8), _padc(o_0, 8), _padc(o_p1, 8)], axis=1),
    ], axis=0)                                              # (16, 24)
    be1 = jnp.concatenate([g("e1_b"), g("e1_b")])[:, None]  # (16, 1)

    # Encoder Conv1d(8->4, k5, s2, p2) on [o1e; o1o].
    w2 = g("e2_w")                                          # (4, 8, 5)
    z48 = jnp.zeros((4, 8), f32)
    we2 = _padr(jnp.concatenate(
        [w2[:, :, 0], w2[:, :, 1], w2[:, :, 2], w2[:, :, 3], w2[:, :, 4], z48],
        axis=1), 8)                                         # (8, 48)
    be2 = _padr(g("e2_b")[:, None], 8)

    # Encoder Conv1d(4->2, k3, s1, p1).
    w3 = g("e3_w")                                          # (2, 4, 3)
    we3 = _padr(jnp.concatenate(
        [_padc(w3[:, :, 0], 8), _padc(w3[:, :, 1], 8), _padc(w3[:, :, 2], 8)],
        axis=1), 8)                                         # (8, 24)
    be3 = _padr(g("e3_b")[:, None], 8)

    # Encoder Conv1d(2->1, k1).
    we4 = _padc(g("e4_w")[:, :, 0], 8)                      # (1, 8)
    be4 = g("e4_b")[:, None]                                # (1, 1)

    # Bottleneck + decoder linear: block-diagonal over the B elements.
    bnwT = jnp.zeros((_LP, 3), f32).at[:_L, :].set(g("bn_w").T)   # (256, 3)
    dlwT = jnp.zeros((3, _LP), f32).at[:, :_L].set(g("dl_w").T)   # (3, 256)
    eyeB = jnp.eye(B, dtype=f32)
    bnw = jnp.kron(eyeB, bnwT)                              # (B*256, B*3)
    dlw = jnp.kron(eyeB, dlwT)                              # (B*3, B*256)
    bnb = jnp.tile(g("bn_b"), B)[None, :]                   # (1, B*3)
    dlb_row = jnp.zeros((_LP,), f32).at[:_L].set(g("dl_b"))
    dlb = jnp.tile(dlb_row, B)[None, :]                     # (1, B*256)

    # Decoder ConvTranspose1d(1->2, k1, s1).
    wd1 = _padr(g("d1_w")[0, :, 0][:, None], 8)             # (8, 1)
    bd1 = _padr(g("d1_b")[:, None], 8)

    # Decoder ConvTranspose1d(2->4, k3, s1, p1).
    w2d = g("d2_w")                                         # (2, 4, 3)
    wd2 = _padr(jnp.concatenate(
        [_padc(w2d[:, :, 2].T, 8), _padc(w2d[:, :, 1].T, 8),
         _padc(w2d[:, :, 0].T, 8)], axis=1), 8)             # (8, 24)
    bd2 = _padr(g("d2_b")[:, None], 8)

    # Decoder ConvTranspose1d(4->8, k5, s2, p2, op1) -> [y3e; y3o].
    w3d = g("d3_w")                                         # (4, 8, 5)
    wd3 = jnp.concatenate([
        jnp.concatenate([_padc(w3d[:, :, 4].T, 8), _padc(w3d[:, :, 2].T, 8),
                         _padc(w3d[:, :, 0].T, 8)], axis=1),
        jnp.concatenate([z88, _padc(w3d[:, :, 3].T, 8),
                         _padc(w3d[:, :, 1].T, 8)], axis=1),
    ], axis=0)                                              # (16, 24)
    bd3 = jnp.concatenate([g("d3_b"), g("d3_b")])[:, None]  # (16, 1)

    # Decoder ConvTranspose1d(8->1, k7, s2, p3, op1): 4 output phases (t mod 4).
    # Column blocks of the (4,48) matrix follow the stack3(y3) row layout:
    # [y3e_m1 | y3o_m1 | y3e | y3o | y3e_p1 | y3o_p1], each 8 wide.
    w4d = g("d4_w")                                         # (8, 1, 7)
    dk = [w4d[:, 0, i][None, :] for i in range(7)]          # each (1, 8)
    z18 = jnp.zeros((1, 8), f32)
    wd4 = jnp.concatenate([
        jnp.concatenate([z18, dk[5], dk[3], dk[1], z18, z18], axis=1),
        jnp.concatenate([z18, dk[6], dk[4], dk[2], dk[0], z18], axis=1),
        jnp.concatenate([z18, z18, dk[5], dk[3], dk[1], z18], axis=1),
        jnp.concatenate([z18, z18, dk[6], dk[4], dk[2], dk[0]], axis=1),
    ], axis=0)                                              # (4, 48)
    bd4 = jnp.full((4, 1), g("d4_b")[0])

    return dict(we1=we1, be1=be1, we2=we2, be2=be2, we3=we3, be3=be3,
                we4=we4, be4=be4, bnw=bnw, bnb=bnb, dlw=dlw, dlb=dlb,
                wd1=wd1, bd1=bd1, wd2=wd2, bd2=bd2, wd3=wd3, bd3=bd3,
                wd4=wd4, bd4=bd4)


def trace_trigger_forward(params, x_tuple, aux=None, *, block_batch=4):
    x = jnp.asarray(x_tuple[0], jnp.float32)                # (N, 1, 1000)
    Nb, c_in, lt = x.shape
    assert c_in == 1 and lt == 4 * _L, "model is fixed to 1x1000 traces"

    # B elements per grid step; keep >=2 grid steps when possible (v7x megacore).
    B = max(1, min(block_batch, -(-Nb // 2)))
    nblk = -(-Nb // B)
    nb_pad = nblk * B
    L = B * _LP

    ops = _pack_operands(params, B)

    # Polyphase split + lane-dense packing: xflat[r, b*256 + u] = x[b, 0, 4u+r],
    # rows 4..7 and lanes >=250 of every window are zero.
    xr = x.reshape(Nb, _L, 4).transpose(0, 2, 1)            # (N, 4, 250)
    xflat = jnp.zeros((8, nb_pad, _LP), jnp.float32)
    xflat = xflat.at[:4, :Nb, :_L].set(xr.transpose(1, 0, 2))
    xflat = xflat.reshape(8, nb_pad * _LP)

    names = ["we1", "be1", "we2", "be2", "we3", "be3", "we4", "be4",
             "bnw", "bnb", "dlw", "dlb", "wd1", "bd1", "wd2", "bd2",
             "wd3", "bd3", "wd4", "bd4"]
    consts = [ops[n] for n in names]

    outp = pl.pallas_call(
        _fused_kernel,
        out_shape=jax.ShapeDtypeStruct((4, nb_pad * _LP), jnp.float32),
        grid=(nblk,),
        in_specs=[pl.BlockSpec((8, L), lambda i: (0, i))]
                 + [pl.BlockSpec(a.shape, lambda i: (0, 0)) for a in consts],
        out_specs=pl.BlockSpec((4, L), lambda i: (0, i)),
        compiler_params=pltpu.CompilerParams(
            dimension_semantics=("parallel",)),
    )(xflat, *consts)

    # Interleave the 4 output phases back into length-1000 traces.
    y = outp.reshape(4, nb_pad, _LP)[:, :Nb, :_L]           # (4, N, 250)
    y = y.transpose(1, 2, 0).reshape(Nb, 1, 4 * _L)
    return y


# ----------------------------------------------------------------------------
# Pure-JAX reference (im2col + HIGHEST-precision einsum) used for self-checking.
# ----------------------------------------------------------------------------
def _leaky(v):
    return jnp.where(v >= 0.0, v, NEG_SLOPE * v)


def _conv1d_ref(x, w, b, stride, padding):
    n, c_in, l_in = x.shape
    c_out, _, k = w.shape
    xp = jnp.pad(x, ((0, 0), (0, 0), (padding, padding)))
    l_out = (l_in + 2 * padding - k) // stride + 1
    idx = jnp.arange(l_out)[:, None] * stride + jnp.arange(k)[None, :]
    patches = xp[:, :, idx]                                 # (N, Cin, Lout, K)
    out = jnp.einsum("nclk,ock->nol", patches, w,
                     precision=jax.lax.Precision.HIGHEST)
    return out + b[None, :, None]


def _conv_transpose1d_ref(x, w, b, stride, padding, output_padding):
    n, c_in, l_in = x.shape
    _, c_out, k = w.shape
    if stride > 1:
        xd = jnp.zeros((n, c_in, (l_in - 1) * stride + 1), x.dtype)
        xd = xd.at[:, :, ::stride].set(x)
    else:
        xd = x
    pad_l = k - 1 - padding
    pad_r = k - 1 - padding + output_padding
    xp = jnp.pad(xd, ((0, 0), (0, 0), (pad_l, pad_r)))
    w_conv = jnp.flip(w, axis=2).transpose(1, 0, 2)
    return _conv1d_ref(xp, w_conv, b, 1, 0)


def _reference_forward(p, x):
    h = _leaky(_conv1d_ref(x, p["e1_w"], p["e1_b"], 2, 3))
    h = _leaky(_conv1d_ref(h, p["e2_w"], p["e2_b"], 2, 2))
    h = _leaky(_conv1d_ref(h, p["e3_w"], p["e3_b"], 1, 1))
    h = _leaky(_conv1d_ref(h, p["e4_w"], p["e4_b"], 1, 0))
    nb = h.shape[0]
    h = h.reshape(nb, -1)
    z = jnp.dot(h, p["bn_w"].T, precision=jax.lax.Precision.HIGHEST) + p["bn_b"]
    d = jnp.dot(z, p["dl_w"].T, precision=jax.lax.Precision.HIGHEST) + p["dl_b"]
    d = d.reshape(nb, 1, 250)
    d = _leaky(_conv_transpose1d_ref(d, p["d1_w"], p["d1_b"], 1, 0, 0))
    d = _leaky(_conv_transpose1d_ref(d, p["d2_w"], p["d2_b"], 1, 1, 0))
    d = _leaky(_conv_transpose1d_ref(d, p["d3_w"], p["d3_b"], 2, 2, 1))
    d = _conv_transpose1d_ref(d, p["d4_w"], p["d4_b"], 2, 3, 1)
    return d


if __name__ == "__main__":
    key = jax.random.PRNGKey(0)
    k_param, k_data = jax.random.split(key)
    params = init_params(k_param)
    # Trace length is fixed to 1000 by the module's flattened_size.  Batch 6
    # exercises batched grid steps (B=3 per step), batch padding, and keeps the
    # grid at 2 steps so both v7x TensorCores are used.
    x = jax.random.normal(k_data, (6, 1, 1000), jnp.float32)

    fwd = jax.jit(lambda p, xx: trace_trigger_forward(p, (xx,)))
    out = jax.block_until_ready(fwd(params, x))
    assert out.shape == (6, 1, 1000) and out.dtype == jnp.float32, out.shape

    ref = jax.block_until_ready(_reference_forward(params, x))
    err = float(jnp.max(jnp.abs(out - ref)))
    assert bool(jnp.allclose(out, ref, atol=1e-2, rtol=5e-2)), (
        "max |err| = %e" % err)
    print("KERNEL_OK")
</pallas_src>

<mosaic_0001>
module attributes {stable_mosaic.version = 11 : i64} {
  func.func @_fused_kernel(%arg0: i32, %arg1: memref<8x768xf32, #tpu.memory_space<vmem>>, %arg2: memref<16x24xf32, #tpu.memory_space<vmem>>, %arg3: memref<16x1xf32, #tpu.memory_space<vmem>>, %arg4: memref<8x48xf32, #tpu.memory_space<vmem>>, %arg5: memref<8x1xf32, #tpu.memory_space<vmem>>, %arg6: memref<8x24xf32, #tpu.memory_space<vmem>>, %arg7: memref<8x1xf32, #tpu.memory_space<vmem>>, %arg8: memref<1x8xf32, #tpu.memory_space<vmem>>, %arg9: memref<1x1xf32, #tpu.memory_space<vmem>>, %arg10: memref<768x9xf32, #tpu.memory_space<vmem>>, %arg11: memref<1x9xf32, #tpu.memory_space<vmem>>, %arg12: memref<9x768xf32, #tpu.memory_space<vmem>>, %arg13: memref<1x768xf32, #tpu.memory_space<vmem>>, %arg14: memref<8x1xf32, #tpu.memory_space<vmem>>, %arg15: memref<8x1xf32, #tpu.memory_space<vmem>>, %arg16: memref<8x24xf32, #tpu.memory_space<vmem>>, %arg17: memref<8x1xf32, #tpu.memory_space<vmem>>, %arg18: memref<16x24xf32, #tpu.memory_space<vmem>>, %arg19: memref<16x1xf32, #tpu.memory_space<vmem>>, %arg20: memref<4x48xf32, #tpu.memory_space<vmem>>, %arg21: memref<4x1xf32, #tpu.memory_space<vmem>>, %arg22: memref<4x768xf32, #tpu.memory_space<vmem>>) attributes {dimension_semantics = [#tpu.dimension_semantics<parallel>], iteration_bounds = array<i64: 2>, scalar_prefetch = 0 : i64, scratch_operands = 0 : i64, tpu.core_type = #tpu.core_type<tc>, window_params = [{transform_indices = @transform_0, window_bounds = array<i64: 8, 768>}, {pipeline_mode = #tpu.pipeline_mode<synchronous>, transform_indices = @transform_1, window_bounds = array<i64: 16, 24>}, {pipeline_mode = #tpu.pipeline_mode<synchronous>, transform_indices = @transform_2, window_bounds = array<i64: 16, 1>}, {pipeline_mode = #tpu.pipeline_mode<synchronous>, transform_indices = @transform_3, window_bounds = array<i64: 8, 48>}, {pipeline_mode = #tpu.pipeline_mode<synchronous>, transform_indices = @transform_4, window_bounds = array<i64: 8, 1>}, {pipeline_mode = #tpu.pipeline_mode<synchronous>, transform_indices = @transform_5, window_bounds = array<i64: 8, 24>}, {pipeline_mode = #tpu.pipeline_mode<synchronous>, transform_indices = @transform_6, window_bounds = array<i64: 8, 1>}, {pipeline_mode = #tpu.pipeline_mode<synchronous>, transform_indices = @transform_7, window_bounds = array<i64: 1, 8>}, {pipeline_mode = #tpu.pipeline_mode<synchronous>, transform_indices = @transform_8, window_bounds = array<i64: 1, 1>}, {pipeline_mode = #tpu.pipeline_mode<synchronous>, transform_indices = @transform_9, window_bounds = array<i64: 768, 9>}, {pipeline_mode = #tpu.pipeline_mode<synchronous>, transform_indices = @transform_10, window_bounds = array<i64: 1, 9>}, {pipeline_mode = #tpu.pipeline_mode<synchronous>, transform_indices = @transform_11, window_bounds = array<i64: 9, 768>}, {pipeline_mode = #tpu.pipeline_mode<synchronous>, transform_indices = @transform_12, window_bounds = array<i64: 1, 768>}, {pipeline_mode = #tpu.pipeline_mode<synchronous>, transform_indices = @transform_13, window_bounds = array<i64: 8, 1>}, {pipeline_mode = #tpu.pipeline_mode<synchronous>, transform_indices = @transform_14, window_bounds = array<i64: 8, 1>}, {pipeline_mode = #tpu.pipeline_mode<synchronous>, transform_indices = @transform_15, window_bounds = array<i64: 8, 24>}, {pipeline_mode = #tpu.pipeline_mode<synchronous>, transform_indices = @transform_16, window_bounds = array<i64: 8, 1>}, {pipeline_mode = #tpu.pipeline_mode<synchronous>, transform_indices = @transform_17, window_bounds = array<i64: 16, 24>}, {pipeline_mode = #tpu.pipeline_mode<synchronous>, transform_indices = @transform_18, window_bounds = array<i64: 16, 1>}, {pipeline_mode = #tpu.pipeline_mode<synchronous>, transform_indices = @transform_19, window_bounds = array<i64: 4, 48>}, {pipeline_mode = #tpu.pipeline_mode<synchronous>, transform_indices = @transform_20, window_bounds = array<i64: 4, 1>}, {transform_indices = @transform_21, window_bounds = array<i64: 4, 768>}]} {
    %0 = tpu.iota {dimensions = array<i32: 1>} : vector<1x768xi32>
    %c256_i32 = arith.constant 256 : i32
    %c0_i32 = arith.constant 0 : i32
    %1 = arith.cmpi eq, %c256_i32, %c0_i32 : i32
    %c1_i32 = arith.constant 1 : i32
    %2 = arith.select %1, %c1_i32, %c256_i32 : i32
    %3 = vector.broadcast %2 : i32 to vector<1x768xi32>
    %4 = arith.remsi %0, %3 : vector<1x768xi32>
    %c0_i32_0 = arith.constant 0 : i32
    %5 = vector.broadcast %c0_i32_0 : i32 to vector<1x768xi32>
    %6 = arith.cmpi ne, %4, %5 : vector<1x768xi32>
    %c0_i32_1 = arith.constant 0 : i32
    %7 = vector.broadcast %c0_i32_1 : i32 to vector<1x768xi32>
    %8 = arith.cmpi slt, %4, %7 : vector<1x768xi32>
    %c0_i32_2 = arith.constant 0 : i32
    %9 = arith.cmpi slt, %2, %c0_i32_2 : i32
    %10 = vector.broadcast %9 : i1 to vector<1x768xi1>
    %11 = vector.broadcast %10 : vector<1x768xi1> to vector<1x768xi1>
    %12 = arith.xori %8, %11 : vector<1x768xi1>
    %13 = arith.andi %12, %6 : vector<1x768xi1>
    %14 = vector.broadcast %2 : i32 to vector<1x768xi32>
    %15 = arith.addi %4, %14 : vector<1x768xi32>
    %16 = arith.select %13, %15, %4 : vector<1x768xi1>, vector<1x768xi32>
    %c250_i32 = arith.constant 250 : i32
    %17 = vector.broadcast %c250_i32 : i32 to vector<1x768xi32>
    %18 = arith.cmpi slt, %16, %17 : vector<1x768xi32>
    %c0 = arith.constant 0 : index
    %c0_3 = arith.constant 0 : index
    %19 = vector.load %arg1[%c0, %c0_3] : memref<8x768xf32, #tpu.memory_space<vmem>>, vector<8x768xf32>
    %c0_4 = arith.constant 0 : index
    %c0_5 = arith.constant 0 : index
    %20 = vector.load %arg2[%c0_4, %c0_5] : memref<16x24xf32, #tpu.memory_space<vmem>>, vector<16x24xf32>
    %c1_i32_6 = arith.constant 1 : i32
    %21 = tpu.dynamic_rotate %19 by %c1_i32_6 dim 1 : vector<8x768xf32>, i32 -> vector<8x768xf32>
    %c767_i32 = arith.constant 767 : i32
    %22 = tpu.dynamic_rotate %19 by %c767_i32 dim 1 : vector<8x768xf32>, i32 -> vector<8x768xf32>
    %23 = tpu.concatenate %21, %19, %22 in 0 : vector<8x768xf32>, vector<8x768xf32>, vector<8x768xf32> -> vector<24x768xf32>
    %cst = arith.constant dense<0.000000e+00> : vector<16x768xf32>
    %24 = tpu.matmul %20, %23, %cst {dimension_numbers = #tpu.dot_dimension_numbers<[1], [0], [0], [1], [0, 0, 1, 1], [], []>} : vector<16x24xf32>, vector<24x768xf32>, vector<16x768xf32> -> vector<16x768xf32>
    %c0_7 = arith.constant 0 : index
    %c0_8 = arith.constant 0 : index
    %25 = vector.load %arg3[%c0_7, %c0_8] : memref<16x1xf32, #tpu.memory_space<vmem>>, vector<16x1xf32>
    %26 = vector.broadcast %25 : vector<16x1xf32> to vector<16x768xf32>
    %27 = arith.addf %24, %26 : vector<16x768xf32>
    %cst_9 = arith.constant 0.000000e+00 : f32
    %28 = vector.broadcast %cst_9 : f32 to vector<16x768xf32>
    %29 = arith.cmpf oge, %27, %28 : vector<16x768xf32>
    %cst_10 = arith.constant 0.00999999977 : f32
    %30 = vector.broadcast %cst_10 : f32 to vector<16x768xf32>
    %31 = arith.mulf %30, %27 : vector<16x768xf32>
    %32 = arith.select %29, %27, %31 : vector<16x768xi1>, vector<16x768xf32>
    %cst_11 = arith.constant 0.000000e+00 : f32
    %33 = vector.shape_cast %18 : vector<1x768xi1> to vector<1x768xi1>
    %34 = vector.broadcast %33 : vector<1x768xi1> to vector<16x768xi1>
    %35 = vector.broadcast %cst_11 : f32 to vector<16x768xf32>
    %36 = arith.select %34, %32, %35 : vector<16x768xi1>, vector<16x768xf32>
    %c0_12 = arith.constant 0 : index
    %c0_13 = arith.constant 0 : index
    %37 = vector.load %arg4[%c0_12, %c0_13] : memref<8x48xf32, #tpu.memory_space<vmem>>, vector<8x48xf32>
    %c1_i32_14 = arith.constant 1 : i32
    %38 = tpu.dynamic_rotate %36 by %c1_i32_14 dim 1 : vector<16x768xf32>, i32 -> vector<16x768xf32>
    %c767_i32_15 = arith.constant 767 : i32
    %39 = tpu.dynamic_rotate %36 by %c767_i32_15 dim 1 : vector<16x768xf32>, i32 -> vector<16x768xf32>
    %40 = tpu.concatenate %38, %36, %39 in 0 : vector<16x768xf32>, vector<16x768xf32>, vector<16x768xf32> -> vector<48x768xf32>
    %cst_16 = arith.constant dense<0.000000e+00> : vector<8x768xf32>
    %41 = tpu.matmul %37, %40, %cst_16 {dimension_numbers = #tpu.dot_dimension_numbers<[1], [0], [0], [1], [0, 0, 1, 1], [], []>} : vector<8x48xf32>, vector<48x768xf32>, vector<8x768xf32> -> vector<8x768xf32>
    %c0_17 = arith.constant 0 : index
    %c0_18 = arith.constant 0 : index
    %42 = vector.load %arg5[%c0_17, %c0_18] : memref<8x1xf32, #tpu.memory_space<vmem>>, vector<8x1xf32>
    %43 = vector.broadcast %42 : vector<8x1xf32> to vector<8x768xf32>
    %44 = arith.addf %41, %43 : vector<8x768xf32>
    %cst_19 = arith.constant 0.000000e+00 : f32
    %45 = vector.broadcast %cst_19 : f32 to vector<8x768xf32>
    %46 = arith.cmpf oge, %44, %45 : vector<8x768xf32>
    %cst_20 = arith.constant 0.00999999977 : f32
    %47 = vector.broadcast %cst_20 : f32 to vector<8x768xf32>
    %48 = arith.mulf %47, %44 : vector<8x768xf32>
    %49 = arith.select %46, %44, %48 : vector<8x768xi1>, vector<8x768xf32>
    %cst_21 = arith.constant 0.000000e+00 : f32
    %50 = vector.shape_cast %18 : vector<1x768xi1> to vector<1x768xi1>
    %51 = vector.broadcast %50 : vector<1x768xi1> to vector<8x768xi1>
    %52 = vector.broadcast %cst_21 : f32 to vector<8x768xf32>
    %53 = arith.select %51, %49, %52 : vector<8x768xi1>, vector<8x768xf32>
    %c0_22 = arith.constant 0 : index
    %c0_23 = arith.constant 0 : index
    %54 = vector.load %arg6[%c0_22, %c0_23] : memref<8x24xf32, #tpu.memory_space<vmem>>, vector<8x24xf32>
    %c1_i32_24 = arith.constant 1 : i32
    %55 = tpu.dynamic_rotate %53 by %c1_i32_24 dim 1 : vector<8x768xf32>, i32 -> vector<8x768xf32>
    %c767_i32_25 = arith.constant 767 : i32
    %56 = tpu.dynamic_rotate %53 by %c767_i32_25 dim 1 : vector<8x768xf32>, i32 -> vector<8x768xf32>
    %57 = tpu.concatenate %55, %53, %56 in 0 : vector<8x768xf32>, vector<8x768xf32>, vector<8x768xf32> -> vector<24x768xf32>
    %cst_26 = arith.constant dense<0.000000e+00> : vector<8x768xf32>
    %58 = tpu.matmul %54, %57, %cst_26 {dimension_numbers = #tpu.dot_dimension_numbers<[1], [0], [0], [1], [0, 0, 1, 1], [], []>} : vector<8x24xf32>, vector<24x768xf32>, vector<8x768xf32> -> vector<8x768xf32>
    %c0_27 = arith.constant 0 : index
    %c0_28 = arith.constant 0 : index
    %59 = vector.load %arg7[%c0_27, %c0_28] : memref<8x1xf32, #tpu.memory_space<vmem>>, vector<8x1xf32>
    %60 = vector.broadcast %59 : vector<8x1xf32> to vector<8x768xf32>
    %61 = arith.addf %58, %60 : vector<8x768xf32>
    %cst_29 = arith.constant 0.000000e+00 : f32
    %62 = vector.broadcast %cst_29 : f32 to vector<8x768xf32>
    %63 = arith.cmpf oge, %61, %62 : vector<8x768xf32>
    %cst_30 = arith.constant 0.00999999977 : f32
    %64 = vector.broadcast %cst_30 : f32 to vector<8x768xf32>
    %65 = arith.mulf %64, %61 : vector<8x768xf32>
    %66 = arith.select %63, %61, %65 : vector<8x768xi1>, vector<8x768xf32>
    %cst_31 = arith.constant 0.000000e+00 : f32
    %67 = vector.shape_cast %18 : vector<1x768xi1> to vector<1x768xi1>
    %68 = vector.broadcast %67 : vector<1x768xi1> to vector<8x768xi1>
    %69 = vector.broadcast %cst_31 : f32 to vector<8x768xf32>
    %70 = arith.select %68, %66, %69 : vector<8x768xi1>, vector<8x768xf32>
    %c0_32 = arith.constant 0 : index
    %c0_33 = arith.constant 0 : index
    %71 = vector.load %arg8[%c0_32, %c0_33] : memref<1x8xf32, #tpu.memory_space<vmem>>, vector<1x8xf32>
    %cst_34 = arith.constant dense<0.000000e+00> : vector<1x768xf32>
    %72 = tpu.matmul %71, %70, %cst_34 {dimension_numbers = #tpu.dot_dimension_numbers<[1], [0], [0], [1], [0, 0, 1, 1], [], []>} : vector<1x8xf32>, vector<8x768xf32>, vector<1x768xf32> -> vector<1x768xf32>
    %c0_35 = arith.constant 0 : index
    %c0_36 = arith.constant 0 : index
    %73 = vector.load %arg9[%c0_35, %c0_36] : memref<1x1xf32, #tpu.memory_space<vmem>>, vector<1x1xf32>
    %74 = vector.broadcast %73 : vector<1x1xf32> to vector<1x768xf32>
    %75 = arith.addf %72, %74 : vector<1x768xf32>
    %cst_37 = arith.constant 0.000000e+00 : f32
    %76 = vector.broadcast %cst_37 : f32 to vector<1x768xf32>
    %77 = arith.cmpf oge, %75, %76 : vector<1x768xf32>
    %cst_38 = arith.constant 0.00999999977 : f32
    %78 = vector.broadcast %cst_38 : f32 to vector<1x768xf32>
    %79 = arith.mulf %78, %75 : vector<1x768xf32>
    %80 = arith.select %77, %75, %79 : vector<1x768xi1>, vector<1x768xf32>
    %cst_39 = arith.constant 0.000000e+00 : f32
    %81 = vector.broadcast %cst_39 : f32 to vector<1x768xf32>
    %82 = arith.select %18, %80, %81 : vector<1x768xi1>, vector<1x768xf32>
    %c0_40 = arith.constant 0 : index
    %c0_41 = arith.constant 0 : index
    %83 = vector.load %arg10[%c0_40, %c0_41] : memref<768x9xf32, #tpu.memory_space<vmem>>, vector<768x9xf32>
    %cst_42 = arith.constant dense<0.000000e+00> : vector<1x9xf32>
    %84 = tpu.matmul %82, %83, %cst_42 {dimension_numbers = #tpu.dot_dimension_numbers<[1], [0], [0], [1], [0, 0, 1, 1], [], []>} : vector<1x768xf32>, vector<768x9xf32>, vector<1x9xf32> -> vector<1x9xf32>
    %c0_43 = arith.constant 0 : index
    %c0_44 = arith.constant 0 : index
    %85 = vector.load %arg11[%c0_43, %c0_44] : memref<1x9xf32, #tpu.memory_space<vmem>>, vector<1x9xf32>
    %86 = arith.addf %84, %85 : vector<1x9xf32>
    %c0_45 = arith.constant 0 : index
    %c0_46 = arith.constant 0 : index
    %87 = vector.load %arg12[%c0_45, %c0_46] : memref<9x768xf32, #tpu.memory_space<vmem>>, vector<9x768xf32>
    %cst_47 = arith.constant dense<0.000000e+00> : vector<1x768xf32>
    %88 = tpu.matmul %86, %87, %cst_47 {dimension_numbers = #tpu.dot_dimension_numbers<[1], [0], [0], [1], [0, 0, 1, 1], [], []>} : vector<1x9xf32>, vector<9x768xf32>, vector<1x768xf32> -> vector<1x768xf32>
    %c0_48 = arith.constant 0 : index
    %c0_49 = arith.constant 0 : index
    %89 = vector.load %arg13[%c0_48, %c0_49] : memref<1x768xf32, #tpu.memory_space<vmem>>, vector<1x768xf32>
    %90 = arith.addf %88, %89 : vector<1x768xf32>
    %c0_50 = arith.constant 0 : index
    %c0_51 = arith.constant 0 : index
    %91 = vector.load %arg14[%c0_50, %c0_51] : memref<8x1xf32, #tpu.memory_space<vmem>>, vector<8x1xf32>
    %92 = vector.broadcast %91 : vector<8x1xf32> to vector<8x768xf32>
    %93 = vector.broadcast %90 : vector<1x768xf32> to vector<8x768xf32>
    %94 = arith.mulf %92, %93 : vector<8x768xf32>
    %c0_52 = arith.constant 0 : index
    %c0_53 = arith.constant 0 : index
    %95 = vector.load %arg15[%c0_52, %c0_53] : memref<8x1xf32, #tpu.memory_space<vmem>>, vector<8x1xf32>
    %96 = vector.broadcast %95 : vector<8x1xf32> to vector<8x768xf32>
    %97 = arith.addf %94, %96 : vector<8x768xf32>
    %cst_54 = arith.constant 0.000000e+00 : f32
    %98 = vector.broadcast %cst_54 : f32 to vector<8x768xf32>
    %99 = arith.cmpf oge, %97, %98 : vector<8x768xf32>
    %cst_55 = arith.constant 0.00999999977 : f32
    %100 = vector.broadcast %cst_55 : f32 to vector<8x768xf32>
    %101 = arith.mulf %100, %97 : vector<8x768xf32>
    %102 = arith.select %99, %97, %101 : vector<8x768xi1>, vector<8x768xf32>
    %cst_56 = arith.constant 0.000000e+00 : f32
    %103 = vector.shape_cast %18 : vector<1x768xi1> to vector<1x768xi1>
    %104 = vector.broadcast %103 : vector<1x768xi1> to vector<8x768xi1>
    %105 = vector.broadcast %cst_56 : f32 to vector<8x768xf32>
    %106 = arith.select %104, %102, %105 : vector<8x768xi1>, vector<8x768xf32>
    %c0_57 = arith.constant 0 : index
    %c0_58 = arith.constant 0 : index
    %107 = vector.load %arg16[%c0_57, %c0_58] : memref<8x24xf32, #tpu.memory_space<vmem>>, vector<8x24xf32>
    %c1_i32_59 = arith.constant 1 : i32
    %108 = tpu.dynamic_rotate %106 by %c1_i32_59 dim 1 : vector<8x768xf32>, i32 -> vector<8x768xf32>
    %c767_i32_60 = arith.constant 767 : i32
    %109 = tpu.dynamic_rotate %106 by %c767_i32_60 dim 1 : vector<8x768xf32>, i32 -> vector<8x768xf32>
    %110 = tpu.concatenate %108, %106, %109 in 0 : vector<8x768xf32>, vector<8x768xf32>, vector<8x768xf32> -> vector<24x768xf32>
    %cst_61 = arith.constant dense<0.000000e+00> : vector<8x768xf32>
    %111 = tpu.matmul %107, %110, %cst_61 {dimension_numbers = #tpu.dot_dimension_numbers<[1], [0], [0], [1], [0, 0, 1, 1], [], []>} : vector<8x24xf32>, vector<24x768xf32>, vector<8x768xf32> -> vector<8x768xf32>
    %c0_62 = arith.constant 0 : index
    %c0_63 = arith.constant 0 : index
    %112 = vector.load %arg17[%c0_62, %c0_63] : memref<8x1xf32, #tpu.memory_space<vmem>>, vector<8x1xf32>
    %113 = vector.broadcast %112 : vector<8x1xf32> to vector<8x768xf32>
    %114 = arith.addf %111, %113 : vector<8x768xf32>
    %cst_64 = arith.constant 0.000000e+00 : f32
    %115 = vector.broadcast %cst_64 : f32 to vector<8x768xf32>
    %116 = arith.cmpf oge, %114, %115 : vector<8x768xf32>
    %cst_65 = arith.constant 0.00999999977 : f32
    %117 = vector.broadcast %cst_65 : f32 to vector<8x768xf32>
    %118 = arith.mulf %117, %114 : vector<8x768xf32>
    %119 = arith.select %116, %114, %118 : vector<8x768xi1>, vector<8x768xf32>
    %cst_66 = arith.constant 0.000000e+00 : f32
    %120 = vector.shape_cast %18 : vector<1x768xi1> to vector<1x768xi1>
    %121 = vector.broadcast %120 : vector<1x768xi1> to vector<8x768xi1>
    %122 = vector.broadcast %cst_66 : f32 to vector<8x768xf32>
    %123 = arith.select %121, %119, %122 : vector<8x768xi1>, vector<8x768xf32>
    %c0_67 = arith.constant 0 : index
    %c0_68 = arith.constant 0 : index
    %124 = vector.load %arg18[%c0_67, %c0_68] : memref<16x24xf32, #tpu.memory_space<vmem>>, vector<16x24xf32>
    %c1_i32_69 = arith.constant 1 : i32
    %125 = tpu.dynamic_rotate %123 by %c1_i32_69 dim 1 : vector<8x768xf32>, i32 -> vector<8x768xf32>
    %c767_i32_70 = arith.constant 767 : i32
    %126 = tpu.dynamic_rotate %123 by %c767_i32_70 dim 1 : vector<8x768xf32>, i32 -> vector<8x768xf32>
    %127 = tpu.concatenate %125, %123, %126 in 0 : vector<8x768xf32>, vector<8x768xf32>, vector<8x768xf32> -> vector<24x768xf32>
    %cst_71 = arith.constant dense<0.000000e+00> : vector<16x768xf32>
    %128 = tpu.matmul %124, %127, %cst_71 {dimension_numbers = #tpu.dot_dimension_numbers<[1], [0], [0], [1], [0, 0, 1, 1], [], []>} : vector<16x24xf32>, vector<24x768xf32>, vector<16x768xf32> -> vector<16x768xf32>
    %c0_72 = arith.constant 0 : index
    %c0_73 = arith.constant 0 : index
    %129 = vector.load %arg19[%c0_72, %c0_73] : memref<16x1xf32, #tpu.memory_space<vmem>>, vector<16x1xf32>
    %130 = vector.broadcast %129 : vector<16x1xf32> to vector<16x768xf32>
    %131 = arith.addf %128, %130 : vector<16x768xf32>
    %cst_74 = arith.constant 0.000000e+00 : f32
    %132 = vector.broadcast %cst_74 : f32 to vector<16x768xf32>
    %133 = arith.cmpf oge, %131, %132 : vector<16x768xf32>
    %cst_75 = arith.constant 0.00999999977 : f32
    %134 = vector.broadcast %cst_75 : f32 to vector<16x768xf32>
    %135 = arith.mulf %134, %131 : vector<16x768xf32>
    %136 = arith.select %133, %131, %135 : vector<16x768xi1>, vector<16x768xf32>
    %cst_76 = arith.constant 0.000000e+00 : f32
    %137 = vector.shape_cast %18 : vector<1x768xi1> to vector<1x768xi1>
    %138 = vector.broadcast %137 : vector<1x768xi1> to vector<16x768xi1>
    %139 = vector.broadcast %cst_76 : f32 to vector<16x768xf32>
    %140 = arith.select %138, %136, %139 : vector<16x768xi1>, vector<16x768xf32>
    %c0_77 = arith.constant 0 : index
    %c0_78 = arith.constant 0 : index
    %141 = vector.load %arg20[%c0_77, %c0_78] : memref<4x48xf32, #tpu.memory_space<vmem>>, vector<4x48xf32>
    %c1_i32_79 = arith.constant 1 : i32
    %142 = tpu.dynamic_rotate %140 by %c1_i32_79 dim 1 : vector<16x768xf32>, i32 -> vector<16x768xf32>
    %c767_i32_80 = arith.constant 767 : i32
    %143 = tpu.dynamic_rotate %140 by %c767_i32_80 dim 1 : vector<16x768xf32>, i32 -> vector<16x768xf32>
    %144 = tpu.concatenate %142, %140, %143 in 0 : vector<16x768xf32>, vector<16x768xf32>, vector<16x768xf32> -> vector<48x768xf32>
    %cst_81 = arith.constant dense<0.000000e+00> : vector<4x768xf32>
    %145 = tpu.matmul %141, %144, %cst_81 {dimension_numbers = #tpu.dot_dimension_numbers<[1], [0], [0], [1], [0, 0, 1, 1], [], []>} : vector<4x48xf32>, vector<48x768xf32>, vector<4x768xf32> -> vector<4x768xf32>
    %c0_82 = arith.constant 0 : index
    %c0_83 = arith.constant 0 : index
    %146 = vector.load %arg21[%c0_82, %c0_83] : memref<4x1xf32, #tpu.memory_space<vmem>>, vector<4x1xf32>
    %147 = vector.broadcast %146 : vector<4x1xf32> to vector<4x768xf32>
    %148 = arith.addf %145, %147 : vector<4x768xf32>
    %c0_84 = arith.constant 0 : index
    %c0_85 = arith.constant 0 : index
    %149 = vector.load %arg22[%c0_84, %c0_85] : memref<4x768xf32, #tpu.memory_space<vmem>>, vector<4x768xf32>
    tpu.vector_store %arg22[%c0_84, %c0_85], %148 {strides = array<i32>} : memref<4x768xf32, #tpu.memory_space<vmem>>, vector<4x768xf32>,
    return
  }
  func.func @transform_0(%arg0: i32) -> (i32, i32) {
    %c0_i32 = arith.constant 0 : i32
    %c0_i32_0 = arith.constant 0 : i32
    return %c0_i32, %arg0 : i32, i32
  }
  func.func @transform_1(%arg0: i32) -> (i32, i32) {
    %c0_i32 = arith.constant 0 : i32
    %c0_i32_0 = arith.constant 0 : i32
    %c0_i32_1 = arith.constant 0 : i32
    return %c0_i32, %c0_i32_0 : i32, i32
  }
  func.func @transform_2(%arg0: i32) -> (i32, i32) {
    %c0_i32 = arith.constant 0 : i32
    %c0_i32_0 = arith.constant 0 : i32
    %c0_i32_1 = arith.constant 0 : i32
    return %c0_i32, %c0_i32_0 : i32, i32
  }
  func.func @transform_3(%arg0: i32) -> (i32, i32) {
    %c0_i32 = arith.constant 0 : i32
    %c0_i32_0 = arith.constant 0 : i32
    %c0_i32_1 = arith.constant 0 : i32
    return %c0_i32, %c0_i32_0 : i32, i32
  }
  func.func @transform_4(%arg0: i32) -> (i32, i32) {
    %c0_i32 = arith.constant 0 : i32
    %c0_i32_0 = arith.constant 0 : i32
    %c0_i32_1 = arith.constant 0 : i32
    return %c0_i32, %c0_i32_0 : i32, i32
  }
  func.func @transform_5(%arg0: i32) -> (i32, i32) {
    %c0_i32 = arith.constant 0 : i32
    %c0_i32_0 = arith.constant 0 : i32
    %c0_i32_1 = arith.constant 0 : i32
    return %c0_i32, %c0_i32_0 : i32, i32
  }
  func.func @transform_6(%arg0: i32) -> (i32, i32) {
    %c0_i32 = arith.constant 0 : i32
    %c0_i32_0 = arith.constant 0 : i32
    %c0_i32_1 = arith.constant 0 : i32
    return %c0_i32, %c0_i32_0 : i32, i32
  }
  func.func @transform_7(%arg0: i32) -> (i32, i32) {
    %c0_i32 = arith.constant 0 : i32
    %c0_i32_0 = arith.constant 0 : i32
    %c0_i32_1 = arith.constant 0 : i32
    return %c0_i32, %c0_i32_0 : i32, i32
  }
  func.func @transform_8(%arg0: i32) -> (i32, i32) {
    %c0_i32 = arith.constant 0 : i32
    %c0_i32_0 = arith.constant 0 : i32
    %c0_i32_1 = arith.constant 0 : i32
    return %c0_i32, %c0_i32_0 : i32, i32
  }
  func.func @transform_9(%arg0: i32) -> (i32, i32) {
    %c0_i32 = arith.constant 0 : i32
    %c0_i32_0 = arith.constant 0 : i32
    %c0_i32_1 = arith.constant 0 : i32
    return %c0_i32, %c0_i32_0 : i32, i32
  }
  func.func @transform_10(%arg0: i32) -> (i32, i32) {
    %c0_i32 = arith.constant 0 : i32
    %c0_i32_0 = arith.constant 0 : i32
    %c0_i32_1 = arith.constant 0 : i32
    return %c0_i32, %c0_i32_0 : i32, i32
  }
  func.func @transform_11(%arg0: i32) -> (i32, i32) {
    %c0_i32 = arith.constant 0 : i32
    %c0_i32_0 = arith.constant 0 : i32
    %c0_i32_1 = arith.constant 0 : i32
    return %c0_i32, %c0_i32_0 : i32, i32
  }
  func.func @transform_12(%arg0: i32) -> (i32, i32) {
    %c0_i32 = arith.constant 0 : i32
    %c0_i32_0 = arith.constant 0 : i32
    %c0_i32_1 = arith.constant 0 : i32
    return %c0_i32, %c0_i32_0 : i32, i32
  }
  func.func @transform_13(%arg0: i32) -> (i32, i32) {
    %c0_i32 = arith.constant 0 : i32
    %c0_i32_0 = arith.constant 0 : i32
    %c0_i32_1 = arith.constant 0 : i32
    return %c0_i32, %c0_i32_0 : i32, i32
  }
  func.func @transform_14(%arg0: i32) -> (i32, i32) {
    %c0_i32 = arith.constant 0 : i32
    %c0_i32_0 = arith.constant 0 : i32
    %c0_i32_1 = arith.constant 0 : i32
    return %c0_i32, %c0_i32_0 : i32, i32
  }
  func.func @transform_15(%arg0: i32) -> (i32, i32) {
    %c0_i32 = arith.constant 0 : i32
    %c0_i32_0 = arith.constant 0 : i32
    %c0_i32_1 = arith.constant 0 : i32
    return %c0_i32, %c0_i32_0 : i32, i32
  }
  func.func @transform_16(%arg0: i32) -> (i32, i32) {
    %c0_i32 = arith.constant 0 : i32
    %c0_i32_0 = arith.constant 0 : i32
    %c0_i32_1 = arith.constant 0 : i32
    return %c0_i32, %c0_i32_0 : i32, i32
  }
  func.func @transform_17(%arg0: i32) -> (i32, i32) {
    %c0_i32 = arith.constant 0 : i32
    %c0_i32_0 = arith.constant 0 : i32
    %c0_i32_1 = arith.constant 0 : i32
    return %c0_i32, %c0_i32_0 : i32, i32
  }
  func.func @transform_18(%arg0: i32) -> (i32, i32) {
    %c0_i32 = arith.constant 0 : i32
    %c0_i32_0 = arith.constant 0 : i32
    %c0_i32_1 = arith.constant 0 : i32
    return %c0_i32, %c0_i32_0 : i32, i32
  }
  func.func @transform_19(%arg0: i32) -> (i32, i32) {
    %c0_i32 = arith.constant 0 : i32
    %c0_i32_0 = arith.constant 0 : i32
    %c0_i32_1 = arith.constant 0 : i32
    return %c0_i32, %c0_i32_0 : i32, i32
  }
  func.func @transform_20(%arg0: i32) -> (i32, i32) {
    %c0_i32 = arith.constant 0 : i32
    %c0_i32_0 = arith.constant 0 : i32
    %c0_i32_1 = arith.constant 0 : i32
    return %c0_i32, %c0_i32_0 : i32, i32
  }
  func.func @transform_21(%arg0: i32) -> (i32, i32) {
    %c0_i32 = arith.constant 0 : i32
    %c0_i32_0 = arith.constant 0 : i32
    return %c0_i32, %arg0 : i32, i32
  }
}

</mosaic_0001>

<llo_original>
// kernel: tile.13
$region0: #{tile.13}
  #allocation0 [shape = 's32[1]{0}', space=sflag, size = 0x4, scoped, tag = 'scoped memory for tile.13']
  %s0 = inlined_call_operand.vmem [shape: f32[3], index: 0, kind: input, shape index: {}]
  %s1 = inlined_call_operand.vmem [shape: f32[3,3], index: 1, kind: output, shape index: {}]
  // Predicated region
  $region2: #{tile.13} parent=0 // pred_check
    _
  $region3: #{tile.13} parent=0 // pred_check_branch
    %3 = sbr.rel (0) target = $region5
  $region4: #{tile.13} parent=0 // pred_region
    _
  $region5: #{tile.13} parent=0 // pred_fallthru
    _
  %v4 = vld [vmem:[%s0] ss:$0 sm:$0xff]
  %5 = vst [vmem:[%s1] sm:$0xf] %v4

// kernel: tile.14
$region0: #{tile.14}
  %s0 = inlined_call_operand.vmem [shape: f32[3,3], index: 0, kind: input, shape index: {}]
  %s1 = inlined_call_operand.vmem [shape: f32[1,9], index: 1, kind: output, shape index: {}]
  $region1: #{tile.14} parent=0
    #allocation0 [shape = 'u8[4096]{0}', space=vmem, size = 0x1000, scoped, tag = 'scoped mem for output reshape']
    #allocation1 [shape = 'u8[4096]{0}', space=vmem, size = 0x1000, scoped, tag = 'scoped mem for input reshape']
    %s3 = sshllo.u32 0, 4
    %v4 = vld [vmem:[%s0] sm:%s3]
    %5 = vst [vmem:[#allocation1] sm:%s3] %v4
    %v6 = vld [vmem:[#allocation1] sm:$0x1]
    %vm7 = vcmask 23552
    %8 = vst.msk [vmem:[#allocation0] sm:$0x1] %vm7, %v6
    %s9 = scalar_lea.vmem [#allocation1], 2
    %v10 = vld [vmem:[%s9] sm:$0x1]
    %11 = vrot.lane.b32.xlu0 %v10, 6
    %v12 = vpop.permute.xlu0 %11
    %vm13 = vcmask 72752
    %14 = vst.msk [vmem:[#allocation0] sm:$0x1] %vm13, %v12
    %s15 = scalar_lea.vmem [#allocation1], 1
    %v16 = vld [vmem:[%s15] sm:$0x1]
    %17 = vrot.lane.b32.xlu0 %v16, 3
    %v18 = vpop.permute.xlu0 %17
    %vm19 = vcmask 48152
    %20 = vst.msk [vmem:[#allocation0] sm:$0x1] %vm19, %v18
    %s22 = sshllo.u32 0, 1
    %v24 = vld [vmem:[#allocation0] sm:%s22]
    %s25 = sshllo.u32 0, 1
    %26 = vst [vmem:[%s1] sm:%s25] %v24

// kernel: _lambda_.1
$region0: #{_lambda_.1}
  #allocation0 [shape = 'u32[]', space=smem, size = 0x4, offset = 0x4, fixed_abs, tag = 'smem constant byte address 0x4 - core index']
  #allocation1 [shape = 'u32[144,128]{1,0:T(1,128)}', space=vmem, size = 0x12000, scoped, tag = 'internal scratch']
  #allocation2 [shape = 'f32[1,1]{1,0:T(1,128)S(1)}', space=vmem, size = 0x200, scoped, tag = 'scoped memory for _lambda_.1']
  %s0 = inlined_call_operand.vmem [shape: f32[8,1536], index: 0, kind: input, shape index: {}]
  %s1 = inlined_call_operand.vmem [shape: f32[16,24], index: 1, kind: input, shape index: {}]
  %s2 = inlined_call_operand.vmem [shape: f32[16,1], index: 2, kind: input, shape index: {}]
  %s3 = inlined_call_operand.vmem [shape: f32[8,48], index: 3, kind: input, shape index: {}]
  %s4 = inlined_call_operand.vmem [shape: f32[8,1], index: 4, kind: input, shape index: {}]
  %s5 = inlined_call_operand.vmem [shape: f32[8,24], index: 5, kind: input, shape index: {}]
  %s6 = inlined_call_operand.vmem [shape: f32[8,1], index: 6, kind: input, shape index: {}]
  %s7 = inlined_call_operand.vmem [shape: f32[1,8], index: 7, kind: input, shape index: {}]
  %s8 = inlined_call_operand.<no memory space> [shape: f32[1,1], index: 8, kind: input, shape index: {}]
  %s9 = inlined_call_operand.vmem [shape: f32[768,9], index: 9, kind: input, shape index: {}]
  %s10 = inlined_call_operand.vmem [shape: f32[1,9], index: 10, kind: input, shape index: {}]
  %s11 = inlined_call_operand.vmem [shape: f32[9,768], index: 11, kind: input, shape index: {}]
  %s12 = inlined_call_operand.vmem [shape: f32[1,768], index: 12, kind: input, shape index: {}]
  %s13 = inlined_call_operand.vmem [shape: f32[8,1], index: 13, kind: input, shape index: {}]
  %s14 = inlined_call_operand.vmem [shape: f32[8,1], index: 14, kind: input, shape index: {}]
  %s15 = inlined_call_operand.vmem [shape: f32[8,24], index: 15, kind: input, shape index: {}]
  %s16 = inlined_call_operand.vmem [shape: f32[8,1], index: 16, kind: input, shape index: {}]
  %s17 = inlined_call_operand.vmem [shape: f32[16,24], index: 17, kind: input, shape index: {}]
  %s18 = inlined_call_operand.vmem [shape: f32[16,1], index: 18, kind: input, shape index: {}]
  %s19 = inlined_call_operand.vmem [shape: f32[4,48], index: 19, kind: input, shape index: {}]
  %s20 = inlined_call_operand.vmem [shape: f32[4,1], index: 20, kind: input, shape index: {}]
  %s21 = inlined_call_operand.vmem [shape: f32[4,1536], index: 21, kind: output, shape index: {}]
  %s22 = sld [smem:[#allocation0]]
  $region117: #{_lambda_.1} parent=0
    _
  %s24 = ssub.s32 1, %s22
  %s25 = scalar_select 0, %s24, %s22
  %v26 = vstv %s8
  %27 = vst [vmem:[#allocation2] sm:$0x1] %v26
  loop: start=0, step=1, limit=4
  $region2: #{_lambda_.1} parent=0 // loop_pre_header
    _
  $region3: #{_lambda_.1} parent=0 // loop_header
    %s29 = sphi 0, %s33
    %p30 = scmp.ge.s32.totalorder %s29, 4
    %s39 = sphi 0, %s41
    %s42 = sphi 0, %s39
    %s43 = sphi 0, %s42
    %s59 = sphi 0, %s43
    %s63 = sphi 0, %s63
    %s65 = sphi 0, %s63
    %s66 = sphi 0, %s65
    %s80 = sphi 0, %s66
    %s84 = sphi 0, %s84
    %s86 = sphi 0, %s84
    %s87 = sphi 0, %s86
    %s101 = sphi 0, %s87
    %s105 = sphi 0, %s105
    %s107 = sphi 0, %s105
    %s108 = sphi 0, %s107
    %s122 = sphi 0, %s108
    %s126 = sphi 0, %s126
    %s128 = sphi 0, %s126
    %s129 = sphi 0, %s128
    %s143 = sphi 0, %s129
    %s147 = sphi 0, %s147
    %s149 = sphi 0, %s147
    %s150 = sphi 0, %s149
    %s164 = sphi 0, %s150
    %s168 = sphi 0, %s168
    %s170 = sphi 0, %s168
    %s171 = sphi 0, %s170
    %s185 = sphi 0, %s171
    %s189 = sphi 0, %s189
    %s191 = sphi 0, %s189
    %s192 = sphi 0, %s191
    %s206 = sphi 0, %s192
    %s210 = sphi 0, %s210
    %s212 = sphi 0, %s210
    %s213 = sphi 0, %s212
    %s227 = sphi 0, %s213
    %s231 = sphi 0, %s231
    %s233 = sphi 0, %s231
    %s234 = sphi 0, %s233
    %s248 = sphi 0, %s234
    %s252 = sphi 0, %s252
    %s254 = sphi 0, %s252
    %s255 = sphi 0, %s254
    %s269 = sphi 0, %s255
    %s273 = sphi 0, %s273
    %s275 = sphi 0, %s273
    %s276 = sphi 0, %s275
    %s290 = sphi 0, %s276
    %s294 = sphi 0, %s294
    %s296 = sphi 0, %s294
    %s297 = sphi 0, %s296
    %s311 = sphi 0, %s297
    %s315 = sphi 0, %s315
    %s317 = sphi 0, %s315
    %s318 = sphi 0, %s317
    %s332 = sphi 0, %s318
    %s336 = sphi 0, %s336
    %s338 = sphi 0, %s336
    %s339 = sphi 0, %s338
    %s353 = sphi 0, %s339
    %s357 = sphi 0, %s357
    %s359 = sphi 0, %s357
    %s360 = sphi 0, %s359
    %s374 = sphi 0, %s360
    %s378 = sphi 0, %s378
    %s380 = sphi 0, %s378
    %s381 = sphi 0, %s380
    %s395 = sphi 0, %s381
    %s399 = sphi 0, %s399
    %s401 = sphi 0, %s399
    %s402 = sphi 0, %s401
    %s416 = sphi 0, %s402
    %s420 = sphi 0, %s420
    %s422 = sphi 0, %s420
    %s423 = sphi 0, %s422
    %s437 = sphi 0, %s423
    %s441 = sphi 0, %s441
    %s443 = sphi 0, %s441
    %s444 = sphi 0, %s443
    %s458 = sphi 0, %s444
    %s462 = sphi 0, %s462
    %s464 = sphi 0, %s462
    %s465 = sphi 0, %s464
    %s479 = sphi 0, %s465
    %s485 = sphi 0, %s487
    %s488 = sphi 0, %s485
    %s489 = sphi 0, %s488
    %s505 = sphi 0, %s489
  $region4: #{_lambda_.1} parent=0 // loop_header_branch
    %32 = sbr.rel (%p30) target = $region8
  $region5: #{_lambda_.1} parent=0 // loop_body
    %s34 = ssub.s32 %s29, 1
    %s35 = ssub.s32 %s29, 2
    %s36 = sadd.s32 %s29, 1
    %s37 = ssub.s32 %s29, %s36
    %p38 = scmp.eq.s32.totalorder %s37, 0
    %s40 = sadd.s32 %s39, 1
    %s41 = scalar_select %p38, %s39, %s40
    %p44 = pneg %p38
    %p45 = scmp.eq.s32.totalorder %s29, 1
    %p46 = por %p44, %p45
    %p47 = scmp.ne.s32.totalorder %s39, %s42
    %p48 = scmp.eq.s32.totalorder %s29, 0
    %p49 = por %p47, %p48
    %p50 = scmp.ne.s32.totalorder %s39, %s42
    %p51 = scmp.eq.s32.totalorder %s34, 1
    %p52 = por %p50, %p51
    %p53 = scmp.ne.s32.totalorder %s42, %s43
    %p54 = scmp.eq.s32.totalorder %s34, 0
    %p55 = por %p53, %p54
    %p56 = scmp.ne.s32.totalorder %s42, %s43
    %p57 = scmp.eq.s32.totalorder %s35, 1
    %p58 = por %p56, %p57
    %p60 = scmp.ne.s32.totalorder %s43, %s59
    %p61 = scmp.eq.s32.totalorder %s35, 0
    %p62 = por %p60, %p61
    %s64 = sadd.s32 %s63, 1
    %p67 = scmp.eq.s32.totalorder %s29, 1
    %p68 = scmp.ne.s32.totalorder %s63, %s65
    %p69 = scmp.eq.s32.totalorder %s29, 0
    %p70 = por %p68, %p69
    %p71 = scmp.ne.s32.totalorder %s63, %s65
    %p72 = scmp.eq.s32.totalorder %s34, 1
    %p73 = por %p71, %p72
    %p74 = scmp.ne.s32.totalorder %s65, %s66
    %p75 = scmp.eq.s32.totalorder %s34, 0
    %p76 = por %p74, %p75
    %p77 = scmp.ne.s32.totalorder %s65, %s66
    %p78 = scmp.eq.s32.totalorder %s35, 1
    %p79 = por %p77, %p78
    %p81 = scmp.ne.s32.totalorder %s66, %s80
    %p82 = scmp.eq.s32.totalorder %s35, 0
    %p83 = por %p81, %p82
    %s85 = sadd.s32 %s84, 1
    %p88 = scmp.eq.s32.totalorder %s29, 1
    %p89 = scmp.ne.s32.totalorder %s84, %s86
    %p90 = scmp.eq.s32.totalorder %s29, 0
    %p91 = por %p89, %p90
    %p92 = scmp.ne.s32.totalorder %s84, %s86
    %p93 = scmp.eq.s32.totalorder %s34, 1
    %p94 = por %p92, %p93
    %p95 = scmp.ne.s32.totalorder %s86, %s87
    %p96 = scmp.eq.s32.totalorder %s34, 0
    %p97 = por %p95, %p96
    %p98 = scmp.ne.s32.totalorder %s86, %s87
    %p99 = scmp.eq.s32.totalorder %s35, 1
    %p100 = por %p98, %p99
    %p102 = scmp.ne.s32.totalorder %s87, %s101
    %p103 = scmp.eq.s32.totalorder %s35, 0
    %p104 = por %p102, %p103
    %s106 = sadd.s32 %s105, 1
    %p109 = scmp.eq.s32.totalorder %s29, 1
    %p110 = scmp.ne.s32.totalorder %s105, %s107
    %p111 = scmp.eq.s32.totalorder %s29, 0
    %p112 = por %p110, %p111
    %p113 = scmp.ne.s32.totalorder %s105, %s107
    %p114 = scmp.eq.s32.totalorder %s34, 1
    %p115 = por %p113, %p114
    %p116 = scmp.ne.s32.totalorder %s107, %s108
    %p117 = scmp.eq.s32.totalorder %s34, 0
    %p118 = por %p116, %p117
    %p119 = scmp.ne.s32.totalorder %s107, %s108
    %p120 = scmp.eq.s32.totalorder %s35, 1
    %p121 = por %p119, %p120
    %p123 = scmp.ne.s32.totalorder %s108, %s122
    %p124 = scmp.eq.s32.totalorder %s35, 0
    %p125 = por %p123, %p124
    %s127 = sadd.s32 %s126, 1
    %p130 = scmp.eq.s32.totalorder %s29, 1
    %p131 = scmp.ne.s32.totalorder %s126, %s128
    %p132 = scmp.eq.s32.totalorder %s29, 0
    %p133 = por %p131, %p132
    %p134 = scmp.ne.s32.totalorder %s126, %s128
    %p135 = scmp.eq.s32.totalorder %s34, 1
    %p136 = por %p134, %p135
    %p137 = scmp.ne.s32.totalorder %s128, %s129
    %p138 = scmp.eq.s32.totalorder %s34, 0
    %p139 = por %p137, %p138
    %p140 = scmp.ne.s32.totalorder %s128, %s129
    %p141 = scmp.eq.s32.totalorder %s35, 1
    %p142 = por %p140, %p141
    %p144 = scmp.ne.s32.totalorder %s129, %s143
    %p145 = scmp.eq.s32.totalorder %s35, 0
    %p146 = por %p144, %p145
    %s148 = sadd.s32 %s147, 1
    %p151 = scmp.eq.s32.totalorder %s29, 1
    %p152 = scmp.ne.s32.totalorder %s147, %s149
    %p153 = scmp.eq.s32.totalorder %s29, 0
    %p154 = por %p152, %p153
    %p155 = scmp.ne.s32.totalorder %s147, %s149
    %p156 = scmp.eq.s32.totalorder %s34, 1
    %p157 = por %p155, %p156
    %p158 = scmp.ne.s32.totalorder %s149, %s150
    %p159 = scmp.eq.s32.totalorder %s34, 0
    %p160 = por %p158, %p159
    %p161 = scmp.ne.s32.totalorder %s149, %s150
    %p162 = scmp.eq.s32.totalorder %s35, 1
    %p163 = por %p161, %p162
    %p165 = scmp.ne.s32.totalorder %s150, %s164
    %p166 = scmp.eq.s32.totalorder %s35, 0
    %p167 = por %p165, %p166
    %s169 = sadd.s32 %s168, 1
    %p172 = scmp.eq.s32.totalorder %s29, 1
    %p173 = scmp.ne.s32.totalorder %s168, %s170
    %p174 = scmp.eq.s32.totalorder %s29, 0
    %p175 = por %p173, %p174
    %p176 = scmp.ne.s32.totalorder %s168, %s170
    %p177 = scmp.eq.s32.totalorder %s34, 1
    %p178 = por %p176, %p177
    %p179 = scmp.ne.s32.totalorder %s170, %s171
    %p180 = scmp.eq.s32.totalorder %s34, 0
    %p181 = por %p179, %p180
    %p182 = scmp.ne.s32.totalorder %s170, %s171
    %p183 = scmp.eq.s32.totalorder %s35, 1
    %p184 = por %p182, %p183
    %p186 = scmp.ne.s32.totalorder %s171, %s185
    %p187 = scmp.eq.s32.totalorder %s35, 0
    %p188 = por %p186, %p187
    %s190 = sadd.s32 %s189, 1
    %p193 = scmp.eq.s32.totalorder %s29, 1
    %p194 = scmp.ne.s32.totalorder %s189, %s191
    %p195 = scmp.eq.s32.totalorder %s29, 0
    %p196 = por %p194, %p195
    %p197 = scmp.ne.s32.totalorder %s189, %s191
    %p198 = scmp.eq.s32.totalorder %s34, 1
    %p199 = por %p197, %p198
    %p200 = scmp.ne.s32.totalorder %s191, %s192
    %p201 = scmp.eq.s32.totalorder %s34, 0
    %p202 = por %p200, %p201
    %p203 = scmp.ne.s32.totalorder %s191, %s192
    %p204 = scmp.eq.s32.totalorder %s35, 1
    %p205 = por %p203, %p204
    %p207 = scmp.ne.s32.totalorder %s192, %s206
    %p208 = scmp.eq.s32.totalorder %s35, 0
    %p209 = por %p207, %p208
    %s211 = sadd.s32 %s210, 1
    %p214 = scmp.eq.s32.totalorder %s29, 1
    %p215 = scmp.ne.s32.totalorder %s210, %s212
    %p216 = scmp.eq.s32.totalorder %s29, 0
    %p217 = por %p215, %p216
    %p218 = scmp.ne.s32.totalorder %s210, %s212
    %p219 = scmp.eq.s32.totalorder %s34, 1
    %p220 = por %p218, %p219
    %p221 = scmp.ne.s32.totalorder %s212, %s213
    %p222 = scmp.eq.s32.totalorder %s34, 0
    %p223 = por %p221, %p222
    %p224 = scmp.ne.s32.totalorder %s212, %s213
    %p225 = scmp.eq.s32.totalorder %s35, 1
    %p226 = por %p224, %p225
    %p228 = scmp.ne.s32.totalorder %s213, %s227
    %p229 = scmp.eq.s32.totalorder %s35, 0
    %p230 = por %p228, %p229
    %s232 = sadd.s32 %s231, 1
    %p235 = scmp.eq.s32.totalorder %s29, 1
    %p236 = scmp.ne.s32.totalorder %s231, %s233
    %p237 = scmp.eq.s32.totalorder %s29, 0
    %p238 = por %p236, %p237
    %p239 = scmp.ne.s32.totalorder %s231, %s233
    %p240 = scmp.eq.s32.totalorder %s34, 1
    %p241 = por %p239, %p240
    %p242 = scmp.ne.s32.totalorder %s233, %s234
    %p243 = scmp.eq.s32.totalorder %s34, 0
    %p244 = por %p242, %p243
    %p245 = scmp.ne.s32.totalorder %s233, %s234
    %p246 = scmp.eq.s32.totalorder %s35, 1
    %p247 = por %p245, %p246
    %p249 = scmp.ne.s32.totalorder %s234, %s248
    %p250 = scmp.eq.s32.totalorder %s35, 0
    %p251 = por %p249, %p250
    %s253 = sadd.s32 %s252, 1
    %p256 = scmp.eq.s32.totalorder %s29, 1
    %p257 = scmp.ne.s32.totalorder %s252, %s254
    %p258 = scmp.eq.s32.totalorder %s29, 0
    %p259 = por %p257, %p258
    %p260 = scmp.ne.s32.totalorder %s252, %s254
    %p261 = scmp.eq.s32.totalorder %s34, 1
    %p262 = por %p260, %p261
    %p263 = scmp.ne.s32.totalorder %s254, %s255
    %p264 = scmp.eq.s32.totalorder %s34, 0
    %p265 = por %p263, %p264
    %p266 = scmp.ne.s32.totalorder %s254, %s255
    %p267 = scmp.eq.s32.totalorder %s35, 1
    %p268 = por %p266, %p267
    %p270 = scmp.ne.s32.totalorder %s255, %s269
    %p271 = scmp.eq.s32.totalorder %s35, 0
    %p272 = por %p270, %p271
    %s274 = sadd.s32 %s273, 1
    %p277 = scmp.eq.s32.totalorder %s29, 1
    %p278 = scmp.ne.s32.totalorder %s273, %s275
    %p279 = scmp.eq.s32.totalorder %s29, 0
    %p280 = por %p278, %p279
    %p281 = scmp.ne.s32.totalorder %s273, %s275
    %p282 = scmp.eq.s32.totalorder %s34, 1
    %p283 = por %p281, %p282
    %p284 = scmp.ne.s32.totalorder %s275, %s276
    %p285 = scmp.eq.s32.totalorder %s34, 0
    %p286 = por %p284, %p285
    %p287 = scmp.ne.s32.totalorder %s275, %s276
    %p288 = scmp.eq.s32.totalorder %s35, 1
    %p289 = por %p287, %p288
    %p291 = scmp.ne.s32.totalorder %s276, %s290
    %p292 = scmp.eq.s32.totalorder %s35, 0
    %p293 = por %p291, %p292
    %s295 = sadd.s32 %s294, 1
    %p298 = scmp.eq.s32.totalorder %s29, 1
    %p299 = scmp.ne.s32.totalorder %s294, %s296
    %p300 = scmp.eq.s32.totalorder %s29, 0
    %p301 = por %p299, %p300
    %p302 = scmp.ne.s32.totalorder %s294, %s296
    %p303 = scmp.eq.s32.totalorder %s34, 1
    %p304 = por %p302, %p303
    %p305 = scmp.ne.s32.totalorder %s296, %s297
    %p306 = scmp.eq.s32.totalorder %s34, 0
    %p307 = por %p305, %p306
    %p308 = scmp.ne.s32.totalorder %s296, %s297
    %p309 = scmp.eq.s32.totalorder %s35, 1
    %p310 = por %p308, %p309
    %p312 = scmp.ne.s32.totalorder %s297, %s311
    %p313 = scmp.eq.s32.totalorder %s35, 0
    %p314 = por %p312, %p313
    %s316 = sadd.s32 %s315, 1
    %p319 = scmp.eq.s32.totalorder %s29, 1
    %p320 = scmp.ne.s32.totalorder %s315, %s317
    %p321 = scmp.eq.s32.totalorder %s29, 0
    %p322 = por %p320, %p321
    %p323 = scmp.ne.s32.totalorder %s315, %s317
    %p324 = scmp.eq.s32.totalorder %s34, 1
    %p325 = por %p323, %p324
    %p326 = scmp.ne.s32.totalorder %s317, %s318
    %p327 = scmp.eq.s32.totalorder %s34, 0
    %p328 = por %p326, %p327
    %p329 = scmp.ne.s32.totalorder %s317, %s318
    %p330 = scmp.eq.s32.totalorder %s35, 1
    %p331 = por %p329, %p330
    %p333 = scmp.ne.s32.totalorder %s318, %s332
    %p334 = scmp.eq.s32.totalorder %s35, 0
    %p335 = por %p333, %p334
    %s337 = sadd.s32 %s336, 1
    %p340 = scmp.eq.s32.totalorder %s29, 1
    %p341 = scmp.ne.s32.totalorder %s336, %s338
    %p342 = scmp.eq.s32.totalorder %s29, 0
    %p343 = por %p341, %p342
    %p344 = scmp.ne.s32.totalorder %s336, %s338
    %p345 = scmp.eq.s32.totalorder %s34, 1
    %p346 = por %p344, %p345
    %p347 = scmp.ne.s32.totalorder %s338, %s339
    %p348 = scmp.eq.s32.totalorder %s34, 0
    %p349 = por %p347, %p348
    %p350 = scmp.ne.s32.totalorder %s338, %s339
    %p351 = scmp.eq.s32.totalorder %s35, 1
    %p352 = por %p350, %p351
    %p354 = scmp.ne.s32.totalorder %s339, %s353
    %p355 = scmp.eq.s32.totalorder %s35, 0
    %p356 = por %p354, %p355
    %s358 = sadd.s32 %s357, 1
    %p361 = scmp.eq.s32.totalorder %s29, 1
    %p362 = scmp.ne.s32.totalorder %s357, %s359
    %p363 = scmp.eq.s32.totalorder %s29, 0
    %p364 = por %p362, %p363
    %p365 = scmp.ne.s32.totalorder %s357, %s359
    %p366 = scmp.eq.s32.totalorder %s34, 1
    %p367 = por %p365, %p366
    %p368 = scmp.ne.s32.totalorder %s359, %s360
    %p369 = scmp.eq.s32.totalorder %s34, 0
    %p370 = por %p368, %p369
    %p371 = scmp.ne.s32.totalorder %s359, %s360
    %p372 = scmp.eq.s32.totalorder %s35, 1
    %p373 = por %p371, %p372
    %p375 = scmp.ne.s32.totalorder %s360, %s374
    %p376 = scmp.eq.s32.totalorder %s35, 0
    %p377 = por %p375, %p376
    %s379 = sadd.s32 %s378, 1
    %p382 = scmp.eq.s32.totalorder %s29, 1
    %p383 = scmp.ne.s32.totalorder %s378, %s380
    %p384 = scmp.eq.s32.totalorder %s29, 0
    %p385 = por %p383, %p384
    %p386 = scmp.ne.s32.totalorder %s378, %s380
    %p387 = scmp.eq.s32.totalorder %s34, 1
    %p388 = por %p386, %p387
    %p389 = scmp.ne.s32.totalorder %s380, %s381
    %p390 = scmp.eq.s32.totalorder %s34, 0
    %p391 = por %p389, %p390
    %p392 = scmp.ne.s32.totalorder %s380, %s381
    %p393 = scmp.eq.s32.totalorder %s35, 1
    %p394 = por %p392, %p393
    %p396 = scmp.ne.s32.totalorder %s381, %s395
    %p397 = scmp.eq.s32.totalorder %s35, 0
    %p398 = por %p396, %p397
    %s400 = sadd.s32 %s399, 1
    %p403 = scmp.eq.s32.totalorder %s29, 1
    %p404 = scmp.ne.s32.totalorder %s399, %s401
    %p405 = scmp.eq.s32.totalorder %s29, 0
    %p406 = por %p404, %p405
    %p407 = scmp.ne.s32.totalorder %s399, %s401
    %p408 = scmp.eq.s32.totalorder %s34, 1
    %p409 = por %p407, %p408
    %p410 = scmp.ne.s32.totalorder %s401, %s402
    %p411 = scmp.eq.s32.totalorder %s34, 0
    %p412 = por %p410, %p411
    %p413 = scmp.ne.s32.totalorder %s401, %s402
    %p414 = scmp.eq.s32.totalorder %s35, 1
    %p415 = por %p413, %p414
    %p417 = scmp.ne.s32.totalorder %s402, %s416
    %p418 = scmp.eq.s32.totalorder %s35, 0
    %p419 = por %p417, %p418
    %s421 = sadd.s32 %s420, 1
    %p424 = scmp.eq.s32.totalorder %s29, 1
    %p425 = scmp.ne.s32.totalorder %s420, %s422
    %p426 = scmp.eq.s32.totalorder %s29, 0
    %p427 = por %p425, %p426
    %p428 = scmp.ne.s32.totalorder %s420, %s422
    %p429 = scmp.eq.s32.totalorder %s34, 1
    %p430 = por %p428, %p429
    %p431 = scmp.ne.s32.totalorder %s422, %s423
    %p432 = scmp.eq.s32.totalorder %s34, 0
    %p433 = por %p431, %p432
    %p434 = scmp.ne.s32.totalorder %s422, %s423
    %p435 = scmp.eq.s32.totalorder %s35, 1
    %p436 = por %p434, %p435
    %p438 = scmp.ne.s32.totalorder %s423, %s437
    %p439 = scmp.eq.s32.totalorder %s35, 0
    %p440 = por %p438, %p439
    %s442 = sadd.s32 %s441, 1
    %p445 = scmp.eq.s32.totalorder %s29, 1
    %p446 = scmp.ne.s32.totalorder %s441, %s443
    %p447 = scmp.eq.s32.totalorder %s29, 0
    %p448 = por %p446, %p447
    %p449 = scmp.ne.s32.totalorder %s441, %s443
    %p450 = scmp.eq.s32.totalorder %s34, 1
    %p451 = por %p449, %p450
    %p452 = scmp.ne.s32.totalorder %s443, %s444
    %p453 = scmp.eq.s32.totalorder %s34, 0
    %p454 = por %p452, %p453
    %p455 = scmp.ne.s32.totalorder %s443, %s444
    %p456 = scmp.eq.s32.totalorder %s35, 1
    %p457 = por %p455, %p456
    %p459 = scmp.ne.s32.totalorder %s444, %s458
    %p460 = scmp.eq.s32.totalorder %s35, 0
    %p461 = por %p459, %p460
    %s463 = sadd.s32 %s462, 1
    %p466 = scmp.eq.s32.totalorder %s29, 1
    %p467 = scmp.ne.s32.totalorder %s462, %s464
    %p468 = scmp.eq.s32.totalorder %s29, 0
    %p469 = por %p467, %p468
    %p470 = scmp.ne.s32.totalorder %s462, %s464
    %p471 = scmp.eq.s32.totalorder %s34, 1
    %p472 = por %p470, %p471
    %p473 = scmp.ne.s32.totalorder %s464, %s465
    %p474 = scmp.eq.s32.totalorder %s34, 0
    %p475 = por %p473, %p474
    %p476 = scmp.ne.s32.totalorder %s464, %s465
    %p477 = scmp.eq.s32.totalorder %s35, 1
    %p478 = por %p476, %p477
    %p480 = scmp.ne.s32.totalorder %s465, %s479
    %p481 = scmp.eq.s32.totalorder %s35, 0
    %p482 = por %p480, %p481
    %s483 = ssub.s32 %s29, %s36
    %p484 = scmp.eq.s32.totalorder %s483, 0
    %s486 = sadd.s32 %s485, 1
    %s487 = scalar_select %p484, %s485, %s486
    %p490 = pneg %p484
    %p491 = scmp.eq.s32.totalorder %s29, 1
    %p492 = por %p490, %p491
    %p493 = scmp.ne.s32.totalorder %s485, %s488
    %p494 = scmp.eq.s32.totalorder %s29, 0
    %p495 = por %p493, %p494
    %p496 = scmp.ne.s32.totalorder %s485, %s488
    %p497 = scmp.eq.s32.totalorder %s34, 1
    %p498 = por %p496, %p497
    %p499 = scmp.ne.s32.totalorder %s488, %s489
    %p500 = scmp.eq.s32.totalorder %s34, 0
    %p501 = por %p499, %p500
    %p502 = scmp.ne.s32.totalorder %s488, %s489
    %p503 = scmp.eq.s32.totalorder %s35, 1
    %p504 = por %p502, %p503
    %p506 = scmp.ne.s32.totalorder %s489, %s505
    %p507 = scmp.eq.s32.totalorder %s35, 0
    %p508 = por %p506, %p507
    %p509 = scmp.le.s32.totalorder 1, %s29
    %p510 = scmp.lt.s32.totalorder %s29, 3
    %p511 = pnand %p509, %p510
    %p512 = pneg %p511
    // Predicated region
    $region9: #{_lambda_.1} parent=5 // pred_check
      _
    $region10: #{_lambda_.1} parent=5 // pred_check_branch
      %514 = sbr.rel (%p511) target = $region12
    $region11: #{_lambda_.1} parent=5 // pred_region
      %s515 = ssub.s32 %s29, 1
      // Predicated region
      $region13: #{_lambda_.1} parent=11 // pred_check
        %p516 = pneg %p76
      $region14: #{_lambda_.1} parent=11 // pred_check_branch
        %518 = sbr.rel (%p516) target = $region16
      $region15: #{_lambda_.1} parent=11 // pred_region
        _
      $region16: #{_lambda_.1} parent=11 // pred_fallthru
        _
      // Predicated region
      $region17: #{_lambda_.1} parent=11 // pred_check
        %p519 = pneg %p97
      $region18: #{_lambda_.1} parent=11 // pred_check_branch
        %521 = sbr.rel (%p519) target = $region20
      $region19: #{_lambda_.1} parent=11 // pred_region
        _
      $region20: #{_lambda_.1} parent=11 // pred_fallthru
        _
      // Predicated region
      $region21: #{_lambda_.1} parent=11 // pred_check
        %p522 = pneg %p118
      $region22: #{_lambda_.1} parent=11 // pred_check_branch
        %524 = sbr.rel (%p522) target = $region24
      $region23: #{_lambda_.1} parent=11 // pred_region
        _
      $region24: #{_lambda_.1} parent=11 // pred_fallthru
        _
      // Predicated region
      $region25: #{_lambda_.1} parent=11 // pred_check
        %p525 = pneg %p139
      $region26: #{_lambda_.1} parent=11 // pred_check_branch
        %527 = sbr.rel (%p525) target = $region28
      $region27: #{_lambda_.1} parent=11 // pred_region
        _
      $region28: #{_lambda_.1} parent=11 // pred_fallthru
        _
      // Predicated region
      $region29: #{_lambda_.1} parent=11 // pred_check
        %p528 = pneg %p160
      $region30: #{_lambda_.1} parent=11 // pred_check_branch
        %530 = sbr.rel (%p528) target = $region32
      $region31: #{_lambda_.1} parent=11 // pred_region
        _
      $region32: #{_lambda_.1} parent=11 // pred_fallthru
        _
      // Predicated region
      $region33: #{_lambda_.1} parent=11 // pred_check
        %p531 = pneg %p181
      $region34: #{_lambda_.1} parent=11 // pred_check_branch
        %533 = sbr.rel (%p531) target = $region36
      $region35: #{_lambda_.1} parent=11 // pred_region
        _
      $region36: #{_lambda_.1} parent=11 // pred_fallthru
        _
      // Predicated region
      $region37: #{_lambda_.1} parent=11 // pred_check
        %p534 = pneg %p202
      $region38: #{_lambda_.1} parent=11 // pred_check_branch
        %536 = sbr.rel (%p534) target = $region40
      $region39: #{_lambda_.1} parent=11 // pred_region
        _
      $region40: #{_lambda_.1} parent=11 // pred_fallthru
        _
      // Predicated region
      $region41: #{_lambda_.1} parent=11 // pred_check
        %p537 = pneg %p223
      $region42: #{_lambda_.1} parent=11 // pred_check_branch
        %539 = sbr.rel (%p537) target = $region44
      $region43: #{_lambda_.1} parent=11 // pred_region
        _
      $region44: #{_lambda_.1} parent=11 // pred_fallthru
        _
      // Predicated region
      $region45: #{_lambda_.1} parent=11 // pred_check
        %p540 = pneg %p244
      $region46: #{_lambda_.1} parent=11 // pred_check_branch
        %542 = sbr.rel (%p540) target = $region48
      $region47: #{_lambda_.1} parent=11 // pred_region
        _
      $region48: #{_lambda_.1} parent=11 // pred_fallthru
        _
      // Predicated region
      $region49: #{_lambda_.1} parent=11 // pred_check
        %p543 = pneg %p265
      $region50: #{_lambda_.1} parent=11 // pred_check_branch
        %545 = sbr.rel (%p543) target = $region52
      $region51: #{_lambda_.1} parent=11 // pred_region
        _
      $region52: #{_lambda_.1} parent=11 // pred_fallthru
        _
      // Predicated region
      $region53: #{_lambda_.1} parent=11 // pred_check
        %p546 = pneg %p286
      $region54: #{_lambda_.1} parent=11 // pred_check_branch
        %548 = sbr.rel (%p546) target = $region56
      $region55: #{_lambda_.1} parent=11 // pred_region
        _
      $region56: #{_lambda_.1} parent=11 // pred_fallthru
        _
      // Predicated region
      $region57: #{_lambda_.1} parent=11 // pred_check
        %p549 = pneg %p307
      $region58: #{_lambda_.1} parent=11 // pred_check_branch
        %551 = sbr.rel (%p549) target = $region60
      $region59: #{_lambda_.1} parent=11 // pred_region
        _
      $region60: #{_lambda_.1} parent=11 // pred_fallthru
        _
      // Predicated region
      $region61: #{_lambda_.1} parent=11 // pred_check
        %p552 = pneg %p328
      $region62: #{_lambda_.1} parent=11 // pred_check_branch
        %554 = sbr.rel (%p552) target = $region64
      $region63: #{_lambda_.1} parent=11 // pred_region
        _
      $region64: #{_lambda_.1} parent=11 // pred_fallthru
        _
      // Predicated region
      $region65: #{_lambda_.1} parent=11 // pred_check
        %p555 = pneg %p349
      $region66: #{_lambda_.1} parent=11 // pred_check_branch
        %557 = sbr.rel (%p555) target = $region68
      $region67: #{_lambda_.1} parent=11 // pred_region
        _
      $region68: #{_lambda_.1} parent=11 // pred_fallthru
        _
      // Predicated region
      $region69: #{_lambda_.1} parent=11 // pred_check
        %p558 = pneg %p370
      $region70: #{_lambda_.1} parent=11 // pred_check_branch
        %560 = sbr.rel (%p558) target = $region72
      $region71: #{_lambda_.1} parent=11 // pred_region
        _
      $region72: #{_lambda_.1} parent=11 // pred_fallthru
        _
      // Predicated region
      $region73: #{_lambda_.1} parent=11 // pred_check
        %p561 = pneg %p391
      $region74: #{_lambda_.1} parent=11 // pred_check_branch
        %563 = sbr.rel (%p561) target = $region76
      $region75: #{_lambda_.1} parent=11 // pred_region
        _
      $region76: #{_lambda_.1} parent=11 // pred_fallthru
        _
      // Predicated region
      $region77: #{_lambda_.1} parent=11 // pred_check
        %p564 = pneg %p412
      $region78: #{_lambda_.1} parent=11 // pred_check_branch
        %566 = sbr.rel (%p564) target = $region80
      $region79: #{_lambda_.1} parent=11 // pred_region
        _
      $region80: #{_lambda_.1} parent=11 // pred_fallthru
        _
      // Predicated region
      $region81: #{_lambda_.1} parent=11 // pred_check
        %p567 = pneg %p433
      $region82: #{_lambda_.1} parent=11 // pred_check_branch
        %569 = sbr.rel (%p567) target = $region84
      $region83: #{_lambda_.1} parent=11 // pred_region
        _
      $region84: #{_lambda_.1} parent=11 // pred_fallthru
        _
      // Predicated region
      $region85: #{_lambda_.1} parent=11 // pred_check
        %p570 = pneg %p454
      $region86: #{_lambda_.1} parent=11 // pred_check_branch
        %572 = sbr.rel (%p570) target = $region88
      $region87: #{_lambda_.1} parent=11 // pred_region
        _
      $region88: #{_lambda_.1} parent=11 // pred_fallthru
        _
      // Predicated region
      $region89: #{_lambda_.1} parent=11 // pred_check
        %p573 = pneg %p475
      $region90: #{_lambda_.1} parent=11 // pred_check_branch
        %575 = sbr.rel (%p573) target = $region92
      $region91: #{_lambda_.1} parent=11 // pred_region
        _
      $region92: #{_lambda_.1} parent=11 // pred_fallthru
        _
    $region12: #{_lambda_.1} parent=5 // pred_fallthru
      _
    %p576 = scmp.lt.s32.totalorder %s29, 2
    // Predicated region
    $region93: #{_lambda_.1} parent=5 // pred_check
      %p577 = pneg %p576
    $region94: #{_lambda_.1} parent=5 // pred_check_branch
      %579 = sbr.rel (%p577) target = $region96
    $region95: #{_lambda_.1} parent=5 // pred_region
      // Predicated region
      $region97: #{_lambda_.1} parent=95 // pred_check
        %p580 = pneg %p49
      $region98: #{_lambda_.1} parent=95 // pred_check_branch
        %582 = sbr.rel (%p580) target = $region100
      $region99: #{_lambda_.1} parent=95 // pred_region
        %s583 = smul.u32 6, %s29
        %p584 = scmp.lt.s32.totalorder %s583, 11
        %s585 = scalar_select %p584, %s583, 11
        %s586 = smul.addr %s585, 8
        %s587 = scalar_lea.vmem %s0, %s586
        %s588 = smul.u32 6, %s29
      $region100: #{_lambda_.1} parent=95 // pred_fallthru
        _
    $region96: #{_lambda_.1} parent=5 // pred_fallthru
      _
    %p589 = scmp.le.s32.totalorder 1, %s29
    %p590 = scmp.lt.s32.totalorder %s29, 3
    %p591 = pnand %p589, %p590
    %p592 = pneg %p591
    // Predicated region
    $region101: #{_lambda_.1} parent=5 // pred_check
      _
    $region102: #{_lambda_.1} parent=5 // pred_check_branch
      %594 = sbr.rel (%p591) target = $region104
    $region103: #{_lambda_.1} parent=5 // pred_region
      %s595 = ssub.s32 %s29, 1
      %s596 = smul.u32 6, %s34
      %p597 = scmp.lt.s32.totalorder %s596, 11
      %s598 = scalar_select %p597, %s596, 11
      %s599 = smul.addr %s598, 8
      %s600 = scalar_lea.vmem %s0, %s599
      %p601 = pneg %p55
      %p602 = pneg %p52
      %p603 = pneg %p76
      %p604 = pneg %p73
      %p605 = pneg %p97
      %p606 = pneg %p94
      %p607 = pneg %p118
      %p608 = pneg %p115
      %p609 = pneg %p139
      %p610 = pneg %p136
      %p611 = pneg %p160
      %p612 = pneg %p157
      %p613 = pneg %p181
      %p614 = pneg %p178
      %p615 = pneg %p202
      %p616 = pneg %p199
      %p617 = pneg %p223
      %p618 = pneg %p220
      %p619 = pneg %p244
      %p620 = pneg %p241
      %p621 = pneg %p265
      %p622 = pneg %p262
      %p623 = pneg %p286
      %p624 = pneg %p283
      %p625 = pneg %p307
      %p626 = pneg %p304
      %p627 = pneg %p328
      %p628 = pneg %p325
      %p629 = pneg %p349
      %p630 = pneg %p346
      %p631 = pneg %p370
      %p632 = pneg %p367
      %p633 = pneg %p391
      %p634 = pneg %p388
      %p635 = pneg %p412
      %p636 = pneg %p409
      %p637 = pneg %p433
      %p638 = pneg %p430
      %p639 = pneg %p454
      %p640 = pneg %p451
      %p641 = pneg %p475
      %p642 = pneg %p472
      %p643 = pneg %p501
      %p644 = pneg %p498
      %s645 = smul.u32 6, %s34
      %p646 = scmp.lt.s32.totalorder %s645, 11
      %s647 = scalar_select %p646, %s645, 11
      %s648 = smul.addr %s647, 4
      %s649 = scalar_lea.vmem %s21, %s648
      %s650 = smul.u32 6, %s34
      %p651 = scmp.lt.s32.totalorder %s650, 11
      %s652 = scalar_select %p651, %s650, 11
      %s653 = smul.addr %s652, 8
      %s654 = scalar_lea.vmem %s0, %s653
      %s655 = smul.u32 6, %s34
      %s656 = smul.u32 6, %s34
      %p657 = scmp.lt.s32.totalorder %s656, 11
      %s658 = scalar_select %p657, %s656, 11
      %s659 = smul.addr %s658, 4
      %s660 = scalar_lea.vmem %s21, %s659
      %s661 = smul.u32 6, %s34
      %v662 = vlaneseq
      %v663 = vand.u32 %v662, 127
      %v664 = vadd.s32 %v663, 128
      %v665 = vadd.s32 %v663, 256
      %v666 = vadd.s32 %v663, 384
      %v667 = vadd.s32 %v663, 512
      %v668 = vadd.s32 %v663, 640
      %vm669 = vcmp.lt.s32.totalorder %v663, 0
      %v670 = vsub.s32 0, %v663
      %v671 = vsel %vm669, %v670, %v663
      %v672 = vshrl.u32 %v671, 8
      %v673 = vand.u32 %v671, 255
      %v674 = vsub.s32 0, %v673
      %v675 = vsel %vm669, %v674, %v673
      %vm676 = vcmp.lt.s32.totalorder %v664, 0
      %v677 = vsub.s32 0, %v664
      %v678 = vsel %vm676, %v677, %v664
      %v679 = vshrl.u32 %v678, 8
      %v680 = vand.u32 %v678, 255
      %v681 = vsub.s32 0, %v680
      %v682 = vsel %vm676, %v681, %v680
      %vm683 = vcmp.lt.s32.totalorder %v665, 0
      %v684 = vsub.s32 0, %v665
      %v685 = vsel %vm683, %v684, %v665
      %v686 = vshrl.u32 %v685, 8
      %v687 = vand.u32 %v685, 255
      %v688 = vsub.s32 0, %v687
      %v689 = vsel %vm683, %v688, %v687
      %vm690 = vcmp.lt.s32.totalorder %v666, 0
      %v691 = vsub.s32 0, %v666
      %v692 = vsel %vm690, %v691, %v666
      %v693 = vshrl.u32 %v692, 8
      %v694 = vand.u32 %v692, 255
      %v695 = vsub.s32 0, %v694
      %v696 = vsel %vm690, %v695, %v694
      %vm697 = vcmp.lt.s32.totalorder %v667, 0
      %v698 = vsub.s32 0, %v667
      %v699 = vsel %vm697, %v698, %v667
      %v700 = vshrl.u32 %v699, 8
      %v701 = vand.u32 %v699, 255
      %v702 = vsub.s32 0, %v701
      %v703 = vsel %vm697, %v702, %v701
      %vm704 = vcmp.lt.s32.totalorder %v668, 0
      %v705 = vsub.s32 0, %v668
      %v706 = vsel %vm704, %v705, %v668
      %v707 = vshrl.u32 %v706, 8
      %v708 = vand.u32 %v706, 255
      %v709 = vsub.s32 0, %v708
      %v710 = vsel %vm704, %v709, %v708
      %vm711 = vcmp.ne.s32.totalorder %v675, 0
      %vm712 = vcmp.ne.s32.totalorder %v682, 0
      %vm713 = vcmp.ne.s32.totalorder %v689, 0
      %vm714 = vcmp.ne.s32.totalorder %v696, 0
      %vm715 = vcmp.ne.s32.totalorder %v703, 0
      %vm716 = vcmp.ne.s32.totalorder %v710, 0
      %vm717 = vcmp.lt.s32.totalorder %v675, 0
      %vm718 = vcmp.lt.s32.totalorder %v682, 0
      %vm719 = vcmp.lt.s32.totalorder %v689, 0
      %vm720 = vcmp.lt.s32.totalorder %v696, 0
      %vm721 = vcmp.lt.s32.totalorder %v703, 0
      %vm722 = vcmp.lt.s32.totalorder %v710, 0
      %vm723 = vmand %vm717, %vm711
      %vm724 = vmand %vm718, %vm712
      %vm725 = vmand %vm719, %vm713
      %vm726 = vmand %vm720, %vm714
      %vm727 = vmand %vm721, %vm715
      %vm728 = vmand %vm722, %vm716
      %v729 = vadd.s32 %v675, 256
      %v730 = vadd.s32 %v682, 256
      %v731 = vadd.s32 %v689, 256
      %v732 = vadd.s32 %v696, 256
      %v733 = vadd.s32 %v703, 256
      %v734 = vadd.s32 %v710, 256
      %v735 = vsel %vm723, %v729, %v675
      %v736 = vsel %vm724, %v730, %v682
      %v737 = vsel %vm725, %v731, %v689
      %v738 = vsel %vm726, %v732, %v696
      %v739 = vsel %vm727, %v733, %v703
      %v740 = vsel %vm728, %v734, %v710
      %vm741 = vcmp.lt.s32.totalorder %v735, 250
      %vm742 = vcmp.lt.s32.totalorder %v736, 250
      %vm743 = vcmp.lt.s32.totalorder %v737, 250
      %vm744 = vcmp.lt.s32.totalorder %v738, 250
      %vm745 = vcmp.lt.s32.totalorder %v739, 250
      %vm746 = vcmp.lt.s32.totalorder %v740, 250
      %v747 = vld [vmem:[%s654] sm:$0xff]
      %v748 = vld [vmem:[%s654 + $0x8] sm:$0xff]
      %v749 = vld [vmem:[%s654 + $0x10] sm:$0xff]
      %v750 = vld [vmem:[%s654 + $0x18] sm:$0xff]
      %v751 = vld [vmem:[%s654 + $0x20] sm:$0xff]
      %v752 = vld [vmem:[%s654 + $0x28] sm:$0xff]
      %v753 = vld [vmem:[%s1] sm:$0xff]
      %v754 = vld [vmem:[%s1 + $0x8] sm:$0xff]
      %755 = vrot.lane.b32.xlu0 %v747, 1
      %v756 = vpop.permute.xlu0 %755
      %757 = vrot.lane.b32.xlu0 %v748, 1
      %v758 = vpop.permute.xlu0 %757
      %759 = vrot.lane.b32.xlu0 %v749, 1
      %v760 = vpop.permute.xlu0 %759
      %761 = vrot.lane.b32.xlu0 %v750, 1
      %v762 = vpop.permute.xlu0 %761
      %763 = vrot.lane.b32.xlu0 %v751, 1
      %v764 = vpop.permute.xlu0 %763
      %765 = vrot.lane.b32.xlu0 %v752, 1
      %v766 = vpop.permute.xlu0 %765
      %vm767 = vcmp.lt.s32.totalorder %v663, 1
      %v768 = vsel %vm767, %v764, %v766
      %v769 = vsel %vm767, %v762, %v764
      %v770 = vsel %vm767, %v760, %v762
      %v771 = vsel %vm767, %v758, %v760
      %v772 = vsel %vm767, %v756, %v758
      %v773 = vsel %vm767, %v766, %v756
      %774 = vrot.lane.b32.xlu0 %v747, 127
      %v775 = vpop.permute.xlu0 %774
      %776 = vrot.lane.b32.xlu0 %v748, 127
      %v777 = vpop.permute.xlu0 %776
      %778 = vrot.lane.b32.xlu0 %v749, 127
      %v779 = vpop.permute.xlu0 %778
      %780 = vrot.lane.b32.xlu0 %v750, 127
      %v781 = vpop.permute.xlu0 %780
      %782 = vrot.lane.b32.xlu0 %v751, 127
      %v783 = vpop.permute.xlu0 %782
      %784 = vrot.lane.b32.xlu0 %v752, 127
      %v785 = vpop.permute.xlu0 %784
      %vm786 = vcmp.lt.s32.totalorder %v663, 127
      %v787 = vsel %vm786, %v783, %v785
      %v788 = vsel %vm786, %v781, %v783
      %v789 = vsel %vm786, %v779, %v781
      %v790 = vsel %vm786, %v777, %v779
      %v791 = vsel %vm786, %v775, %v777
      %v792 = vsel %vm786, %v785, %v775
      %v793 = vld [vmem:[%s2] sm:$0xff]
      %v794 = vld [vmem:[%s2 + $0x8] sm:$0xff]
      %796 = vset.pattern.permute.xlu0 0
      %797 = vperm.xlu0 %796, %v793
      %v798 = vpop.permute.xlu0 %797
      %801 = vset.pattern.permute.xlu0 0
      %802 = vperm.xlu0 %801, %v794
      %v803 = vpop.permute.xlu0 %802
      %vm805 = vcmask 195584
      %v807 = vsel %vm805, %v753, 0
      %v810 = vsel %vm805, %v754, 0
      %812 = vmatprep.subr.mxu0 %v772
      %813 = vmatpush1.msra.mxu0 %v773
      %814 = vmatprep.subr.mxu0 %v748
      %815 = vmatpush1.msra.mxu0 %v747
      %816 = vmatprep.subr.mxu0 %v790
      %817 = vmatpush1.msra.mxu0 %v791
      %818 = vmatprep.subr.mxu0 0.0
      %819 = vmatpush1.msra.mxu0 0.0
      %820 = vmatprep.subr.mxu0 0.0
      %821 = vmatpush1.msra.mxu0 0.0
      %822 = vmatprep.subr.mxu0 0.0
      %823 = vmatpush1.msra.mxu0 0.0
      %824 = vmatprep.subr.mxu0 0.0
      %825 = vmatpush1.msra.mxu0 0.0
      %826 = vmatprep.subr.mxu0 0.0
      %827 = vmatpush1.msra.mxu0 0.0
      %828 = vmatprep.subr.mxu0 0.0
      %829 = vmatpush1.msra.mxu0 0.0
      %830 = vmatprep.subr.mxu0 0.0
      %831 = vmatpush1.msra.mxu0 0.0
      %832 = vmatprep.subr.mxu0 0.0
      %833 = vmatpush1.msra.mxu0 0.0
      %834 = vmatprep.subr.mxu0 0.0
      %835 = vmatpush1.msra.mxu0 0.0
      %836 = vmatprep.subr.mxu0 0.0
      %837 = vmatpush1.msra.mxu0 0.0
      %838 = vmatprep.subr.mxu0 0.0
      %839 = vmatpush1.msra.mxu0 0.0
      %840 = vmatprep.subr.mxu0 0.0
      %841 = vmatpush1.msra.mxu0 0.0
      %842 = vmatprep.subr.mxu0 0.0
      %843 = vmatpush1.msra.mxu0 0.0
      %844 = vmatprep.subr.mxu0 0.0
      %845 = vmatpush1.msra.mxu0 0.0
      %846 = vmatprep.subr.mxu0 0.0
      %847 = vmatpush1.msra.mxu0 0.0
      %848 = vmatprep.subr.mxu0 0.0
      %849 = vmatpush1.msra.mxu0 0.0
      %850 = vmatprep.subr.mxu0 0.0
      %851 = vmatpush1.msra.mxu0 0.0
      %852 = vmatprep.subr.mxu0 0.0
      %853 = vmatpush1.msra.mxu0 0.0
      %854 = vmatprep.subr.mxu0 0.0
      %855 = vmatpush1.msra.mxu0 0.0
      %856 = vmatprep.subr.mxu0 0.0
      %857 = vmatpush1.msra.mxu0 0.0
      %858 = vmatprep.subr.mxu0 0.0
      %859 = vmatpush1.msra.mxu0 0.0
      %860 = vmatprep.subr.mxu0 0.0
      %861 = vmatpush1.msra.mxu0 0.0
      %862 = vmatprep.subr.mxu0 0.0
      %863 = vmatpush1.msra.mxu0 0.0
      %864 = vmatprep.subr.mxu0 0.0
      %865 = vmatpush1.msra.mxu0 0.0
      %866 = vmatprep.subr.mxu0 0.0
      %867 = vmatpush1.msra.mxu0 0.0
      %868 = vmatprep.subr.mxu0 0.0
      %869 = vmatpush1.msra.mxu0 0.0
      %870 = vmatprep.subr.mxu0 0.0
      %871 = vmatpush1.msra.mxu0 0.0
      %872 = vmatprep.subr.mxu0 0.0
      %873 = vmatpush1.msra.mxu0 0.0
      %874 = vmatprep.subr.mxu0 0.0
      %875 = vmatpush1.msra.mxu0 0.0
      %876 = vmatprep.mubr.f32.mxu0 0.0
      %877 = vmatmul.mubr.f32.gmra.mrb[0].mxu0 %v807
      %v878 = vpop.f32.mrb[0].mxu0
      %v879 = vadd.f32 %v798, %v878
      %v880 = vpop.f32.mrb[0].mxu0
      %v881 = vadd.f32 %v798, %v880
      %882 = vmatprep.mubr.f32.mxu0 0.0
      %883 = vmatmul.mubr.f32.gmra.mrb[0].mxu0 %v810
      %v884 = vpop.f32.mrb[0].mxu0
      %v885 = vadd.f32 %v803, %v884
      %v886 = vpop.f32.mrb[0].mxu0
      %v887 = vadd.f32 %v803, %v886
      %888 = vdwg.mxu0
      %889 = vmatprep.subr.mxu0 %v770
      %890 = vmatpush1.msra.mxu0 %v771
      %891 = vmatprep.subr.mxu0 %v750
      %892 = vmatpush1.msra.mxu0 %v749
      %893 = vmatprep.subr.mxu0 %v788
      %894 = vmatpush1.msra.mxu0 %v789
      %895 = vmatprep.subr.mxu0 0.0
      %896 = vmatpush1.msra.mxu0 0.0
      %897 = vmatprep.subr.mxu0 0.0
      %898 = vmatpush1.msra.mxu0 0.0
      %899 = vmatprep.subr.mxu0 0.0
      %900 = vmatpush1.msra.mxu0 0.0
      %901 = vmatprep.subr.mxu0 0.0
      %902 = vmatpush1.msra.mxu0 0.0
      %903 = vmatprep.subr.mxu0 0.0
      %904 = vmatpush1.msra.mxu0 0.0
      %905 = vmatprep.subr.mxu0 0.0
      %906 = vmatpush1.msra.mxu0 0.0
      %907 = vmatprep.subr.mxu0 0.0
      %908 = vmatpush1.msra.mxu0 0.0
      %909 = vmatprep.subr.mxu0 0.0
      %910 = vmatpush1.msra.mxu0 0.0
      %911 = vmatprep.subr.mxu0 0.0
      %912 = vmatpush1.msra.mxu0 0.0
      %913 = vmatprep.subr.mxu0 0.0
      %914 = vmatpush1.msra.mxu0 0.0
      %915 = vmatprep.subr.mxu0 0.0
      %916 = vmatpush1.msra.mxu0 0.0
      %917 = vmatprep.subr.mxu0 0.0
      %918 = vmatpush1.msra.mxu0 0.0
      %919 = vmatprep.subr.mxu0 0.0
      %920 = vmatpush1.msra.mxu0 0.0
      %921 = vmatprep.subr.mxu0 0.0
      %922 = vmatpush1.msra.mxu0 0.0
      %923 = vmatprep.subr.mxu0 0.0
      %924 = vmatpush1.msra.mxu0 0.0
      %925 = vmatprep.subr.mxu0 0.0
      %926 = vmatpush1.msra.mxu0 0.0
      %927 = vmatprep.subr.mxu0 0.0
      %928 = vmatpush1.msra.mxu0 0.0
      %929 = vmatprep.subr.mxu0 0.0
      %930 = vmatpush1.msra.mxu0 0.0
      %931 = vmatprep.subr.mxu0 0.0
      %932 = vmatpush1.msra.mxu0 0.0
      %933 = vmatprep.subr.mxu0 0.0
      %934 = vmatpush1.msra.mxu0 0.0
      %935 = vmatprep.subr.mxu0 0.0
      %936 = vmatpush1.msra.mxu0 0.0
      %937 = vmatprep.subr.mxu0 0.0
      %938 = vmatpush1.msra.mxu0 0.0
      %939 = vmatprep.subr.mxu0 0.0
      %940 = vmatpush1.msra.mxu0 0.0
      %941 = vmatprep.subr.mxu0 0.0
      %942 = vmatpush1.msra.mxu0 0.0
      %943 = vmatprep.subr.mxu0 0.0
      %944 = vmatpush1.msra.mxu0 0.0
      %945 = vmatprep.subr.mxu0 0.0
      %946 = vmatpush1.msra.mxu0 0.0
      %947 = vmatprep.subr.mxu0 0.0
      %948 = vmatpush1.msra.mxu0 0.0
      %949 = vmatprep.subr.mxu0 0.0
      %950 = vmatpush1.msra.mxu0 0.0
      %951 = vmatprep.subr.mxu0 0.0
      %952 = vmatpush1.msra.mxu0 0.0
      %953 = vmatprep.mubr.f32.mxu0 0.0
      %954 = vmatmul.mubr.f32.gmra.mrb[0].mxu0 %v807
      %v955 = vpop.f32.mrb[0].mxu0
      %v956 = vadd.f32 %v798, %v955
      %v957 = vpop.f32.mrb[0].mxu0
      %v958 = vadd.f32 %v798, %v957
      %959 = vmatprep.mubr.f32.mxu0 0.0
      %960 = vmatmul.mubr.f32.gmra.mrb[0].mxu0 %v810
      %v961 = vpop.f32.mrb[0].mxu0
      %v962 = vadd.f32 %v803, %v961
      %v963 = vpop.f32.mrb[0].mxu0
      %v964 = vadd.f32 %v803, %v963
      %965 = vdwg.mxu0
      %966 = vmatprep.subr.mxu0 %v768
      %967 = vmatpush1.msra.mxu0 %v769
      %968 = vmatprep.subr.mxu0 %v752
      %969 = vmatpush1.msra.mxu0 %v751
      %970 = vmatprep.subr.mxu0 %v792
      %971 = vmatpush1.msra.mxu0 %v787
      %972 = vmatprep.subr.mxu0 0.0
      %973 = vmatpush1.msra.mxu0 0.0
      %974 = vmatprep.subr.mxu0 0.0
      %975 = vmatpush1.msra.mxu0 0.0
      %976 = vmatprep.subr.mxu0 0.0
      %977 = vmatpush1.msra.mxu0 0.0
      %978 = vmatprep.subr.mxu0 0.0
      %979 = vmatpush1.msra.mxu0 0.0
      %980 = vmatprep.subr.mxu0 0.0
      %981 = vmatpush1.msra.mxu0 0.0
      %982 = vmatprep.subr.mxu0 0.0
      %983 = vmatpush1.msra.mxu0 0.0
      %984 = vmatprep.subr.mxu0 0.0
      %985 = vmatpush1.msra.mxu0 0.0
      %986 = vmatprep.subr.mxu0 0.0
      %987 = vmatpush1.msra.mxu0 0.0
      %988 = vmatprep.subr.mxu0 0.0
      %989 = vmatpush1.msra.mxu0 0.0
      %990 = vmatprep.subr.mxu0 0.0
      %991 = vmatpush1.msra.mxu0 0.0
      %992 = vmatprep.subr.mxu0 0.0
      %993 = vmatpush1.msra.mxu0 0.0
      %994 = vmatprep.subr.mxu0 0.0
      %995 = vmatpush1.msra.mxu0 0.0
      %996 = vmatprep.subr.mxu0 0.0
      %997 = vmatpush1.msra.mxu0 0.0
      %998 = vmatprep.subr.mxu0 0.0
      %999 = vmatpush1.msra.mxu0 0.0
      %1000 = vmatprep.subr.mxu0 0.0
      %1001 = vmatpush1.msra.mxu0 0.0
      %1002 = vmatprep.subr.mxu0 0.0
      %1003 = vmatpush1.msra.mxu0 0.0
      %1004 = vmatprep.subr.mxu0 0.0
      %1005 = vmatpush1.msra.mxu0 0.0
      %1006 = vmatprep.subr.mxu0 0.0
      %1007 = vmatpush1.msra.mxu0 0.0
      %1008 = vmatprep.subr.mxu0 0.0
      %1009 = vmatpush1.msra.mxu0 0.0
      %1010 = vmatprep.subr.mxu0 0.0
      %1011 = vmatpush1.msra.mxu0 0.0
      %1012 = vmatprep.subr.mxu0 0.0
      %1013 = vmatpush1.msra.mxu0 0.0
      %1014 = vmatprep.subr.mxu0 0.0
      %1015 = vmatpush1.msra.mxu0 0.0
      %1016 = vmatprep.subr.mxu0 0.0
      %1017 = vmatpush1.msra.mxu0 0.0
      %1018 = vmatprep.subr.mxu0 0.0
      %1019 = vmatpush1.msra.mxu0 0.0
      %1020 = vmatprep.subr.mxu0 0.0
      %1021 = vmatpush1.msra.mxu0 0.0
      %1022 = vmatprep.subr.mxu0 0.0
      %1023 = vmatpush1.msra.mxu0 0.0
      %1024 = vmatprep.subr.mxu0 0.0
      %1025 = vmatpush1.msra.mxu0 0.0
      %1026 = vmatprep.subr.mxu0 0.0
      %1027 = vmatpush1.msra.mxu0 0.0
      %1028 = vmatprep.subr.mxu0 0.0
      %1029 = vmatpush1.msra.mxu0 0.0
      %1030 = vmatprep.mubr.f32.mxu0 0.0
      %1031 = vmatmul.mubr.f32.gmra.mrb[0].mxu0 %v807
      %v1032 = vpop.f32.mrb[0].mxu0
      %v1033 = vadd.f32 %v798, %v1032
      %v1034 = vpop.f32.mrb[0].mxu0
      %v1035 = vadd.f32 %v798, %v1034
      %1036 = vmatprep.mubr.f32.mxu0 0.0
      %1037 = vmatmul.mubr.f32.gmra.mrb[0].mxu0 %v810
      %v1038 = vpop.f32.mrb[0].mxu0
      %v1039 = vadd.f32 %v803, %v1038
      %v1040 = vpop.f32.mrb[0].mxu0
      %v1041 = vadd.f32 %v803, %v1040
      %1042 = vdwg.mxu0
      %vm1043 = vcmp.ge.f32.partialorder %v879, 0.0
      %vm1044 = vcmp.ge.f32.partialorder %v881, 0.0
      %vm1045 = vcmp.ge.f32.partialorder %v956, 0.0
      %vm1046 = vcmp.ge.f32.partialorder %v958, 0.0
      %vm1047 = vcmp.ge.f32.partialorder %v1033, 0.0
      %vm1048 = vcmp.ge.f32.partialorder %v1035, 0.0
      %vm1049 = vcmp.ge.f32.partialorder %v885, 0.0
      %vm1050 = vcmp.ge.f32.partialorder %v887, 0.0
      %vm1051 = vcmp.ge.f32.partialorder %v962, 0.0
      %vm1052 = vcmp.ge.f32.partialorder %v964, 0.0
      %vm1053 = vcmp.ge.f32.partialorder %v1039, 0.0
      %vm1054 = vcmp.ge.f32.partialorder %v1041, 0.0
      %v1055 = vmul.f32 %v879, 0.01
      %v1056 = vmul.f32 %v881, 0.01
      %v1057 = vmul.f32 %v956, 0.01
      %v1058 = vmul.f32 %v958, 0.01
      %v1059 = vmul.f32 %v1033, 0.01
      %v1060 = vmul.f32 %v1035, 0.01
      %v1061 = vmul.f32 %v885, 0.01
      %v1062 = vmul.f32 %v887, 0.01
      %v1063 = vmul.f32 %v962, 0.01
      %v1064 = vmul.f32 %v964, 0.01
      %v1065 = vmul.f32 %v1039, 0.01
      %v1066 = vmul.f32 %v1041, 0.01
      %v1067 = vsel %vm1043, %v879, %v1055
      %v1068 = vsel %vm1044, %v881, %v1056
      %v1069 = vsel %vm1045, %v956, %v1057
      %v1070 = vsel %vm1046, %v958, %v1058
      %v1071 = vsel %vm1047, %v1033, %v1059
      %v1072 = vsel %vm1048, %v1035, %v1060
      %v1073 = vsel %vm1049, %v885, %v1061
      %v1074 = vsel %vm1050, %v887, %v1062
      %v1075 = vsel %vm1051, %v962, %v1063
      %v1076 = vsel %vm1052, %v964, %v1064
      %v1077 = vsel %vm1053, %v1039, %v1065
      %v1078 = vsel %vm1054, %v1041, %v1066
      %v1079 = vsel %vm741, 1, 0
      %v1080 = vsel %vm742, 1, 0
      %v1081 = vsel %vm743, 1, 0
      %v1082 = vsel %vm744, 1, 0
      %v1083 = vsel %vm745, 1, 0
      %v1084 = vsel %vm746, 1, 0
      %vm1085 = vcmp.eq.s32.totalorder %v1079, 1
      %vm1086 = vcmp.eq.s32.totalorder %v1080, 1
      %vm1087 = vcmp.eq.s32.totalorder %v1081, 1
      %vm1088 = vcmp.eq.s32.totalorder %v1082, 1
      %vm1089 = vcmp.eq.s32.totalorder %v1083, 1
      %vm1090 = vcmp.eq.s32.totalorder %v1084, 1
      %v1091 = vsel %vm1085, %v1067, 0.0
      %v1092 = vsel %vm1086, %v1068, 0.0
      %v1093 = vsel %vm1087, %v1069, 0.0
      %v1094 = vsel %vm1088, %v1070, 0.0
      %v1095 = vsel %vm1089, %v1071, 0.0
      %v1096 = vsel %vm1090, %v1072, 0.0
      %v1097 = vsel %vm1085, %v1073, 0.0
      %v1098 = vsel %vm1086, %v1074, 0.0
      %v1099 = vsel %vm1087, %v1075, 0.0
      %v1100 = vsel %vm1088, %v1076, 0.0
      %v1101 = vsel %vm1089, %v1077, 0.0
      %v1102 = vsel %vm1090, %v1078, 0.0
      %v1103 = vld [vmem:[%s3] sm:$0xff]
      %1104 = vrot.lane.b32.xlu0 %v1091, 1
      %v1105 = vpop.permute.xlu0 %1104
      %1106 = vrot.lane.b32.xlu0 %v1097, 1
      %v1107 = vpop.permute.xlu0 %1106
      %1108 = vrot.lane.b32.xlu0 %v1092, 1
      %v1109 = vpop.permute.xlu0 %1108
      %1110 = vrot.lane.b32.xlu0 %v1098, 1
      %v1111 = vpop.permute.xlu0 %1110
      %1112 = vrot.lane.b32.xlu0 %v1093, 1
      %v1113 = vpop.permute.xlu0 %1112
      %1114 = vrot.lane.b32.xlu0 %v1099, 1
      %v1115 = vpop.permute.xlu0 %1114
      %1116 = vrot.lane.b32.xlu0 %v1094, 1
      %v1117 = vpop.permute.xlu0 %1116
      %1118 = vrot.lane.b32.xlu0 %v1100, 1
      %v1119 = vpop.permute.xlu0 %1118
      %1120 = vrot.lane.b32.xlu0 %v1095, 1
      %v1121 = vpop.permute.xlu0 %1120
      %1122 = vrot.lane.b32.xlu0 %v1101, 1
      %v1123 = vpop.permute.xlu0 %1122
      %1124 = vrot.lane.b32.xlu0 %v1096, 1
      %v1125 = vpop.permute.xlu0 %1124
      %1126 = vrot.lane.b32.xlu0 %v1102, 1
      %v1127 = vpop.permute.xlu0 %1126
      %v1128 = vsel %vm767, %v1121, %v1125
      %v1129 = vsel %vm767, %v1123, %v1127
      %v1130 = vsel %vm767, %v1117, %v1121
      %v1131 = vsel %vm767, %v1119, %v1123
      %v1132 = vsel %vm767, %v1113, %v1117
      %v1133 = vsel %vm767, %v1115, %v1119
      %v1134 = vsel %vm767, %v1109, %v1113
      %v1135 = vsel %vm767, %v1111, %v1115
      %v1136 = vsel %vm767, %v1105, %v1109
      %v1137 = vsel %vm767, %v1107, %v1111
      %v1138 = vsel %vm767, %v1125, %v1105
      %v1139 = vsel %vm767, %v1127, %v1107
      %1140 = vrot.lane.b32.xlu0 %v1091, 127
      %v1141 = vpop.permute.xlu0 %1140
      %1142 = vrot.lane.b32.xlu0 %v1097, 127
      %v1143 = vpop.permute.xlu0 %1142
      %1144 = vrot.lane.b32.xlu0 %v1092, 127
      %v1145 = vpop.permute.xlu0 %1144
      %1146 = vrot.lane.b32.xlu0 %v1098, 127
      %v1147 = vpop.permute.xlu0 %1146
      %1148 = vrot.lane.b32.xlu0 %v1093, 127
      %v1149 = vpop.permute.xlu0 %1148
      %1150 = vrot.lane.b32.xlu0 %v1099, 127
      %v1151 = vpop.permute.xlu0 %1150
      %1152 = vrot.lane.b32.xlu0 %v1094, 127
      %v1153 = vpop.permute.xlu0 %1152
      %1154 = vrot.lane.b32.xlu0 %v1100, 127
      %v1155 = vpop.permute.xlu0 %1154
      %1156 = vrot.lane.b32.xlu0 %v1095, 127
      %v1157 = vpop.permute.xlu0 %1156
      %1158 = vrot.lane.b32.xlu0 %v1101, 127
      %v1159 = vpop.permute.xlu0 %1158
      %1160 = vrot.lane.b32.xlu0 %v1096, 127
      %v1161 = vpop.permute.xlu0 %1160
      %1162 = vrot.lane.b32.xlu0 %v1102, 127
      %v1163 = vpop.permute.xlu0 %1162
      %v1164 = vsel %vm786, %v1157, %v1161
      %v1165 = vsel %vm786, %v1159, %v1163
      %v1166 = vsel %vm786, %v1153, %v1157
      %v1167 = vsel %vm786, %v1155, %v1159
      %v1168 = vsel %vm786, %v1149, %v1153
      %v1169 = vsel %vm786, %v1151, %v1155
      %v1170 = vsel %vm786, %v1145, %v1149
      %v1171 = vsel %vm786, %v1147, %v1151
      %v1172 = vsel %vm786, %v1141, %v1145
      %v1173 = vsel %vm786, %v1143, %v1147
      %v1174 = vsel %vm786, %v1161, %v1141
      %v1175 = vsel %vm786, %v1163, %v1143
      %v1176 = vld [vmem:[%s4] sm:$0xff]
      %1178 = vset.pattern.permute.xlu0 0
      %1179 = vperm.xlu0 %1178, %v1176
      %v1180 = vpop.permute.xlu0 %1179
      %vm1182 = vcmask 392192
      %v1184 = vsel %vm1182, %v1103, 0
      %1186 = vmatprep.subr.mxu0 %v1136
      %1187 = vmatpush1.msra.mxu0 %v1138
      %1188 = vmatprep.subr.mxu0 %v1137
      %1189 = vmatpush1.msra.mxu0 %v1139
      %1190 = vmatprep.subr.mxu0 %v1092
      %1191 = vmatpush1.msra.mxu0 %v1091
      %1192 = vmatprep.subr.mxu0 %v1098
      %1193 = vmatpush1.msra.mxu0 %v1097
      %1194 = vmatprep.subr.mxu0 %v1170
      %1195 = vmatpush1.msra.mxu0 %v1172
      %1196 = vmatprep.subr.mxu0 %v1171
      %1197 = vmatpush1.msra.mxu0 %v1173
      %1198 = vmatprep.subr.mxu0 0.0
      %1199 = vmatpush1.msra.mxu0 0.0
      %1200 = vmatprep.subr.mxu0 0.0
      %1201 = vmatpush1.msra.mxu0 0.0
      %1202 = vmatprep.subr.mxu0 0.0
      %1203 = vmatpush1.msra.mxu0 0.0
      %1204 = vmatprep.subr.mxu0 0.0
      %1205 = vmatpush1.msra.mxu0 0.0
      %1206 = vmatprep.subr.mxu0 0.0
      %1207 = vmatpush1.msra.mxu0 0.0
      %1208 = vmatprep.subr.mxu0 0.0
      %1209 = vmatpush1.msra.mxu0 0.0
      %1210 = vmatprep.subr.mxu0 0.0
      %1211 = vmatpush1.msra.mxu0 0.0
      %1212 = vmatprep.subr.mxu0 0.0
      %1213 = vmatpush1.msra.mxu0 0.0
      %1214 = vmatprep.subr.mxu0 0.0
      %1215 = vmatpush1.msra.mxu0 0.0
      %1216 = vmatprep.subr.mxu0 0.0
      %1217 = vmatpush1.msra.mxu0 0.0
      %1218 = vmatprep.subr.mxu0 0.0
      %1219 = vmatpush1.msra.mxu0 0.0
      %1220 = vmatprep.subr.mxu0 0.0
      %1221 = vmatpush1.msra.mxu0 0.0
      %1222 = vmatprep.subr.mxu0 0.0
      %1223 = vmatpush1.msra.mxu0 0.0
      %1224 = vmatprep.subr.mxu0 0.0
      %1225 = vmatpush1.msra.mxu0 0.0
      %1226 = vmatprep.subr.mxu0 0.0
      %1227 = vmatpush1.msra.mxu0 0.0
      %1228 = vmatprep.subr.mxu0 0.0
      %1229 = vmatpush1.msra.mxu0 0.0
      %1230 = vmatprep.subr.mxu0 0.0
      %1231 = vmatpush1.msra.mxu0 0.0
      %1232 = vmatprep.subr.mxu0 0.0
      %1233 = vmatpush1.msra.mxu0 0.0
      %1234 = vmatprep.subr.mxu0 0.0
      %1235 = vmatpush1.msra.mxu0 0.0
      %1236 = vmatprep.subr.mxu0 0.0
      %1237 = vmatpush1.msra.mxu0 0.0
      %1238 = vmatprep.subr.mxu0 0.0
      %1239 = vmatpush1.msra.mxu0 0.0
      %1240 = vmatprep.subr.mxu0 0.0
      %1241 = vmatpush1.msra.mxu0 0.0
      %1242 = vmatprep.subr.mxu0 0.0
      %1243 = vmatpush1.msra.mxu0 0.0
      %1244 = vmatprep.subr.mxu0 0.0
      %1245 = vmatpush1.msra.mxu0 0.0
      %1246 = vmatprep.subr.mxu0 0.0
      %1247 = vmatpush1.msra.mxu0 0.0
      %1248 = vmatprep.subr.mxu0 0.0
      %1249 = vmatpush1.msra.mxu0 0.0
      %1250 = vmatprep.mubr.f32.mxu0 0.0
      %1251 = vmatmul.mubr.f32.gmra.mrb[0].mxu0 %v1184
      %v1252 = vpop.f32.mrb[0].mxu0
      %v1253 = vadd.f32 %v1180, %v1252
      %v1254 = vpop.f32.mrb[0].mxu0
      %v1255 = vadd.f32 %v1180, %v1254
      %1256 = vdwg.mxu0
      %1257 = vmatprep.subr.mxu0 %v1132
      %1258 = vmatpush1.msra.mxu0 %v1134
      %1259 = vmatprep.subr.mxu0 %v1133
      %1260 = vmatpush1.msra.mxu0 %v1135
      %1261 = vmatprep.subr.mxu0 %v1094
      %1262 = vmatpush1.msra.mxu0 %v1093
      %1263 = vmatprep.subr.mxu0 %v1100
      %1264 = vmatpush1.msra.mxu0 %v1099
      %1265 = vmatprep.subr.mxu0 %v1166
      %1266 = vmatpush1.msra.mxu0 %v1168
      %1267 = vmatprep.subr.mxu0 %v1167
      %1268 = vmatpush1.msra.mxu0 %v1169
      %1269 = vmatprep.subr.mxu0 0.0
      %1270 = vmatpush1.msra.mxu0 0.0
      %1271 = vmatprep.subr.mxu0 0.0
      %1272 = vmatpush1.msra.mxu0 0.0
      %1273 = vmatprep.subr.mxu0 0.0
      %1274 = vmatpush1.msra.mxu0 0.0
      %1275 = vmatprep.subr.mxu0 0.0
      %1276 = vmatpush1.msra.mxu0 0.0
      %1277 = vmatprep.subr.mxu0 0.0
      %1278 = vmatpush1.msra.mxu0 0.0
      %1279 = vmatprep.subr.mxu0 0.0
      %1280 = vmatpush1.msra.mxu0 0.0
      %1281 = vmatprep.subr.mxu0 0.0
      %1282 = vmatpush1.msra.mxu0 0.0
      %1283 = vmatprep.subr.mxu0 0.0
      %1284 = vmatpush1.msra.mxu0 0.0
      %1285 = vmatprep.subr.mxu0 0.0
      %1286 = vmatpush1.msra.mxu0 0.0
      %1287 = vmatprep.subr.mxu0 0.0
      %1288 = vmatpush1.msra.mxu0 0.0
      %1289 = vmatprep.subr.mxu0 0.0
      %1290 = vmatpush1.msra.mxu0 0.0
      %1291 = vmatprep.subr.mxu0 0.0
      %1292 = vmatpush1.msra.mxu0 0.0
      %1293 = vmatprep.subr.mxu0 0.0
      %1294 = vmatpush1.msra.mxu0 0.0
      %1295 = vmatprep.subr.mxu0 0.0
      %1296 = vmatpush1.msra.mxu0 0.0
      %1297 = vmatprep.subr.mxu0 0.0
      %1298 = vmatpush1.msra.mxu0 0.0
      %1299 = vmatprep.subr.mxu0 0.0
      %1300 = vmatpush1.msra.mxu0 0.0
      %1301 = vmatprep.subr.mxu0 0.0
      %1302 = vmatpush1.msra.mxu0 0.0
      %1303 = vmatprep.subr.mxu0 0.0
      %1304 = vmatpush1.msra.mxu0 0.0
      %1305 = vmatprep.subr.mxu0 0.0
      %1306 = vmatpush1.msra.mxu0 0.0
      %1307 = vmatprep.subr.mxu0 0.0
      %1308 = vmatpush1.msra.mxu0 0.0
      %1309 = vmatprep.subr.mxu0 0.0
      %1310 = vmatpush1.msra.mxu0 0.0
      %1311 = vmatprep.subr.mxu0 0.0
      %1312 = vmatpush1.msra.mxu0 0.0
      %1313 = vmatprep.subr.mxu0 0.0
      %1314 = vmatpush1.msra.mxu0 0.0
      %1315 = vmatprep.subr.mxu0 0.0
      %1316 = vmatpush1.msra.mxu0 0.0
      %1317 = vmatprep.subr.mxu0 0.0
      %1318 = vmatpush1.msra.mxu0 0.0
      %1319 = vmatprep.subr.mxu0 0.0
      %1320 = vmatpush1.msra.mxu0 0.0
      %1321 = vmatprep.mubr.f32.mxu0 0.0
      %1322 = vmatmul.mubr.f32.gmra.mrb[0].mxu0 %v1184
      %v1323 = vpop.f32.mrb[0].mxu0
      %v1324 = vadd.f32 %v1180, %v1323
      %v1325 = vpop.f32.mrb[0].mxu0
      %v1326 = vadd.f32 %v1180, %v1325
      %1327 = vdwg.mxu0
      %1328 = vmatprep.subr.mxu0 %v1128
      %1329 = vmatpush1.msra.mxu0 %v1130
      %1330 = vmatprep.subr.mxu0 %v1129
      %1331 = vmatpush1.msra.mxu0 %v1131
      %1332 = vmatprep.subr.mxu0 %v1096
      %1333 = vmatpush1.msra.mxu0 %v1095
      %1334 = vmatprep.subr.mxu0 %v1102
      %1335 = vmatpush1.msra.mxu0 %v1101
      %1336 = vmatprep.subr.mxu0 %v1174
      %1337 = vmatpush1.msra.mxu0 %v1164
      %1338 = vmatprep.subr.mxu0 %v1175
      %1339 = vmatpush1.msra.mxu0 %v1165
      %1340 = vmatprep.subr.mxu0 0.0
      %1341 = vmatpush1.msra.mxu0 0.0
      %1342 = vmatprep.subr.mxu0 0.0
      %1343 = vmatpush1.msra.mxu0 0.0
      %1344 = vmatprep.subr.mxu0 0.0
      %1345 = vmatpush1.msra.mxu0 0.0
      %1346 = vmatprep.subr.mxu0 0.0
      %1347 = vmatpush1.msra.mxu0 0.0
      %1348 = vmatprep.subr.mxu0 0.0
      %1349 = vmatpush1.msra.mxu0 0.0
      %1350 = vmatprep.subr.mxu0 0.0
      %1351 = vmatpush1.msra.mxu0 0.0
      %1352 = vmatprep.subr.mxu0 0.0
      %1353 = vmatpush1.msra.mxu0 0.0
      %1354 = vmatprep.subr.mxu0 0.0
      %1355 = vmatpush1.msra.mxu0 0.0
      %1356 = vmatprep.subr.mxu0 0.0
      %1357 = vmatpush1.msra.mxu0 0.0
      %1358 = vmatprep.subr.mxu0 0.0
      %1359 = vmatpush1.msra.mxu0 0.0
      %1360 = vmatprep.subr.mxu0 0.0
      %1361 = vmatpush1.msra.mxu0 0.0
      %1362 = vmatprep.subr.mxu0 0.0
      %1363 = vmatpush1.msra.mxu0 0.0
      %1364 = vmatprep.subr.mxu0 0.0
      %1365 = vmatpush1.msra.mxu0 0.0
      %1366 = vmatprep.subr.mxu0 0.0
      %1367 = vmatpush1.msra.mxu0 0.0
      %1368 = vmatprep.subr.mxu0 0.0
      %1369 = vmatpush1.msra.mxu0 0.0
      %1370 = vmatprep.subr.mxu0 0.0
      %1371 = vmatpush1.msra.mxu0 0.0
      %1372 = vmatprep.subr.mxu0 0.0
      %1373 = vmatpush1.msra.mxu0 0.0
      %1374 = vmatprep.subr.mxu0 0.0
      %1375 = vmatpush1.msra.mxu0 0.0
      %1376 = vmatprep.subr.mxu0 0.0
      %1377 = vmatpush1.msra.mxu0 0.0
      %1378 = vmatprep.subr.mxu0 0.0
      %1379 = vmatpush1.msra.mxu0 0.0
      %1380 = vmatprep.subr.mxu0 0.0
      %1381 = vmatpush1.msra.mxu0 0.0
      %1382 = vmatprep.subr.mxu0 0.0
      %1383 = vmatpush1.msra.mxu0 0.0
      %1384 = vmatprep.subr.mxu0 0.0
      %1385 = vmatpush1.msra.mxu0 0.0
      %1386 = vmatprep.subr.mxu0 0.0
      %1387 = vmatpush1.msra.mxu0 0.0
      %1388 = vmatprep.subr.mxu0 0.0
      %1389 = vmatpush1.msra.mxu0 0.0
      %1390 = vmatprep.subr.mxu0 0.0
      %1391 = vmatpush1.msra.mxu0 0.0
      %1392 = vmatprep.mubr.f32.mxu0 0.0
      %1393 = vmatmul.mubr.f32.gmra.mrb[0].mxu0 %v1184
      %v1394 = vpop.f32.mrb[0].mxu0
      %v1395 = vadd.f32 %v1180, %v1394
      %v1396 = vpop.f32.mrb[0].mxu0
      %v1397 = vadd.f32 %v1180, %v1396
      %1398 = vdwg.mxu0
      %vm1399 = vcmp.ge.f32.partialorder %v1253, 0.0
      %vm1400 = vcmp.ge.f32.partialorder %v1255, 0.0
      %vm1401 = vcmp.ge.f32.partialorder %v1324, 0.0
      %vm1402 = vcmp.ge.f32.partialorder %v1326, 0.0
      %vm1403 = vcmp.ge.f32.partialorder %v1395, 0.0
      %vm1404 = vcmp.ge.f32.partialorder %v1397, 0.0
      %v1405 = vmul.f32 %v1253, 0.01
      %v1406 = vmul.f32 %v1255, 0.01
      %v1407 = vmul.f32 %v1324, 0.01
      %v1408 = vmul.f32 %v1326, 0.01
      %v1409 = vmul.f32 %v1395, 0.01
      %v1410 = vmul.f32 %v1397, 0.01
      %v1411 = vsel %vm1399, %v1253, %v1405
      %v1412 = vsel %vm1400, %v1255, %v1406
      %v1413 = vsel %vm1401, %v1324, %v1407
      %v1414 = vsel %vm1402, %v1326, %v1408
      %v1415 = vsel %vm1403, %v1395, %v1409
      %v1416 = vsel %vm1404, %v1397, %v1410
      %v1417 = vsel %vm1085, %v1411, 0.0
      %v1418 = vsel %vm1086, %v1412, 0.0
      %v1419 = vsel %vm1087, %v1413, 0.0
      %v1420 = vsel %vm1088, %v1414, 0.0
      %v1421 = vsel %vm1089, %v1415, 0.0
      %v1422 = vsel %vm1090, %v1416, 0.0
      %v1423 = vld [vmem:[%s5] sm:$0xff]
      %1424 = vrot.lane.b32.xlu0 %v1417, 1
      %v1425 = vpop.permute.xlu0 %1424
      %1426 = vrot.lane.b32.xlu0 %v1418, 1
      %v1427 = vpop.permute.xlu0 %1426
      %1428 = vrot.lane.b32.xlu0 %v1419, 1
      %v1429 = vpop.permute.xlu0 %1428
      %1430 = vrot.lane.b32.xlu0 %v1420, 1
      %v1431 = vpop.permute.xlu0 %1430
      %1432 = vrot.lane.b32.xlu0 %v1421, 1
      %v1433 = vpop.permute.xlu0 %1432
      %1434 = vrot.lane.b32.xlu0 %v1422, 1
      %v1435 = vpop.permute.xlu0 %1434
      %v1436 = vsel %vm767, %v1433, %v1435
      %v1437 = vsel %vm767, %v1431, %v1433
      %v1438 = vsel %vm767, %v1429, %v1431
      %v1439 = vsel %vm767, %v1427, %v1429
      %v1440 = vsel %vm767, %v1425, %v1427
      %v1441 = vsel %vm767, %v1435, %v1425
      %1442 = vrot.lane.b32.xlu0 %v1417, 127
      %v1443 = vpop.permute.xlu0 %1442
      %1444 = vrot.lane.b32.xlu0 %v1418, 127
      %v1445 = vpop.permute.xlu0 %1444
      %1446 = vrot.lane.b32.xlu0 %v1419, 127
      %v1447 = vpop.permute.xlu0 %1446
      %1448 = vrot.lane.b32.xlu0 %v1420, 127
      %v1449 = vpop.permute.xlu0 %1448
      %1450 = vrot.lane.b32.xlu0 %v1421, 127
      %v1451 = vpop.permute.xlu0 %1450
      %1452 = vrot.lane.b32.xlu0 %v1422, 127
      %v1453 = vpop.permute.xlu0 %1452
      %v1454 = vsel %vm786, %v1451, %v1453
      %v1455 = vsel %vm786, %v1449, %v1451
      %v1456 = vsel %vm786, %v1447, %v1449
      %v1457 = vsel %vm786, %v1445, %v1447
      %v1458 = vsel %vm786, %v1443, %v1445
      %v1459 = vsel %vm786, %v1453, %v1443
      %v1460 = vld [vmem:[%s6] sm:$0xff]
      %1462 = vset.pattern.permute.xlu0 0
      %1463 = vperm.xlu0 %1462, %v1460
      %v1464 = vpop.permute.xlu0 %1463
      %v1467 = vsel %vm805, %v1423, 0
      %1469 = vmatprep.subr.mxu0 %v1440
      %1470 = vmatpush1.msra.mxu0 %v1441
      %1471 = vmatprep.subr.mxu0 %v1418
      %1472 = vmatpush1.msra.mxu0 %v1417
      %1473 = vmatprep.subr.mxu0 %v1457
      %1474 = vmatpush1.msra.mxu0 %v1458
      %1475 = vmatprep.subr.mxu0 0.0
      %1476 = vmatpush1.msra.mxu0 0.0
      %1477 = vmatprep.subr.mxu0 0.0
      %1478 = vmatpush1.msra.mxu0 0.0
      %1479 = vmatprep.subr.mxu0 0.0
      %1480 = vmatpush1.msra.mxu0 0.0
      %1481 = vmatprep.subr.mxu0 0.0
      %1482 = vmatpush1.msra.mxu0 0.0
      %1483 = vmatprep.subr.mxu0 0.0
      %1484 = vmatpush1.msra.mxu0 0.0
      %1485 = vmatprep.subr.mxu0 0.0
      %1486 = vmatpush1.msra.mxu0 0.0
      %1487 = vmatprep.subr.mxu0 0.0
      %1488 = vmatpush1.msra.mxu0 0.0
      %1489 = vmatprep.subr.mxu0 0.0
      %1490 = vmatpush1.msra.mxu0 0.0
      %1491 = vmatprep.subr.mxu0 0.0
      %1492 = vmatpush1.msra.mxu0 0.0
      %1493 = vmatprep.subr.mxu0 0.0
      %1494 = vmatpush1.msra.mxu0 0.0
      %1495 = vmatprep.subr.mxu0 0.0
      %1496 = vmatpush1.msra.mxu0 0.0
      %1497 = vmatprep.subr.mxu0 0.0
      %1498 = vmatpush1.msra.mxu0 0.0
      %1499 = vmatprep.subr.mxu0 0.0
      %1500 = vmatpush1.msra.mxu0 0.0
      %1501 = vmatprep.subr.mxu0 0.0
      %1502 = vmatpush1.msra.mxu0 0.0
      %1503 = vmatprep.subr.mxu0 0.0
      %1504 = vmatpush1.msra.mxu0 0.0
      %1505 = vmatprep.subr.mxu0 0.0
      %1506 = vmatpush1.msra.mxu0 0.0
      %1507 = vmatprep.subr.mxu0 0.0
      %1508 = vmatpush1.msra.mxu0 0.0
      %1509 = vmatprep.subr.mxu0 0.0
      %1510 = vmatpush1.msra.mxu0 0.0
      %1511 = vmatprep.subr.mxu0 0.0
      %1512 = vmatpush1.msra.mxu0 0.0
      %1513 = vmatprep.subr.mxu0 0.0
      %1514 = vmatpush1.msra.mxu0 0.0
      %1515 = vmatprep.subr.mxu0 0.0
      %1516 = vmatpush1.msra.mxu0 0.0
      %1517 = vmatprep.subr.mxu0 0.0
      %1518 = vmatpush1.msra.mxu0 0.0
      %1519 = vmatprep.subr.mxu0 0.0
      %1520 = vmatpush1.msra.mxu0 0.0
      %1521 = vmatprep.subr.mxu0 0.0
      %1522 = vmatpush1.msra.mxu0 0.0
      %1523 = vmatprep.subr.mxu0 0.0
      %1524 = vmatpush1.msra.mxu0 0.0
      %1525 = vmatprep.subr.mxu0 0.0
      %1526 = vmatpush1.msra.mxu0 0.0
      %1527 = vmatprep.subr.mxu0 0.0
      %1528 = vmatpush1.msra.mxu0 0.0
      %1529 = vmatprep.subr.mxu0 0.0
      %1530 = vmatpush1.msra.mxu0 0.0
      %1531 = vmatprep.subr.mxu0 0.0
      %1532 = vmatpush1.msra.mxu0 0.0
      %1533 = vmatprep.mubr.f32.mxu0 0.0
      %1534 = vmatmul.mubr.f32.gmra.mrb[0].mxu0 %v1467
      %v1535 = vpop.f32.mrb[0].mxu0
      %v1536 = vadd.f32 %v1464, %v1535
      %v1537 = vpop.f32.mrb[0].mxu0
      %v1538 = vadd.f32 %v1464, %v1537
      %1539 = vdwg.mxu0
      %1540 = vmatprep.subr.mxu0 %v1438
      %1541 = vmatpush1.msra.mxu0 %v1439
      %1542 = vmatprep.subr.mxu0 %v1420
      %1543 = vmatpush1.msra.mxu0 %v1419
      %1544 = vmatprep.subr.mxu0 %v1455
      %1545 = vmatpush1.msra.mxu0 %v1456
      %1546 = vmatprep.subr.mxu0 0.0
      %1547 = vmatpush1.msra.mxu0 0.0
      %1548 = vmatprep.subr.mxu0 0.0
      %1549 = vmatpush1.msra.mxu0 0.0
      %1550 = vmatprep.subr.mxu0 0.0
      %1551 = vmatpush1.msra.mxu0 0.0
      %1552 = vmatprep.subr.mxu0 0.0
      %1553 = vmatpush1.msra.mxu0 0.0
      %1554 = vmatprep.subr.mxu0 0.0
      %1555 = vmatpush1.msra.mxu0 0.0
      %1556 = vmatprep.subr.mxu0 0.0
      %1557 = vmatpush1.msra.mxu0 0.0
      %1558 = vmatprep.subr.mxu0 0.0
      %1559 = vmatpush1.msra.mxu0 0.0
      %1560 = vmatprep.subr.mxu0 0.0
      %1561 = vmatpush1.msra.mxu0 0.0
      %1562 = vmatprep.subr.mxu0 0.0
      %1563 = vmatpush1.msra.mxu0 0.0
      %1564 = vmatprep.subr.mxu0 0.0
      %1565 = vmatpush1.msra.mxu0 0.0
      %1566 = vmatprep.subr.mxu0 0.0
      %1567 = vmatpush1.msra.mxu0 0.0
      %1568 = vmatprep.subr.mxu0 0.0
      %1569 = vmatpush1.msra.mxu0 0.0
      %1570 = vmatprep.subr.mxu0 0.0
      %1571 = vmatpush1.msra.mxu0 0.0
      %1572 = vmatprep.subr.mxu0 0.0
      %1573 = vmatpush1.msra.mxu0 0.0
      %1574 = vmatprep.subr.mxu0 0.0
      %1575 = vmatpush1.msra.mxu0 0.0
      %1576 = vmatprep.subr.mxu0 0.0
      %1577 = vmatpush1.msra.mxu0 0.0
      %1578 = vmatprep.subr.mxu0 0.0
      %1579 = vmatpush1.msra.mxu0 0.0
      %1580 = vmatprep.subr.mxu0 0.0
      %1581 = vmatpush1.msra.mxu0 0.0
      %1582 = vmatprep.subr.mxu0 0.0
      %1583 = vmatpush1.msra.mxu0 0.0
      %1584 = vmatprep.subr.mxu0 0.0
      %1585 = vmatpush1.msra.mxu0 0.0
      %1586 = vmatprep.subr.mxu0 0.0
      %1587 = vmatpush1.msra.mxu0 0.0
      %1588 = vmatprep.subr.mxu0 0.0
      %1589 = vmatpush1.msra.mxu0 0.0
      %1590 = vmatprep.subr.mxu0 0.0
      %1591 = vmatpush1.msra.mxu0 0.0
      %1592 = vmatprep.subr.mxu0 0.0
      %1593 = vmatpush1.msra.mxu0 0.0
      %1594 = vmatprep.subr.mxu0 0.0
      %1595 = vmatpush1.msra.mxu0 0.0
      %1596 = vmatprep.subr.mxu0 0.0
      %1597 = vmatpush1.msra.mxu0 0.0
      %1598 = vmatprep.subr.mxu0 0.0
      %1599 = vmatpush1.msra.mxu0 0.0
      %1600 = vmatprep.subr.mxu0 0.0
      %1601 = vmatpush1.msra.mxu0 0.0
      %1602 = vmatprep.subr.mxu0 0.0
      %1603 = vmatpush1.msra.mxu0 0.0
      %1604 = vmatprep.mubr.f32.mxu0 0.0
      %1605 = vmatmul.mubr.f32.gmra.mrb[0].mxu0 %v1467
      %v1606 = vpop.f32.mrb[0].mxu0
      %v1607 = vadd.f32 %v1464, %v1606
      %v1608 = vpop.f32.mrb[0].mxu0
      %v1609 = vadd.f32 %v1464, %v1608
      %1610 = vdwg.mxu0
      %1611 = vmatprep.subr.mxu0 %v1436
      %1612 = vmatpush1.msra.mxu0 %v1437
      %1613 = vmatprep.subr.mxu0 %v1422
      %1614 = vmatpush1.msra.mxu0 %v1421
      %1615 = vmatprep.subr.mxu0 %v1459
      %1616 = vmatpush1.msra.mxu0 %v1454
      %1617 = vmatprep.subr.mxu0 0.0
      %1618 = vmatpush1.msra.mxu0 0.0
      %1619 = vmatprep.subr.mxu0 0.0
      %1620 = vmatpush1.msra.mxu0 0.0
      %1621 = vmatprep.subr.mxu0 0.0
      %1622 = vmatpush1.msra.mxu0 0.0
      %1623 = vmatprep.subr.mxu0 0.0
      %1624 = vmatpush1.msra.mxu0 0.0
      %1625 = vmatprep.subr.mxu0 0.0
      %1626 = vmatpush1.msra.mxu0 0.0
      %1627 = vmatprep.subr.mxu0 0.0
      %1628 = vmatpush1.msra.mxu0 0.0
      %1629 = vmatprep.subr.mxu0 0.0
      %1630 = vmatpush1.msra.mxu0 0.0
      %1631 = vmatprep.subr.mxu0 0.0
      %1632 = vmatpush1.msra.mxu0 0.0
      %1633 = vmatprep.subr.mxu0 0.0
      %1634 = vmatpush1.msra.mxu0 0.0
      %1635 = vmatprep.subr.mxu0 0.0
      %1636 = vmatpush1.msra.mxu0 0.0
      %1637 = vmatprep.subr.mxu0 0.0
      %1638 = vmatpush1.msra.mxu0 0.0
      %1639 = vmatprep.subr.mxu0 0.0
      %1640 = vmatpush1.msra.mxu0 0.0
      %1641 = vmatprep.subr.mxu0 0.0
      %1642 = vmatpush1.msra.mxu0 0.0
      %1643 = vmatprep.subr.mxu0 0.0
      %1644 = vmatpush1.msra.mxu0 0.0
      %1645 = vmatprep.subr.mxu0 0.0
      %1646 = vmatpush1.msra.mxu0 0.0
      %1647 = vmatprep.subr.mxu0 0.0
      %1648 = vmatpush1.msra.mxu0 0.0
      %1649 = vmatprep.subr.mxu0 0.0
      %1650 = vmatpush1.msra.mxu0 0.0
      %1651 = vmatprep.subr.mxu0 0.0
      %1652 = vmatpush1.msra.mxu0 0.0
      %1653 = vmatprep.subr.mxu0 0.0
      %1654 = vmatpush1.msra.mxu0 0.0
      %1655 = vmatprep.subr.mxu0 0.0
      %1656 = vmatpush1.msra.mxu0 0.0
      %1657 = vmatprep.subr.mxu0 0.0
      %1658 = vmatpush1.msra.mxu0 0.0
      %1659 = vmatprep.subr.mxu0 0.0
      %1660 = vmatpush1.msra.mxu0 0.0
      %1661 = vmatprep.subr.mxu0 0.0
      %1662 = vmatpush1.msra.mxu0 0.0
      %1663 = vmatprep.subr.mxu0 0.0
      %1664 = vmatpush1.msra.mxu0 0.0
      %1665 = vmatprep.subr.mxu0 0.0
      %1666 = vmatpush1.msra.mxu0 0.0
      %1667 = vmatprep.subr.mxu0 0.0
      %1668 = vmatpush1.msra.mxu0 0.0
      %1669 = vmatprep.subr.mxu0 0.0
      %1670 = vmatpush1.msra.mxu0 0.0
      %1671 = vmatprep.subr.mxu0 0.0
      %1672 = vmatpush1.msra.mxu0 0.0
      %1673 = vmatprep.subr.mxu0 0.0
      %1674 = vmatpush1.msra.mxu0 0.0
      %1675 = vmatprep.mubr.f32.mxu0 0.0
      %1676 = vmatmul.mubr.f32.gmra.mrb[0].mxu0 %v1467
      %v1677 = vpop.f32.mrb[0].mxu0
      %v1678 = vadd.f32 %v1464, %v1677
      %v1679 = vpop.f32.mrb[0].mxu0
      %v1680 = vadd.f32 %v1464, %v1679
      %1681 = vdwg.mxu0
      %vm1682 = vcmp.ge.f32.partialorder %v1536, 0.0
      %vm1683 = vcmp.ge.f32.partialorder %v1538, 0.0
      %vm1684 = vcmp.ge.f32.partialorder %v1607, 0.0
      %vm1685 = vcmp.ge.f32.partialorder %v1609, 0.0
      %vm1686 = vcmp.ge.f32.partialorder %v1678, 0.0
      %vm1687 = vcmp.ge.f32.partialorder %v1680, 0.0
      %v1688 = vmul.f32 %v1536, 0.01
      %v1689 = vmul.f32 %v1538, 0.01
      %v1690 = vmul.f32 %v1607, 0.01
      %v1691 = vmul.f32 %v1609, 0.01
      %v1692 = vmul.f32 %v1678, 0.01
      %v1693 = vmul.f32 %v1680, 0.01
      %v1694 = vsel %vm1682, %v1536, %v1688
      %v1695 = vsel %vm1683, %v1538, %v1689
      %v1696 = vsel %vm1684, %v1607, %v1690
      %v1697 = vsel %vm1685, %v1609, %v1691
      %v1698 = vsel %vm1686, %v1678, %v1692
      %v1699 = vsel %vm1687, %v1680, %v1693
      %v1700 = vsel %vm1085, %v1694, 0.0
      %v1701 = vsel %vm1086, %v1695, 0.0
      %v1702 = vsel %vm1087, %v1696, 0.0
      %v1703 = vsel %vm1088, %v1697, 0.0
      %v1704 = vsel %vm1089, %v1698, 0.0
      %v1705 = vsel %vm1090, %v1699, 0.0
      %v1706 = vld [vmem:[%s7] sm:$0x1]
      %v1707 = vld [vmem:[#allocation2] sm:$0x1]
      %1709 = vset.pattern.permute.xlu0 0
      %1710 = vperm.xlu0 %1709, %v1707
      %v1711 = vpop.permute.xlu0 %1710
      %v1713 = vlaneseq
      %v1714 = vshrl.u32 %v1713, 7
      %v1715 = vsub.s32 0, %v1714
      %v1716 = vrot.slane %v1711, %v1715
      %vm1717 = vcmask 64512
      %v1719 = vsel %vm1717, %v1706, 0
      %1721 = vmatprep.subr.mxu0 %v1701
      %1722 = vmatpush1.msra.mxu0 %v1700
      %1723 = vmatprep.subr.mxu0 0.0
      %1724 = vmatpush1.msra.mxu0 0.0
      %1725 = vmatprep.subr.mxu0 0.0
      %1726 = vmatpush1.msra.mxu0 0.0
      %1727 = vmatprep.subr.mxu0 0.0
      %1728 = vmatpush1.msra.mxu0 0.0
      %1729 = vmatprep.subr.mxu0 0.0
      %1730 = vmatpush1.msra.mxu0 0.0
      %1731 = vmatprep.subr.mxu0 0.0
      %1732 = vmatpush1.msra.mxu0 0.0
      %1733 = vmatprep.subr.mxu0 0.0
      %1734 = vmatpush1.msra.mxu0 0.0
      %1735 = vmatprep.subr.mxu0 0.0
      %1736 = vmatpush1.msra.mxu0 0.0
      %1737 = vmatprep.subr.mxu0 0.0
      %1738 = vmatpush1.msra.mxu0 0.0
      %1739 = vmatprep.subr.mxu0 0.0
      %1740 = vmatpush1.msra.mxu0 0.0
      %1741 = vmatprep.subr.mxu0 0.0
      %1742 = vmatpush1.msra.mxu0 0.0
      %1743 = vmatprep.subr.mxu0 0.0
      %1744 = vmatpush1.msra.mxu0 0.0
      %1745 = vmatprep.subr.mxu0 0.0
      %1746 = vmatpush1.msra.mxu0 0.0
      %1747 = vmatprep.subr.mxu0 0.0
      %1748 = vmatpush1.msra.mxu0 0.0
      %1749 = vmatprep.subr.mxu0 0.0
      %1750 = vmatpush1.msra.mxu0 0.0
      %1751 = vmatprep.subr.mxu0 0.0
      %1752 = vmatpush1.msra.mxu0 0.0
      %1753 = vmatprep.subr.mxu0 0.0
      %1754 = vmatpush1.msra.mxu0 0.0
      %1755 = vmatprep.subr.mxu0 0.0
      %1756 = vmatpush1.msra.mxu0 0.0
      %1757 = vmatprep.subr.mxu0 0.0
      %1758 = vmatpush1.msra.mxu0 0.0
      %1759 = vmatprep.subr.mxu0 0.0
      %1760 = vmatpush1.msra.mxu0 0.0
      %1761 = vmatprep.subr.mxu0 0.0
      %1762 = vmatpush1.msra.mxu0 0.0
      %1763 = vmatprep.subr.mxu0 0.0
      %1764 = vmatpush1.msra.mxu0 0.0
      %1765 = vmatprep.subr.mxu0 0.0
      %1766 = vmatpush1.msra.mxu0 0.0
      %1767 = vmatprep.subr.mxu0 0.0
      %1768 = vmatpush1.msra.mxu0 0.0
      %1769 = vmatprep.subr.mxu0 0.0
      %1770 = vmatpush1.msra.mxu0 0.0
      %1771 = vmatprep.subr.mxu0 0.0
      %1772 = vmatpush1.msra.mxu0 0.0
      %1773 = vmatprep.subr.mxu0 0.0
      %1774 = vmatpush1.msra.mxu0 0.0
      %1775 = vmatprep.subr.mxu0 0.0
      %1776 = vmatpush1.msra.mxu0 0.0
      %1777 = vmatprep.subr.mxu0 0.0
      %1778 = vmatpush1.msra.mxu0 0.0
      %1779 = vmatprep.subr.mxu0 0.0
      %1780 = vmatpush1.msra.mxu0 0.0
      %1781 = vmatprep.subr.mxu0 0.0
      %1782 = vmatpush1.msra.mxu0 0.0
      %1783 = vmatprep.subr.mxu0 0.0
      %1784 = vmatpush1.msra.mxu0 0.0
      %1785 = vmatprep.mubr.f32.mxu0 0.0
      %1786 = vmatmul.mubr.f32.gmra.mrb[0].mxu0 %v1719
      %v1787 = vpop.f32.mrb[0].mxu0
      %v1788 = vadd.f32 %v1716, %v1787
      %v1789 = vpop.f32.mrb[0].mxu0
      %v1790 = vadd.f32 %v1716, %v1789
      %1791 = vdwg.mxu0
      %1792 = vmatprep.subr.mxu0 %v1703
      %1793 = vmatpush1.msra.mxu0 %v1702
      %1794 = vmatprep.subr.mxu0 0.0
      %1795 = vmatpush1.msra.mxu0 0.0
      %1796 = vmatprep.subr.mxu0 0.0
      %1797 = vmatpush1.msra.mxu0 0.0
      %1798 = vmatprep.subr.mxu0 0.0
      %1799 = vmatpush1.msra.mxu0 0.0
      %1800 = vmatprep.subr.mxu0 0.0
      %1801 = vmatpush1.msra.mxu0 0.0
      %1802 = vmatprep.subr.mxu0 0.0
      %1803 = vmatpush1.msra.mxu0 0.0
      %1804 = vmatprep.subr.mxu0 0.0
      %1805 = vmatpush1.msra.mxu0 0.0
      %1806 = vmatprep.subr.mxu0 0.0
      %1807 = vmatpush1.msra.mxu0 0.0
      %1808 = vmatprep.subr.mxu0 0.0
      %1809 = vmatpush1.msra.mxu0 0.0
      %1810 = vmatprep.subr.mxu0 0.0
      %1811 = vmatpush1.msra.mxu0 0.0
      %1812 = vmatprep.subr.mxu0 0.0
      %1813 = vmatpush1.msra.mxu0 0.0
      %1814 = vmatprep.subr.mxu0 0.0
      %1815 = vmatpush1.msra.mxu0 0.0
      %1816 = vmatprep.subr.mxu0 0.0
      %1817 = vmatpush1.msra.mxu0 0.0
      %1818 = vmatprep.subr.mxu0 0.0
      %1819 = vmatpush1.msra.mxu0 0.0
      %1820 = vmatprep.subr.mxu0 0.0
      %1821 = vmatpush1.msra.mxu0 0.0
      %1822 = vmatprep.subr.mxu0 0.0
      %1823 = vmatpush1.msra.mxu0 0.0
      %1824 = vmatprep.subr.mxu0 0.0
      %1825 = vmatpush1.msra.mxu0 0.0
      %1826 = vmatprep.subr.mxu0 0.0
      %1827 = vmatpush1.msra.mxu0 0.0
      %1828 = vmatprep.subr.mxu0 0.0
      %1829 = vmatpush1.msra.mxu0 0.0
      %1830 = vmatprep.subr.mxu0 0.0
      %1831 = vmatpush1.msra.mxu0 0.0
      %1832 = vmatprep.subr.mxu0 0.0
      %1833 = vmatpush1.msra.mxu0 0.0
      %1834 = vmatprep.subr.mxu0 0.0
      %1835 = vmatpush1.msra.mxu0 0.0
      %1836 = vmatprep.subr.mxu0 0.0
      %1837 = vmatpush1.msra.mxu0 0.0
      %1838 = vmatprep.subr.mxu0 0.0
      %1839 = vmatpush1.msra.mxu0 0.0
      %1840 = vmatprep.subr.mxu0 0.0
      %1841 = vmatpush1.msra.mxu0 0.0
      %1842 = vmatprep.subr.mxu0 0.0
      %1843 = vmatpush1.msra.mxu0 0.0
      %1844 = vmatprep.subr.mxu0 0.0
      %1845 = vmatpush1.msra.mxu0 0.0
      %1846 = vmatprep.subr.mxu0 0.0
      %1847 = vmatpush1.msra.mxu0 0.0
      %1848 = vmatprep.subr.mxu0 0.0
      %1849 = vmatpush1.msra.mxu0 0.0
      %1850 = vmatprep.subr.mxu0 0.0
      %1851 = vmatpush1.msra.mxu0 0.0
      %1852 = vmatprep.subr.mxu0 0.0
      %1853 = vmatpush1.msra.mxu0 0.0
      %1854 = vmatprep.subr.mxu0 0.0
      %1855 = vmatpush1.msra.mxu0 0.0
      %1856 = vmatprep.mubr.f32.mxu0 0.0
      %1857 = vmatmul.mubr.f32.gmra.mrb[0].mxu0 %v1719
      %v1858 = vpop.f32.mrb[0].mxu0
      %v1859 = vadd.f32 %v1716, %v1858
      %v1860 = vpop.f32.mrb[0].mxu0
      %v1861 = vadd.f32 %v1716, %v1860
      %1862 = vdwg.mxu0
      %1863 = vmatprep.subr.mxu0 %v1705
      %1864 = vmatpush1.msra.mxu0 %v1704
      %1865 = vmatprep.subr.mxu0 0.0
      %1866 = vmatpush1.msra.mxu0 0.0
      %1867 = vmatprep.subr.mxu0 0.0
      %1868 = vmatpush1.msra.mxu0 0.0
      %1869 = vmatprep.subr.mxu0 0.0
      %1870 = vmatpush1.msra.mxu0 0.0
      %1871 = vmatprep.subr.mxu0 0.0
      %1872 = vmatpush1.msra.mxu0 0.0
      %1873 = vmatprep.subr.mxu0 0.0
      %1874 = vmatpush1.msra.mxu0 0.0
      %1875 = vmatprep.subr.mxu0 0.0
      %1876 = vmatpush1.msra.mxu0 0.0
      %1877 = vmatprep.subr.mxu0 0.0
      %1878 = vmatpush1.msra.mxu0 0.0
      %1879 = vmatprep.subr.mxu0 0.0
      %1880 = vmatpush1.msra.mxu0 0.0
      %1881 = vmatprep.subr.mxu0 0.0
      %1882 = vmatpush1.msra.mxu0 0.0
      %1883 = vmatprep.subr.mxu0 0.0
      %1884 = vmatpush1.msra.mxu0 0.0
      %1885 = vmatprep.subr.mxu0 0.0
      %1886 = vmatpush1.msra.mxu0 0.0
      %1887 = vmatprep.subr.mxu0 0.0
      %1888 = vmatpush1.msra.mxu0 0.0
      %1889 = vmatprep.subr.mxu0 0.0
      %1890 = vmatpush1.msra.mxu0 0.0
      %1891 = vmatprep.subr.mxu0 0.0
      %1892 = vmatpush1.msra.mxu0 0.0
      %1893 = vmatprep.subr.mxu0 0.0
      %1894 = vmatpush1.msra.mxu0 0.0
      %1895 = vmatprep.subr.mxu0 0.0
      %1896 = vmatpush1.msra.mxu0 0.0
      %1897 = vmatprep.subr.mxu0 0.0
      %1898 = vmatpush1.msra.mxu0 0.0
      %1899 = vmatprep.subr.mxu0 0.0
      %1900 = vmatpush1.msra.mxu0 0.0
      %1901 = vmatprep.subr.mxu0 0.0
      %1902 = vmatpush1.msra.mxu0 0.0
      %1903 = vmatprep.subr.mxu0 0.0
      %1904 = vmatpush1.msra.mxu0 0.0
      %1905 = vmatprep.subr.mxu0 0.0
      %1906 = vmatpush1.msra.mxu0 0.0
      %1907 = vmatprep.subr.mxu0 0.0
      %1908 = vmatpush1.msra.mxu0 0.0
      %1909 = vmatprep.subr.mxu0 0.0
      %1910 = vmatpush1.msra.mxu0 0.0
      %1911 = vmatprep.subr.mxu0 0.0
      %1912 = vmatpush1.msra.mxu0 0.0
      %1913 = vmatprep.subr.mxu0 0.0
      %1914 = vmatpush1.msra.mxu0 0.0
      %1915 = vmatprep.subr.mxu0 0.0
      %1916 = vmatpush1.msra.mxu0 0.0
      %1917 = vmatprep.subr.mxu0 0.0
      %1918 = vmatpush1.msra.mxu0 0.0
      %1919 = vmatprep.subr.mxu0 0.0
      %1920 = vmatpush1.msra.mxu0 0.0
      %1921 = vmatprep.subr.mxu0 0.0
      %1922 = vmatpush1.msra.mxu0 0.0
      %1923 = vmatprep.subr.mxu0 0.0
      %1924 = vmatpush1.msra.mxu0 0.0
      %1925 = vmatprep.subr.mxu0 0.0
      %1926 = vmatpush1.msra.mxu0 0.0
      %1927 = vmatprep.mubr.f32.mxu0 0.0
      %1928 = vmatmul.mubr.f32.gmra.mrb[0].mxu0 %v1719
      %v1929 = vpop.f32.mrb[0].mxu0
      %v1930 = vadd.f32 %v1716, %v1929
      %v1931 = vpop.f32.mrb[0].mxu0
      %v1932 = vadd.f32 %v1716, %v1931
      %1933 = vdwg.mxu0
      %vm1934 = vcmp.ge.f32.partialorder %v1788, 0.0
      %vm1935 = vcmp.ge.f32.partialorder %v1790, 0.0
      %vm1936 = vcmp.ge.f32.partialorder %v1859, 0.0
      %vm1937 = vcmp.ge.f32.partialorder %v1861, 0.0
      %vm1938 = vcmp.ge.f32.partialorder %v1930, 0.0
      %vm1939 = vcmp.ge.f32.partialorder %v1932, 0.0
      %v1940 = vmul.f32 %v1788, 0.01
      %v1941 = vmul.f32 %v1790, 0.01
      %v1942 = vmul.f32 %v1859, 0.01
      %v1943 = vmul.f32 %v1861, 0.01
      %v1944 = vmul.f32 %v1930, 0.01
      %v1945 = vmul.f32 %v1932, 0.01
      %v1946 = vsel %vm1934, %v1788, %v1940
      %v1947 = vsel %vm1935, %v1790, %v1941
      %v1948 = vsel %vm1936, %v1859, %v1942
      %v1949 = vsel %vm1937, %v1861, %v1943
      %v1950 = vsel %vm1938, %v1930, %v1944
      %v1951 = vsel %vm1939, %v1932, %v1945
      %v1952 = vsel %vm741, %v1946, 0.0
      %v1953 = vsel %vm742, %v1947, 0.0
      %v1954 = vsel %vm743, %v1948, 0.0
      %v1955 = vsel %vm744, %v1949, 0.0
      %v1956 = vsel %vm745, %v1950, 0.0
      %v1957 = vsel %vm746, %v1951, 0.0
      %v1958 = vld [vmem:[%s9] sm:$0xff]
      %v1959 = vld [vmem:[%s9 + $0x8] sm:$0xff]
      %v1960 = vld [vmem:[%s9 + $0x10] sm:$0xff]
      %v1961 = vld [vmem:[%s9 + $0x18] sm:$0xff]
      %v1962 = vld [vmem:[%s9 + $0x20] sm:$0xff]
      %v1963 = vld [vmem:[%s9 + $0x28] sm:$0xff]
      %v1964 = vld [vmem:[%s9 + $0x30] sm:$0xff]
      %v1965 = vld [vmem:[%s9 + $0x38] sm:$0xff]
      %v1966 = vld [vmem:[%s9 + $0x40] sm:$0xff]
      %v1967 = vld [vmem:[%s9 + $0x48] sm:$0xff]
      %v1968 = vld [vmem:[%s9 + $0x50] sm:$0xff]
      %v1969 = vld [vmem:[%s9 + $0x58] sm:$0xff]
      %v1970 = vld [vmem:[%s9 + $0x60] sm:$0xff]
      %v1971 = vld [vmem:[%s9 + $0x68] sm:$0xff]
      %v1972 = vld [vmem:[%s9 + $0x70] sm:$0xff]
      %v1973 = vld [vmem:[%s9 + $0x78] sm:$0xff]
      %v1974 = vld [vmem:[%s9 + $0x80] sm:$0xff]
      %v1975 = vld [vmem:[%s9 + $0x88] sm:$0xff]
      %v1976 = vld [vmem:[%s9 + $0x90] sm:$0xff]
      %v1977 = vld [vmem:[%s9 + $0x98] sm:$0xff]
      %v1978 = vld [vmem:[%s9 + $0xa0] sm:$0xff]
      %v1979 = vld [vmem:[%s9 + $0xa8] sm:$0xff]
      %v1980 = vld [vmem:[%s9 + $0xb0] sm:$0xff]
      %v1981 = vld [vmem:[%s9 + $0xb8] sm:$0xff]
      %v1982 = vld [vmem:[%s9 + $0xc0] sm:$0xff]
      %v1983 = vld [vmem:[%s9 + $0xc8] sm:$0xff]
      %v1984 = vld [vmem:[%s9 + $0xd0] sm:$0xff]
      %v1985 = vld [vmem:[%s9 + $0xd8] sm:$0xff]
      %v1986 = vld [vmem:[%s9 + $0xe0] sm:$0xff]
      %v1987 = vld [vmem:[%s9 + $0xe8] sm:$0xff]
      %v1988 = vld [vmem:[%s9 + $0xf0] sm:$0xff]
      %v1989 = vld [vmem:[%s9 + $0xf8] sm:$0xff]
      %v1990 = vld [vmem:[%s9 + $0x100] sm:$0xff]
      %v1991 = vld [vmem:[%s9 + $0x108] sm:$0xff]
      %v1992 = vld [vmem:[%s9 + $0x110] sm:$0xff]
      %v1993 = vld [vmem:[%s9 + $0x118] sm:$0xff]
      %v1994 = vld [vmem:[%s9 + $0x120] sm:$0xff]
      %v1995 = vld [vmem:[%s9 + $0x128] sm:$0xff]
      %v1996 = vld [vmem:[%s9 + $0x130] sm:$0xff]
      %v1997 = vld [vmem:[%s9 + $0x138] sm:$0xff]
      %v1998 = vld [vmem:[%s9 + $0x140] sm:$0xff]
      %v1999 = vld [vmem:[%s9 + $0x148] sm:$0xff]
      %v2000 = vld [vmem:[%s9 + $0x150] sm:$0xff]
      %v2001 = vld [vmem:[%s9 + $0x158] sm:$0xff]
      %v2002 = vld [vmem:[%s9 + $0x160] sm:$0xff]
      %v2003 = vld [vmem:[%s9 + $0x168] sm:$0xff]
      %v2004 = vld [vmem:[%s9 + $0x170] sm:$0xff]
      %v2005 = vld [vmem:[%s9 + $0x178] sm:$0xff]
      %v2006 = vld [vmem:[%s9 + $0x180] sm:$0xff]
      %v2007 = vld [vmem:[%s9 + $0x188] sm:$0xff]
      %v2008 = vld [vmem:[%s9 + $0x190] sm:$0xff]
      %v2009 = vld [vmem:[%s9 + $0x198] sm:$0xff]
      %v2010 = vld [vmem:[%s9 + $0x1a0] sm:$0xff]
      %v2011 = vld [vmem:[%s9 + $0x1a8] sm:$0xff]
      %v2012 = vld [vmem:[%s9 + $0x1b0] sm:$0xff]
      %v2013 = vld [vmem:[%s9 + $0x1b8] sm:$0xff]
      %v2014 = vld [vmem:[%s9 + $0x1c0] sm:$0xff]
      %v2015 = vld [vmem:[%s9 + $0x1c8] sm:$0xff]
      %v2016 = vld [vmem:[%s9 + $0x1d0] sm:$0xff]
      %v2017 = vld [vmem:[%s9 + $0x1d8] sm:$0xff]
      %v2018 = vld [vmem:[%s9 + $0x1e0] sm:$0xff]
      %v2019 = vld [vmem:[%s9 + $0x1e8] sm:$0xff]
      %v2020 = vld [vmem:[%s9 + $0x1f0] sm:$0xff]
      %v2021 = vld [vmem:[%s9 + $0x1f8] sm:$0xff]
      %v2022 = vld [vmem:[%s9 + $0x200] sm:$0xff]
      %v2023 = vld [vmem:[%s9 + $0x208] sm:$0xff]
      %v2024 = vld [vmem:[%s9 + $0x210] sm:$0xff]
      %v2025 = vld [vmem:[%s9 + $0x218] sm:$0xff]
      %v2026 = vld [vmem:[%s9 + $0x220] sm:$0xff]
      %v2027 = vld [vmem:[%s9 + $0x228] sm:$0xff]
      %v2028 = vld [vmem:[%s9 + $0x230] sm:$0xff]
      %v2029 = vld [vmem:[%s9 + $0x238] sm:$0xff]
      %v2030 = vld [vmem:[%s9 + $0x240] sm:$0xff]
      %v2031 = vld [vmem:[%s9 + $0x248] sm:$0xff]
      %v2032 = vld [vmem:[%s9 + $0x250] sm:$0xff]
      %v2033 = vld [vmem:[%s9 + $0x258] sm:$0xff]
      %v2034 = vld [vmem:[%s9 + $0x260] sm:$0xff]
      %v2035 = vld [vmem:[%s9 + $0x268] sm:$0xff]
      %v2036 = vld [vmem:[%s9 + $0x270] sm:$0xff]
      %v2037 = vld [vmem:[%s9 + $0x278] sm:$0xff]
      %v2038 = vld [vmem:[%s9 + $0x280] sm:$0xff]
      %v2039 = vld [vmem:[%s9 + $0x288] sm:$0xff]
      %v2040 = vld [vmem:[%s9 + $0x290] sm:$0xff]
      %v2041 = vld [vmem:[%s9 + $0x298] sm:$0xff]
      %v2042 = vld [vmem:[%s9 + $0x2a0] sm:$0xff]
      %v2043 = vld [vmem:[%s9 + $0x2a8] sm:$0xff]
      %v2044 = vld [vmem:[%s9 + $0x2b0] sm:$0xff]
      %v2045 = vld [vmem:[%s9 + $0x2b8] sm:$0xff]
      %v2046 = vld [vmem:[%s9 + $0x2c0] sm:$0xff]
      %v2047 = vld [vmem:[%s9 + $0x2c8] sm:$0xff]
      %v2048 = vld [vmem:[%s9 + $0x2d0] sm:$0xff]
      %v2049 = vld [vmem:[%s9 + $0x2d8] sm:$0xff]
      %v2050 = vld [vmem:[%s9 + $0x2e0] sm:$0xff]
      %v2051 = vld [vmem:[%s9 + $0x2e8] sm:$0xff]
      %v2052 = vld [vmem:[%s9 + $0x2f0] sm:$0xff]
      %v2053 = vld [vmem:[%s9 + $0x2f8] sm:$0xff]
      %v2054 = vld [vmem:[%s10] sm:$0x1]
      %2055 = vmatprep.subr.mxu0 0.0
      %2056 = vmatpush1.msra.mxu0 %v1958
      %2057 = vmatprep.subr.mxu0 0.0
      %2058 = vmatpush1.msra.mxu0 %v1959
      %2059 = vmatprep.subr.mxu0 0.0
      %2060 = vmatpush1.msra.mxu0 %v1960
      %2061 = vmatprep.subr.mxu0 0.0
      %2062 = vmatpush1.msra.mxu0 %v1961
      %2063 = vmatprep.subr.mxu0 0.0
      %2064 = vmatpush1.msra.mxu0 %v1962
      %2065 = vmatprep.subr.mxu0 0.0
      %2066 = vmatpush1.msra.mxu0 %v1963
      %2067 = vmatprep.subr.mxu0 0.0
      %2068 = vmatpush1.msra.mxu0 %v1964
      %2069 = vmatprep.subr.mxu0 0.0
      %2070 = vmatpush1.msra.mxu0 %v1965
      %2071 = vmatprep.subr.mxu0 0.0
      %2072 = vmatpush1.msra.mxu0 %v1966
      %2073 = vmatprep.subr.mxu0 0.0
      %2074 = vmatpush1.msra.mxu0 %v1967
      %2075 = vmatprep.subr.mxu0 0.0
      %2076 = vmatpush1.msra.mxu0 %v1968
      %2077 = vmatprep.subr.mxu0 0.0
      %2078 = vmatpush1.msra.mxu0 %v1969
      %2079 = vmatprep.subr.mxu0 0.0
      %2080 = vmatpush1.msra.mxu0 %v1970
      %2081 = vmatprep.subr.mxu0 0.0
      %2082 = vmatpush1.msra.mxu0 %v1971
      %2083 = vmatprep.subr.mxu0 0.0
      %2084 = vmatpush1.msra.mxu0 %v1972
      %2085 = vmatprep.subr.mxu0 0.0
      %2086 = vmatpush1.msra.mxu0 %v1973
      %2087 = vmatprep.subr.mxu0 0.0
      %2088 = vmatpush1.msra.mxu0 %v1974
      %2089 = vmatprep.subr.mxu0 0.0
      %2090 = vmatpush1.msra.mxu0 %v1975
      %2091 = vmatprep.subr.mxu0 0.0
      %2092 = vmatpush1.msra.mxu0 %v1976
      %2093 = vmatprep.subr.mxu0 0.0
      %2094 = vmatpush1.msra.mxu0 %v1977
      %2095 = vmatprep.subr.mxu0 0.0
      %2096 = vmatpush1.msra.mxu0 %v1978
      %2097 = vmatprep.subr.mxu0 0.0
      %2098 = vmatpush1.msra.mxu0 %v1979
      %2099 = vmatprep.subr.mxu0 0.0
      %2100 = vmatpush1.msra.mxu0 %v1980
      %2101 = vmatprep.subr.mxu0 0.0
      %2102 = vmatpush1.msra.mxu0 %v1981
      %2103 = vmatprep.subr.mxu0 0.0
      %2104 = vmatpush1.msra.mxu0 %v1982
      %2105 = vmatprep.subr.mxu0 0.0
      %2106 = vmatpush1.msra.mxu0 %v1983
      %2107 = vmatprep.subr.mxu0 0.0
      %2108 = vmatpush1.msra.mxu0 %v1984
      %2109 = vmatprep.subr.mxu0 0.0
      %2110 = vmatpush1.msra.mxu0 %v1985
      %2111 = vmatprep.subr.mxu0 0.0
      %2112 = vmatpush1.msra.mxu0 %v1986
      %2113 = vmatprep.subr.mxu0 0.0
      %2114 = vmatpush1.msra.mxu0 %v1987
      %2115 = vmatprep.subr.mxu0 0.0
      %2116 = vmatpush1.msra.mxu0 %v1988
      %2117 = vmatprep.subr.mxu0 0.0
      %2118 = vmatpush1.msra.mxu0 %v1989
      %2119 = vmatprep.mubr.f32.mxu0 %v1953
      %2120 = vmatmul.mubr.f32.gmra.mrb[0].mxu0 %v1952
      %v2121 = vpop.f32.mrb[0].mxu0
      %v2122 = vadd.f32 %v2054, %v2121
      %v2123 = vpop.f32.mrb[0].mxu0
      %2124 = vdwg.mxu0
      %2125 = vmatprep.subr.mxu0 0.0
      %2126 = vmatpush1.msra.mxu0 %v1990
      %2127 = vmatprep.subr.mxu0 0.0
      %2128 = vmatpush1.msra.mxu0 %v1991
      %2129 = vmatprep.subr.mxu0 0.0
      %2130 = vmatpush1.msra.mxu0 %v1992
      %2131 = vmatprep.subr.mxu0 0.0
      %2132 = vmatpush1.msra.mxu0 %v1993
      %2133 = vmatprep.subr.mxu0 0.0
      %2134 = vmatpush1.msra.mxu0 %v1994
      %2135 = vmatprep.subr.mxu0 0.0
      %2136 = vmatpush1.msra.mxu0 %v1995
      %2137 = vmatprep.subr.mxu0 0.0
      %2138 = vmatpush1.msra.mxu0 %v1996
      %2139 = vmatprep.subr.mxu0 0.0
      %2140 = vmatpush1.msra.mxu0 %v1997
      %2141 = vmatprep.subr.mxu0 0.0
      %2142 = vmatpush1.msra.mxu0 %v1998
      %2143 = vmatprep.subr.mxu0 0.0
      %2144 = vmatpush1.msra.mxu0 %v1999
      %2145 = vmatprep.subr.mxu0 0.0
      %2146 = vmatpush1.msra.mxu0 %v2000
      %2147 = vmatprep.subr.mxu0 0.0
      %2148 = vmatpush1.msra.mxu0 %v2001
      %2149 = vmatprep.subr.mxu0 0.0
      %2150 = vmatpush1.msra.mxu0 %v2002
      %2151 = vmatprep.subr.mxu0 0.0
      %2152 = vmatpush1.msra.mxu0 %v2003
      %2153 = vmatprep.subr.mxu0 0.0
      %2154 = vmatpush1.msra.mxu0 %v2004
      %2155 = vmatprep.subr.mxu0 0.0
      %2156 = vmatpush1.msra.mxu0 %v2005
      %2157 = vmatprep.subr.mxu0 0.0
      %2158 = vmatpush1.msra.mxu0 %v2006
      %2159 = vmatprep.subr.mxu0 0.0
      %2160 = vmatpush1.msra.mxu0 %v2007
      %2161 = vmatprep.subr.mxu0 0.0
      %2162 = vmatpush1.msra.mxu0 %v2008
      %2163 = vmatprep.subr.mxu0 0.0
      %2164 = vmatpush1.msra.mxu0 %v2009
      %2165 = vmatprep.subr.mxu0 0.0
      %2166 = vmatpush1.msra.mxu0 %v2010
      %2167 = vmatprep.subr.mxu0 0.0
      %2168 = vmatpush1.msra.mxu0 %v2011
      %2169 = vmatprep.subr.mxu0 0.0
      %2170 = vmatpush1.msra.mxu0 %v2012
      %2171 = vmatprep.subr.mxu0 0.0
      %2172 = vmatpush1.msra.mxu0 %v2013
      %2173 = vmatprep.subr.mxu0 0.0
      %2174 = vmatpush1.msra.mxu0 %v2014
      %2175 = vmatprep.subr.mxu0 0.0
      %2176 = vmatpush1.msra.mxu0 %v2015
      %2177 = vmatprep.subr.mxu0 0.0
      %2178 = vmatpush1.msra.mxu0 %v2016
      %2179 = vmatprep.subr.mxu0 0.0
      %2180 = vmatpush1.msra.mxu0 %v2017
      %2181 = vmatprep.subr.mxu0 0.0
      %2182 = vmatpush1.msra.mxu0 %v2018
      %2183 = vmatprep.subr.mxu0 0.0
      %2184 = vmatpush1.msra.mxu0 %v2019
      %2185 = vmatprep.subr.mxu0 0.0
      %2186 = vmatpush1.msra.mxu0 %v2020
      %2187 = vmatprep.subr.mxu0 0.0
      %2188 = vmatpush1.msra.mxu0 %v2021
      %2189 = vmatprep.mubr.f32.mxu0 %v1955
      %2190 = vmatmul.mubr.f32.gmra.mrb[0].mxu0 %v1954
      %v2191 = vpop.f32.mrb[0].mxu0
      %v2192 = vadd.f32 %v2122, %v2191
      %v2193 = vpop.f32.mrb[0].mxu0
      %2194 = vdwg.mxu0
      %2195 = vmatprep.subr.mxu0 0.0
      %2196 = vmatpush1.msra.mxu0 %v2022
      %2197 = vmatprep.subr.mxu0 0.0
      %2198 = vmatpush1.msra.mxu0 %v2023
      %2199 = vmatprep.subr.mxu0 0.0
      %2200 = vmatpush1.msra.mxu0 %v2024
      %2201 = vmatprep.subr.mxu0 0.0
      %2202 = vmatpush1.msra.mxu0 %v2025
      %2203 = vmatprep.subr.mxu0 0.0
      %2204 = vmatpush1.msra.mxu0 %v2026
      %2205 = vmatprep.subr.mxu0 0.0
      %2206 = vmatpush1.msra.mxu0 %v2027
      %2207 = vmatprep.subr.mxu0 0.0
      %2208 = vmatpush1.msra.mxu0 %v2028
      %2209 = vmatprep.subr.mxu0 0.0
      %2210 = vmatpush1.msra.mxu0 %v2029
      %2211 = vmatprep.subr.mxu0 0.0
      %2212 = vmatpush1.msra.mxu0 %v2030
      %2213 = vmatprep.subr.mxu0 0.0
      %2214 = vmatpush1.msra.mxu0 %v2031
      %2215 = vmatprep.subr.mxu0 0.0
      %2216 = vmatpush1.msra.mxu0 %v2032
      %2217 = vmatprep.subr.mxu0 0.0
      %2218 = vmatpush1.msra.mxu0 %v2033
      %2219 = vmatprep.subr.mxu0 0.0
      %2220 = vmatpush1.msra.mxu0 %v2034
      %2221 = vmatprep.subr.mxu0 0.0
      %2222 = vmatpush1.msra.mxu0 %v2035
      %2223 = vmatprep.subr.mxu0 0.0
      %2224 = vmatpush1.msra.mxu0 %v2036
      %2225 = vmatprep.subr.mxu0 0.0
      %2226 = vmatpush1.msra.mxu0 %v2037
      %2227 = vmatprep.subr.mxu0 0.0
      %2228 = vmatpush1.msra.mxu0 %v2038
      %2229 = vmatprep.subr.mxu0 0.0
      %2230 = vmatpush1.msra.mxu0 %v2039
      %2231 = vmatprep.subr.mxu0 0.0
      %2232 = vmatpush1.msra.mxu0 %v2040
      %2233 = vmatprep.subr.mxu0 0.0
      %2234 = vmatpush1.msra.mxu0 %v2041
      %2235 = vmatprep.subr.mxu0 0.0
      %2236 = vmatpush1.msra.mxu0 %v2042
      %2237 = vmatprep.subr.mxu0 0.0
      %2238 = vmatpush1.msra.mxu0 %v2043
      %2239 = vmatprep.subr.mxu0 0.0
      %2240 = vmatpush1.msra.mxu0 %v2044
      %2241 = vmatprep.subr.mxu0 0.0
      %2242 = vmatpush1.msra.mxu0 %v2045
      %2243 = vmatprep.subr.mxu0 0.0
      %2244 = vmatpush1.msra.mxu0 %v2046
      %2245 = vmatprep.subr.mxu0 0.0
      %2246 = vmatpush1.msra.mxu0 %v2047
      %2247 = vmatprep.subr.mxu0 0.0
      %2248 = vmatpush1.msra.mxu0 %v2048
      %2249 = vmatprep.subr.mxu0 0.0
      %2250 = vmatpush1.msra.mxu0 %v2049
      %2251 = vmatprep.subr.mxu0 0.0
      %2252 = vmatpush1.msra.mxu0 %v2050
      %2253 = vmatprep.subr.mxu0 0.0
      %2254 = vmatpush1.msra.mxu0 %v2051
      %2255 = vmatprep.subr.mxu0 0.0
      %2256 = vmatpush1.msra.mxu0 %v2052
      %2257 = vmatprep.subr.mxu0 0.0
      %2258 = vmatpush1.msra.mxu0 %v2053
      %2259 = vmatprep.mubr.f32.mxu0 %v1957
      %2260 = vmatmul.mubr.f32.gmra.mrb[0].mxu0 %v1956
      %v2261 = vpop.f32.mrb[0].mxu0
      %v2262 = vadd.f32 %v2192, %v2261
      %v2263 = vpop.f32.mrb[0].mxu0
      %2264 = vdwg.mxu0
      %v2265 = vld [vmem:[%s11] sm:$0xff]
      %v2266 = vld [vmem:[%s11 + $0x8] sm:$0xff]
      %v2267 = vld [vmem:[%s11 + $0x10] sm:$0xff]
      %v2268 = vld [vmem:[%s11 + $0x18] sm:$0xff]
      %v2269 = vld [vmem:[%s11 + $0x20] sm:$0xff]
      %v2270 = vld [vmem:[%s11 + $0x28] sm:$0xff]
      %v2271 = vld [vmem:[%s11 + $0x30] sm:$0x1]
      %v2272 = vld [vmem:[%s11 + $0x38] sm:$0x1]
      %v2273 = vld [vmem:[%s11 + $0x40] sm:$0x1]
      %v2274 = vld [vmem:[%s11 + $0x48] sm:$0x1]
      %v2275 = vld [vmem:[%s11 + $0x50] sm:$0x1]
      %v2276 = vld [vmem:[%s11 + $0x58] sm:$0x1]
      %v2277 = vld [vmem:[%s12] sm:$0x3f]
      %v2279 = vlaneseq
      %v2280 = vshrl.u32 %v2279, 7
      %v2281 = vsub.s32 0, %v2280
      %v2282 = vrot.slane %v2277, %v2281
      %v2283 = vlaneseq
      %v2284 = vshrl.u32 %v2283, 7
      %v2285 = vsub.s32 1, %v2284
      %v2286 = vrot.slane %v2277, %v2285
      %v2287 = vlaneseq
      %v2288 = vshrl.u32 %v2287, 7
      %v2289 = vsub.s32 2, %v2288
      %v2290 = vrot.slane %v2277, %v2289
      %v2291 = vlaneseq
      %v2292 = vshrl.u32 %v2291, 7
      %v2293 = vsub.s32 3, %v2292
      %v2294 = vrot.slane %v2277, %v2293
      %v2295 = vlaneseq
      %v2296 = vshrl.u32 %v2295, 7
      %v2297 = vsub.s32 4, %v2296
      %v2298 = vrot.slane %v2277, %v2297
      %v2299 = vlaneseq
      %v2300 = vshrl.u32 %v2299, 7
      %v2301 = vsub.s32 5, %v2300
      %v2302 = vrot.slane %v2277, %v2301
      %vm2309 = vcmask 72704
      %v2311 = vsel %vm2309, %v2262, 0
      %vm2313 = vcmask 1040384
      %v2315 = vsel %vm2313, %v2271, 0
      %v2318 = vsel %vm2313, %v2272, 0
      %v2321 = vsel %vm2313, %v2273, 0
      %v2324 = vsel %vm2313, %v2274, 0
      %v2327 = vsel %vm2313, %v2275, 0
      %v2330 = vsel %vm2313, %v2276, 0
      %2332 = vmatprep.subr.mxu0 %v2266
      %2333 = vmatpush1.msra.mxu0 %v2265
      %2334 = vmatprep.subr.mxu0 %v2318
      %2335 = vmatpush1.msra.mxu0 %v2315
      %2336 = vmatprep.subr.mxu0 0.0
      %2337 = vmatpush1.msra.mxu0 0.0
      %2338 = vmatprep.subr.mxu0 0.0
      %2339 = vmatpush1.msra.mxu0 0.0
      %2340 = vmatprep.subr.mxu0 0.0
      %2341 = vmatpush1.msra.mxu0 0.0
      %2342 = vmatprep.subr.mxu0 0.0
      %2343 = vmatpush1.msra.mxu0 0.0
      %2344 = vmatprep.subr.mxu0 0.0
      %2345 = vmatpush1.msra.mxu0 0.0
      %2346 = vmatprep.subr.mxu0 0.0
      %2347 = vmatpush1.msra.mxu0 0.0
      %2348 = vmatprep.subr.mxu0 0.0
      %2349 = vmatpush1.msra.mxu0 0.0
      %2350 = vmatprep.subr.mxu0 0.0
      %2351 = vmatpush1.msra.mxu0 0.0
      %2352 = vmatprep.subr.mxu0 0.0
      %2353 = vmatpush1.msra.mxu0 0.0
      %2354 = vmatprep.subr.mxu0 0.0
      %2355 = vmatpush1.msra.mxu0 0.0
      %2356 = vmatprep.subr.mxu0 0.0
      %2357 = vmatpush1.msra.mxu0 0.0
      %2358 = vmatprep.subr.mxu0 0.0
      %2359 = vmatpush1.msra.mxu0 0.0
      %2360 = vmatprep.subr.mxu0 0.0
      %2361 = vmatpush1.msra.mxu0 0.0
      %2362 = vmatprep.subr.mxu0 0.0
      %2363 = vmatpush1.msra.mxu0 0.0
      %2364 = vmatprep.subr.mxu0 0.0
      %2365 = vmatpush1.msra.mxu0 0.0
      %2366 = vmatprep.subr.mxu0 0.0
      %2367 = vmatpush1.msra.mxu0 0.0
      %2368 = vmatprep.subr.mxu0 0.0
      %2369 = vmatpush1.msra.mxu0 0.0
      %2370 = vmatprep.subr.mxu0 0.0
      %2371 = vmatpush1.msra.mxu0 0.0
      %2372 = vmatprep.subr.mxu0 0.0
      %2373 = vmatpush1.msra.mxu0 0.0
      %2374 = vmatprep.subr.mxu0 0.0
      %2375 = vmatpush1.msra.mxu0 0.0
      %2376 = vmatprep.subr.mxu0 0.0
      %2377 = vmatpush1.msra.mxu0 0.0
      %2378 = vmatprep.subr.mxu0 0.0
      %2379 = vmatpush1.msra.mxu0 0.0
      %2380 = vmatprep.subr.mxu0 0.0
      %2381 = vmatpush1.msra.mxu0 0.0
      %2382 = vmatprep.subr.mxu0 0.0
      %2383 = vmatpush1.msra.mxu0 0.0
      %2384 = vmatprep.subr.mxu0 0.0
      %2385 = vmatpush1.msra.mxu0 0.0
      %2386 = vmatprep.subr.mxu0 0.0
      %2387 = vmatpush1.msra.mxu0 0.0
      %2388 = vmatprep.subr.mxu0 0.0
      %2389 = vmatpush1.msra.mxu0 0.0
      %2390 = vmatprep.subr.mxu0 0.0
      %2391 = vmatpush1.msra.mxu0 0.0
      %2392 = vmatprep.subr.mxu0 0.0
      %2393 = vmatpush1.msra.mxu0 0.0
      %2394 = vmatprep.subr.mxu0 0.0
      %2395 = vmatpush1.msra.mxu0 0.0
      %2396 = vmatprep.mubr.f32.mxu0 0.0
      %2397 = vmatmul.mubr.f32.gmra.mrb[0].mxu0 %v2311
      %v2398 = vpop.f32.mrb[0].mxu0
      %v2399 = vadd.f32 %v2282, %v2398
      %v2400 = vpop.f32.mrb[0].mxu0
      %v2401 = vadd.f32 %v2286, %v2400
      %2402 = vdwg.mxu0
      %2403 = vmatprep.subr.mxu0 %v2268
      %2404 = vmatpush1.msra.mxu0 %v2267
      %2405 = vmatprep.subr.mxu0 %v2324
      %2406 = vmatpush1.msra.mxu0 %v2321
      %2407 = vmatprep.subr.mxu0 0.0
      %2408 = vmatpush1.msra.mxu0 0.0
      %2409 = vmatprep.subr.mxu0 0.0
      %2410 = vmatpush1.msra.mxu0 0.0
      %2411 = vmatprep.subr.mxu0 0.0
      %2412 = vmatpush1.msra.mxu0 0.0
      %2413 = vmatprep.subr.mxu0 0.0
      %2414 = vmatpush1.msra.mxu0 0.0
      %2415 = vmatprep.subr.mxu0 0.0
      %2416 = vmatpush1.msra.mxu0 0.0
      %2417 = vmatprep.subr.mxu0 0.0
      %2418 = vmatpush1.msra.mxu0 0.0
      %2419 = vmatprep.subr.mxu0 0.0
      %2420 = vmatpush1.msra.mxu0 0.0
      %2421 = vmatprep.subr.mxu0 0.0
      %2422 = vmatpush1.msra.mxu0 0.0
      %2423 = vmatprep.subr.mxu0 0.0
      %2424 = vmatpush1.msra.mxu0 0.0
      %2425 = vmatprep.subr.mxu0 0.0
      %2426 = vmatpush1.msra.mxu0 0.0
      %2427 = vmatprep.subr.mxu0 0.0
      %2428 = vmatpush1.msra.mxu0 0.0
      %2429 = vmatprep.subr.mxu0 0.0
      %2430 = vmatpush1.msra.mxu0 0.0
      %2431 = vmatprep.subr.mxu0 0.0
      %2432 = vmatpush1.msra.mxu0 0.0
      %2433 = vmatprep.subr.mxu0 0.0
      %2434 = vmatpush1.msra.mxu0 0.0
      %2435 = vmatprep.subr.mxu0 0.0
      %2436 = vmatpush1.msra.mxu0 0.0
      %2437 = vmatprep.subr.mxu0 0.0
      %2438 = vmatpush1.msra.mxu0 0.0
      %2439 = vmatprep.subr.mxu0 0.0
      %2440 = vmatpush1.msra.mxu0 0.0
      %2441 = vmatprep.subr.mxu0 0.0
      %2442 = vmatpush1.msra.mxu0 0.0
      %2443 = vmatprep.subr.mxu0 0.0
      %2444 = vmatpush1.msra.mxu0 0.0
      %2445 = vmatprep.subr.mxu0 0.0
      %2446 = vmatpush1.msra.mxu0 0.0
      %2447 = vmatprep.subr.mxu0 0.0
      %2448 = vmatpush1.msra.mxu0 0.0
      %2449 = vmatprep.subr.mxu0 0.0
      %2450 = vmatpush1.msra.mxu0 0.0
      %2451 = vmatprep.subr.mxu0 0.0
      %2452 = vmatpush1.msra.mxu0 0.0
      %2453 = vmatprep.subr.mxu0 0.0
      %2454 = vmatpush1.msra.mxu0 0.0
      %2455 = vmatprep.subr.mxu0 0.0
      %2456 = vmatpush1.msra.mxu0 0.0
      %2457 = vmatprep.subr.mxu0 0.0
      %2458 = vmatpush1.msra.mxu0 0.0
      %2459 = vmatprep.subr.mxu0 0.0
      %2460 = vmatpush1.msra.mxu0 0.0
      %2461 = vmatprep.subr.mxu0 0.0
      %2462 = vmatpush1.msra.mxu0 0.0
      %2463 = vmatprep.subr.mxu0 0.0
      %2464 = vmatpush1.msra.mxu0 0.0
      %2465 = vmatprep.subr.mxu0 0.0
      %2466 = vmatpush1.msra.mxu0 0.0
      %2467 = vmatprep.mubr.f32.mxu0 0.0
      %2468 = vmatmul.mubr.f32.gmra.mrb[0].mxu0 %v2311
      %v2469 = vpop.f32.mrb[0].mxu0
      %v2470 = vadd.f32 %v2290, %v2469
      %v2471 = vpop.f32.mrb[0].mxu0
      %v2472 = vadd.f32 %v2294, %v2471
      %2473 = vdwg.mxu0
      %2474 = vmatprep.subr.mxu0 %v2270
      %2475 = vmatpush1.msra.mxu0 %v2269
      %2476 = vmatprep.subr.mxu0 %v2330
      %2477 = vmatpush1.msra.mxu0 %v2327
      %2478 = vmatprep.subr.mxu0 0.0
      %2479 = vmatpush1.msra.mxu0 0.0
      %2480 = vmatprep.subr.mxu0 0.0
      %2481 = vmatpush1.msra.mxu0 0.0
      %2482 = vmatprep.subr.mxu0 0.0
      %2483 = vmatpush1.msra.mxu0 0.0
      %2484 = vmatprep.subr.mxu0 0.0
      %2485 = vmatpush1.msra.mxu0 0.0
      %2486 = vmatprep.subr.mxu0 0.0
      %2487 = vmatpush1.msra.mxu0 0.0
      %2488 = vmatprep.subr.mxu0 0.0
      %2489 = vmatpush1.msra.mxu0 0.0
      %2490 = vmatprep.subr.mxu0 0.0
      %2491 = vmatpush1.msra.mxu0 0.0
      %2492 = vmatprep.subr.mxu0 0.0
      %2493 = vmatpush1.msra.mxu0 0.0
      %2494 = vmatprep.subr.mxu0 0.0
      %2495 = vmatpush1.msra.mxu0 0.0
      %2496 = vmatprep.subr.mxu0 0.0
      %2497 = vmatpush1.msra.mxu0 0.0
      %2498 = vmatprep.subr.mxu0 0.0
      %2499 = vmatpush1.msra.mxu0 0.0
      %2500 = vmatprep.subr.mxu0 0.0
      %2501 = vmatpush1.msra.mxu0 0.0
      %2502 = vmatprep.subr.mxu0 0.0
      %2503 = vmatpush1.msra.mxu0 0.0
      %2504 = vmatprep.subr.mxu0 0.0
      %2505 = vmatpush1.msra.mxu0 0.0
      %2506 = vmatprep.subr.mxu0 0.0
      %2507 = vmatpush1.msra.mxu0 0.0
      %2508 = vmatprep.subr.mxu0 0.0
      %2509 = vmatpush1.msra.mxu0 0.0
      %2510 = vmatprep.subr.mxu0 0.0
      %2511 = vmatpush1.msra.mxu0 0.0
      %2512 = vmatprep.subr.mxu0 0.0
      %2513 = vmatpush1.msra.mxu0 0.0
      %2514 = vmatprep.subr.mxu0 0.0
      %2515 = vmatpush1.msra.mxu0 0.0
      %2516 = vmatprep.subr.mxu0 0.0
      %2517 = vmatpush1.msra.mxu0 0.0
      %2518 = vmatprep.subr.mxu0 0.0
      %2519 = vmatpush1.msra.mxu0 0.0
      %2520 = vmatprep.subr.mxu0 0.0
      %2521 = vmatpush1.msra.mxu0 0.0
      %2522 = vmatprep.subr.mxu0 0.0
      %2523 = vmatpush1.msra.mxu0 0.0
      %2524 = vmatprep.subr.mxu0 0.0
      %2525 = vmatpush1.msra.mxu0 0.0
      %2526 = vmatprep.subr.mxu0 0.0
      %2527 = vmatpush1.msra.mxu0 0.0
      %2528 = vmatprep.subr.mxu0 0.0
      %2529 = vmatpush1.msra.mxu0 0.0
      %2530 = vmatprep.subr.mxu0 0.0
      %2531 = vmatpush1.msra.mxu0 0.0
      %2532 = vmatprep.subr.mxu0 0.0
      %2533 = vmatpush1.msra.mxu0 0.0
      %2534 = vmatprep.subr.mxu0 0.0
      %2535 = vmatpush1.msra.mxu0 0.0
      %2536 = vmatprep.subr.mxu0 0.0
      %2537 = vmatpush1.msra.mxu0 0.0
      %2538 = vmatprep.mubr.f32.mxu0 0.0
      %2539 = vmatmul.mubr.f32.gmra.mrb[0].mxu0 %v2311
      %v2540 = vpop.f32.mrb[0].mxu0
      %v2541 = vadd.f32 %v2298, %v2540
      %v2542 = vpop.f32.mrb[0].mxu0
      %v2543 = vadd.f32 %v2302, %v2542
      %2544 = vdwg.mxu0
      %v2545 = vld [vmem:[%s13] sm:$0xff]
      %2547 = vset.pattern.permute.xlu0 0
      %2548 = vperm.xlu0 %2547, %v2545
      %v2549 = vpop.permute.xlu0 %2548
      %v2551 = vlaneseq
      %v2552 = vshrl.u32 %v2551, 7
      %v2553 = vsub.s32 0, %v2552
      %v2554 = vrot.slane %v2399, %v2553
      %v2555 = vlaneseq
      %v2556 = vshrl.u32 %v2555, 7
      %v2557 = vsub.s32 0, %v2556
      %v2558 = vrot.slane %v2401, %v2557
      %v2559 = vlaneseq
      %v2560 = vshrl.u32 %v2559, 7
      %v2561 = vsub.s32 0, %v2560
      %v2562 = vrot.slane %v2470, %v2561
      %v2563 = vlaneseq
      %v2564 = vshrl.u32 %v2563, 7
      %v2565 = vsub.s32 0, %v2564
      %v2566 = vrot.slane %v2472, %v2565
      %v2567 = vlaneseq
      %v2568 = vshrl.u32 %v2567, 7
      %v2569 = vsub.s32 0, %v2568
      %v2570 = vrot.slane %v2541, %v2569
      %v2571 = vlaneseq
      %v2572 = vshrl.u32 %v2571, 7
      %v2573 = vsub.s32 0, %v2572
      %v2574 = vrot.slane %v2543, %v2573
      %v2575 = vmul.f32 %v2549, %v2554
      %v2576 = vmul.f32 %v2549, %v2558
      %v2577 = vmul.f32 %v2549, %v2562
      %v2578 = vmul.f32 %v2549, %v2566
      %v2579 = vmul.f32 %v2549, %v2570
      %v2580 = vmul.f32 %v2549, %v2574
      %v2581 = vld [vmem:[%s14] sm:$0xff]
      %2583 = vset.pattern.permute.xlu0 0
      %2584 = vperm.xlu0 %2583, %v2581
      %v2585 = vpop.permute.xlu0 %2584
      %v2587 = vadd.f32 %v2575, %v2585
      %v2588 = vadd.f32 %v2576, %v2585
      %v2589 = vadd.f32 %v2577, %v2585
      %v2590 = vadd.f32 %v2578, %v2585
      %v2591 = vadd.f32 %v2579, %v2585
      %v2592 = vadd.f32 %v2580, %v2585
      %vm2593 = vcmp.ge.f32.partialorder %v2587, 0.0
      %vm2594 = vcmp.ge.f32.partialorder %v2588, 0.0
      %vm2595 = vcmp.ge.f32.partialorder %v2589, 0.0
      %vm2596 = vcmp.ge.f32.partialorder %v2590, 0.0
      %vm2597 = vcmp.ge.f32.partialorder %v2591, 0.0
      %vm2598 = vcmp.ge.f32.partialorder %v2592, 0.0
      %v2599 = vmul.f32 %v2587, 0.01
      %v2600 = vmul.f32 %v2588, 0.01
      %v2601 = vmul.f32 %v2589, 0.01
      %v2602 = vmul.f32 %v2590, 0.01
      %v2603 = vmul.f32 %v2591, 0.01
      %v2604 = vmul.f32 %v2592, 0.01
      %v2605 = vsel %vm2593, %v2587, %v2599
      %v2606 = vsel %vm2594, %v2588, %v2600
      %v2607 = vsel %vm2595, %v2589, %v2601
      %v2608 = vsel %vm2596, %v2590, %v2602
      %v2609 = vsel %vm2597, %v2591, %v2603
      %v2610 = vsel %vm2598, %v2592, %v2604
      %v2611 = vsel %vm1085, %v2605, 0.0
      %v2612 = vsel %vm1086, %v2606, 0.0
      %v2613 = vsel %vm1087, %v2607, 0.0
      %v2614 = vsel %vm1088, %v2608, 0.0
      %v2615 = vsel %vm1089, %v2609, 0.0
      %v2616 = vsel %vm1090, %v2610, 0.0
      %v2617 = vld [vmem:[%s15] sm:$0xff]
      %2618 = vrot.lane.b32.xlu0 %v2611, 1
      %v2619 = vpop.permute.xlu0 %2618
      %2620 = vrot.lane.b32.xlu0 %v2612, 1
      %v2621 = vpop.permute.xlu0 %2620
      %2622 = vrot.lane.b32.xlu0 %v2613, 1
      %v2623 = vpop.permute.xlu0 %2622
      %2624 = vrot.lane.b32.xlu0 %v2614, 1
      %v2625 = vpop.permute.xlu0 %2624
      %2626 = vrot.lane.b32.xlu0 %v2615, 1
      %v2627 = vpop.permute.xlu0 %2626
      %2628 = vrot.lane.b32.xlu0 %v2616, 1
      %v2629 = vpop.permute.xlu0 %2628
      %v2630 = vsel %vm767, %v2627, %v2629
      %v2631 = vsel %vm767, %v2625, %v2627
      %v2632 = vsel %vm767, %v2623, %v2625
      %v2633 = vsel %vm767, %v2621, %v2623
      %v2634 = vsel %vm767, %v2619, %v2621
      %v2635 = vsel %vm767, %v2629, %v2619
      %2636 = vrot.lane.b32.xlu0 %v2611, 127
      %v2637 = vpop.permute.xlu0 %2636
      %2638 = vrot.lane.b32.xlu0 %v2612, 127
      %v2639 = vpop.permute.xlu0 %2638
      %2640 = vrot.lane.b32.xlu0 %v2613, 127
      %v2641 = vpop.permute.xlu0 %2640
      %2642 = vrot.lane.b32.xlu0 %v2614, 127
      %v2643 = vpop.permute.xlu0 %2642
      %2644 = vrot.lane.b32.xlu0 %v2615, 127
      %v2645 = vpop.permute.xlu0 %2644
      %2646 = vrot.lane.b32.xlu0 %v2616, 127
      %v2647 = vpop.permute.xlu0 %2646
      %v2648 = vsel %vm786, %v2645, %v2647
      %v2649 = vsel %vm786, %v2643, %v2645
      %v2650 = vsel %vm786, %v2641, %v2643
      %v2651 = vsel %vm786, %v2639, %v2641
      %v2652 = vsel %vm786, %v2637, %v2639
      %v2653 = vsel %vm786, %v2647, %v2637
      %v2654 = vld [vmem:[%s16] sm:$0xff]
      %2656 = vset.pattern.permute.xlu0 0
      %2657 = vperm.xlu0 %2656, %v2654
      %v2658 = vpop.permute.xlu0 %2657
      %v2661 = vsel %vm805, %v2617, 0
      %2663 = vmatprep.subr.mxu0 %v2634
      %2664 = vmatpush1.msra.mxu0 %v2635
      %2665 = vmatprep.subr.mxu0 %v2612
      %2666 = vmatpush1.msra.mxu0 %v2611
      %2667 = vmatprep.subr.mxu0 %v2651
      %2668 = vmatpush1.msra.mxu0 %v2652
      %2669 = vmatprep.subr.mxu0 0.0
      %2670 = vmatpush1.msra.mxu0 0.0
      %2671 = vmatprep.subr.mxu0 0.0
      %2672 = vmatpush1.msra.mxu0 0.0
      %2673 = vmatprep.subr.mxu0 0.0
      %2674 = vmatpush1.msra.mxu0 0.0
      %2675 = vmatprep.subr.mxu0 0.0
      %2676 = vmatpush1.msra.mxu0 0.0
      %2677 = vmatprep.subr.mxu0 0.0
      %2678 = vmatpush1.msra.mxu0 0.0
      %2679 = vmatprep.subr.mxu0 0.0
      %2680 = vmatpush1.msra.mxu0 0.0
      %2681 = vmatprep.subr.mxu0 0.0
      %2682 = vmatpush1.msra.mxu0 0.0
      %2683 = vmatprep.subr.mxu0 0.0
      %2684 = vmatpush1.msra.mxu0 0.0
      %2685 = vmatprep.subr.mxu0 0.0
      %2686 = vmatpush1.msra.mxu0 0.0
      %2687 = vmatprep.subr.mxu0 0.0
      %2688 = vmatpush1.msra.mxu0 0.0
      %2689 = vmatprep.subr.mxu0 0.0
      %2690 = vmatpush1.msra.mxu0 0.0
      %2691 = vmatprep.subr.mxu0 0.0
      %2692 = vmatpush1.msra.mxu0 0.0
      %2693 = vmatprep.subr.mxu0 0.0
      %2694 = vmatpush1.msra.mxu0 0.0
      %2695 = vmatprep.subr.mxu0 0.0
      %2696 = vmatpush1.msra.mxu0 0.0
      %2697 = vmatprep.subr.mxu0 0.0
      %2698 = vmatpush1.msra.mxu0 0.0
      %2699 = vmatprep.subr.mxu0 0.0
      %2700 = vmatpush1.msra.mxu0 0.0
      %2701 = vmatprep.subr.mxu0 0.0
      %2702 = vmatpush1.msra.mxu0 0.0
      %2703 = vmatprep.subr.mxu0 0.0
      %2704 = vmatpush1.msra.mxu0 0.0
      %2705 = vmatprep.subr.mxu0 0.0
      %2706 = vmatpush1.msra.mxu0 0.0
      %2707 = vmatprep.subr.mxu0 0.0
      %2708 = vmatpush1.msra.mxu0 0.0
      %2709 = vmatprep.subr.mxu0 0.0
      %2710 = vmatpush1.msra.mxu0 0.0
      %2711 = vmatprep.subr.mxu0 0.0
      %2712 = vmatpush1.msra.mxu0 0.0
      %2713 = vmatprep.subr.mxu0 0.0
      %2714 = vmatpush1.msra.mxu0 0.0
      %2715 = vmatprep.subr.mxu0 0.0
      %2716 = vmatpush1.msra.mxu0 0.0
      %2717 = vmatprep.subr.mxu0 0.0
      %2718 = vmatpush1.msra.mxu0 0.0
      %2719 = vmatprep.subr.mxu0 0.0
      %2720 = vmatpush1.msra.mxu0 0.0
      %2721 = vmatprep.subr.mxu0 0.0
      %2722 = vmatpush1.msra.mxu0 0.0
      %2723 = vmatprep.subr.mxu0 0.0
      %2724 = vmatpush1.msra.mxu0 0.0
      %2725 = vmatprep.subr.mxu0 0.0
      %2726 = vmatpush1.msra.mxu0 0.0
      %2727 = vmatprep.mubr.f32.mxu0 0.0
      %2728 = vmatmul.mubr.f32.gmra.mrb[0].mxu0 %v2661
      %v2729 = vpop.f32.mrb[0].mxu0
      %v2730 = vadd.f32 %v2658, %v2729
      %v2731 = vpop.f32.mrb[0].mxu0
      %v2732 = vadd.f32 %v2658, %v2731
      %2733 = vdwg.mxu0
      %2734 = vmatprep.subr.mxu0 %v2632
      %2735 = vmatpush1.msra.mxu0 %v2633
      %2736 = vmatprep.subr.mxu0 %v2614
      %2737 = vmatpush1.msra.mxu0 %v2613
      %2738 = vmatprep.subr.mxu0 %v2649
      %2739 = vmatpush1.msra.mxu0 %v2650
      %2740 = vmatprep.subr.mxu0 0.0
      %2741 = vmatpush1.msra.mxu0 0.0
      %2742 = vmatprep.subr.mxu0 0.0
      %2743 = vmatpush1.msra.mxu0 0.0
      %2744 = vmatprep.subr.mxu0 0.0
      %2745 = vmatpush1.msra.mxu0 0.0
      %2746 = vmatprep.subr.mxu0 0.0
      %2747 = vmatpush1.msra.mxu0 0.0
      %2748 = vmatprep.subr.mxu0 0.0
      %2749 = vmatpush1.msra.mxu0 0.0
      %2750 = vmatprep.subr.mxu0 0.0
      %2751 = vmatpush1.msra.mxu0 0.0
      %2752 = vmatprep.subr.mxu0 0.0
      %2753 = vmatpush1.msra.mxu0 0.0
      %2754 = vmatprep.subr.mxu0 0.0
      %2755 = vmatpush1.msra.mxu0 0.0
      %2756 = vmatprep.subr.mxu0 0.0
      %2757 = vmatpush1.msra.mxu0 0.0
      %2758 = vmatprep.subr.mxu0 0.0
      %2759 = vmatpush1.msra.mxu0 0.0
      %2760 = vmatprep.subr.mxu0 0.0
      %2761 = vmatpush1.msra.mxu0 0.0
      %2762 = vmatprep.subr.mxu0 0.0
      %2763 = vmatpush1.msra.mxu0 0.0
      %2764 = vmatprep.subr.mxu0 0.0
      %2765 = vmatpush1.msra.mxu0 0.0
      %2766 = vmatprep.subr.mxu0 0.0
      %2767 = vmatpush1.msra.mxu0 0.0
      %2768 = vmatprep.subr.mxu0 0.0
      %2769 = vmatpush1.msra.mxu0 0.0
      %2770 = vmatprep.subr.mxu0 0.0
      %2771 = vmatpush1.msra.mxu0 0.0
      %2772 = vmatprep.subr.mxu0 0.0
      %2773 = vmatpush1.msra.mxu0 0.0
      %2774 = vmatprep.subr.mxu0 0.0
      %2775 = vmatpush1.msra.mxu0 0.0
      %2776 = vmatprep.subr.mxu0 0.0
      %2777 = vmatpush1.msra.mxu0 0.0
      %2778 = vmatprep.subr.mxu0 0.0
      %2779 = vmatpush1.msra.mxu0 0.0
      %2780 = vmatprep.subr.mxu0 0.0
      %2781 = vmatpush1.msra.mxu0 0.0
      %2782 = vmatprep.subr.mxu0 0.0
      %2783 = vmatpush1.msra.mxu0 0.0
      %2784 = vmatprep.subr.mxu0 0.0
      %2785 = vmatpush1.msra.mxu0 0.0
      %2786 = vmatprep.subr.mxu0 0.0
      %2787 = vmatpush1.msra.mxu0 0.0
      %2788 = vmatprep.subr.mxu0 0.0
      %2789 = vmatpush1.msra.mxu0 0.0
      %2790 = vmatprep.subr.mxu0 0.0
      %2791 = vmatpush1.msra.mxu0 0.0
      %2792 = vmatprep.subr.mxu0 0.0
      %2793 = vmatpush1.msra.mxu0 0.0
      %2794 = vmatprep.subr.mxu0 0.0
      %2795 = vmatpush1.msra.mxu0 0.0
      %2796 = vmatprep.subr.mxu0 0.0
      %2797 = vmatpush1.msra.mxu0 0.0
      %2798 = vmatprep.mubr.f32.mxu0 0.0
      %2799 = vmatmul.mubr.f32.gmra.mrb[0].mxu0 %v2661
      %v2800 = vpop.f32.mrb[0].mxu0
      %v2801 = vadd.f32 %v2658, %v2800
      %v2802 = vpop.f32.mrb[0].mxu0
      %v2803 = vadd.f32 %v2658, %v2802
      %2804 = vdwg.mxu0
      %2805 = vmatprep.subr.mxu0 %v2630
      %2806 = vmatpush1.msra.mxu0 %v2631
      %2807 = vmatprep.subr.mxu0 %v2616
      %2808 = vmatpush1.msra.mxu0 %v2615
      %2809 = vmatprep.subr.mxu0 %v2653
      %2810 = vmatpush1.msra.mxu0 %v2648
      %2811 = vmatprep.subr.mxu0 0.0
      %2812 = vmatpush1.msra.mxu0 0.0
      %2813 = vmatprep.subr.mxu0 0.0
      %2814 = vmatpush1.msra.mxu0 0.0
      %2815 = vmatprep.subr.mxu0 0.0
      %2816 = vmatpush1.msra.mxu0 0.0
      %2817 = vmatprep.subr.mxu0 0.0
      %2818 = vmatpush1.msra.mxu0 0.0
      %2819 = vmatprep.subr.mxu0 0.0
      %2820 = vmatpush1.msra.mxu0 0.0
      %2821 = vmatprep.subr.mxu0 0.0
      %2822 = vmatpush1.msra.mxu0 0.0
      %2823 = vmatprep.subr.mxu0 0.0
      %2824 = vmatpush1.msra.mxu0 0.0
      %2825 = vmatprep.subr.mxu0 0.0
      %2826 = vmatpush1.msra.mxu0 0.0
      %2827 = vmatprep.subr.mxu0 0.0
      %2828 = vmatpush1.msra.mxu0 0.0
      %2829 = vmatprep.subr.mxu0 0.0
      %2830 = vmatpush1.msra.mxu0 0.0
      %2831 = vmatprep.subr.mxu0 0.0
      %2832 = vmatpush1.msra.mxu0 0.0
      %2833 = vmatprep.subr.mxu0 0.0
      %2834 = vmatpush1.msra.mxu0 0.0
      %2835 = vmatprep.subr.mxu0 0.0
      %2836 = vmatpush1.msra.mxu0 0.0
      %2837 = vmatprep.subr.mxu0 0.0
      %2838 = vmatpush1.msra.mxu0 0.0
      %2839 = vmatprep.subr.mxu0 0.0
      %2840 = vmatpush1.msra.mxu0 0.0
      %2841 = vmatprep.subr.mxu0 0.0
      %2842 = vmatpush1.msra.mxu0 0.0
      %2843 = vmatprep.subr.mxu0 0.0
      %2844 = vmatpush1.msra.mxu0 0.0
      %2845 = vmatprep.subr.mxu0 0.0
      %2846 = vmatpush1.msra.mxu0 0.0
      %2847 = vmatprep.subr.mxu0 0.0
      %2848 = vmatpush1.msra.mxu0 0.0
      %2849 = vmatprep.subr.mxu0 0.0
      %2850 = vmatpush1.msra.mxu0 0.0
      %2851 = vmatprep.subr.mxu0 0.0
      %2852 = vmatpush1.msra.mxu0 0.0
      %2853 = vmatprep.subr.mxu0 0.0
      %2854 = vmatpush1.msra.mxu0 0.0
      %2855 = vmatprep.subr.mxu0 0.0
      %2856 = vmatpush1.msra.mxu0 0.0
      %2857 = vmatprep.subr.mxu0 0.0
      %2858 = vmatpush1.msra.mxu0 0.0
      %2859 = vmatprep.subr.mxu0 0.0
      %2860 = vmatpush1.msra.mxu0 0.0
      %2861 = vmatprep.subr.mxu0 0.0
      %2862 = vmatpush1.msra.mxu0 0.0
      %2863 = vmatprep.subr.mxu0 0.0
      %2864 = vmatpush1.msra.mxu0 0.0
      %2865 = vmatprep.subr.mxu0 0.0
      %2866 = vmatpush1.msra.mxu0 0.0
      %2867 = vmatprep.subr.mxu0 0.0
      %2868 = vmatpush1.msra.mxu0 0.0
      %2869 = vmatprep.mubr.f32.mxu0 0.0
      %2870 = vmatmul.mubr.f32.gmra.mrb[0].mxu0 %v2661
      %v2871 = vpop.f32.mrb[0].mxu0
      %v2872 = vadd.f32 %v2658, %v2871
      %v2873 = vpop.f32.mrb[0].mxu0
      %v2874 = vadd.f32 %v2658, %v2873
      %2875 = vdwg.mxu0
      %vm2876 = vcmp.ge.f32.partialorder %v2730, 0.0
      %vm2877 = vcmp.ge.f32.partialorder %v2732, 0.0
      %vm2878 = vcmp.ge.f32.partialorder %v2801, 0.0
      %vm2879 = vcmp.ge.f32.partialorder %v2803, 0.0
      %vm2880 = vcmp.ge.f32.partialorder %v2872, 0.0
      %vm2881 = vcmp.ge.f32.partialorder %v2874, 0.0
      %v2882 = vmul.f32 %v2730, 0.01
      %v2883 = vmul.f32 %v2732, 0.01
      %v2884 = vmul.f32 %v2801, 0.01
      %v2885 = vmul.f32 %v2803, 0.01
      %v2886 = vmul.f32 %v2872, 0.01
      %v2887 = vmul.f32 %v2874, 0.01
      %v2888 = vsel %vm2876, %v2730, %v2882
      %v2889 = vsel %vm2877, %v2732, %v2883
      %v2890 = vsel %vm2878, %v2801, %v2884
      %v2891 = vsel %vm2879, %v2803, %v2885
      %v2892 = vsel %vm2880, %v2872, %v2886
      %v2893 = vsel %vm2881, %v2874, %v2887
      %v2894 = vsel %vm1085, %v2888, 0.0
      %v2895 = vsel %vm1086, %v2889, 0.0
      %v2896 = vsel %vm1087, %v2890, 0.0
      %v2897 = vsel %vm1088, %v2891, 0.0
      %v2898 = vsel %vm1089, %v2892, 0.0
      %v2899 = vsel %vm1090, %v2893, 0.0
      %v2900 = vld [vmem:[%s17] sm:$0xff]
      %v2901 = vld [vmem:[%s17 + $0x8] sm:$0xff]
      %2902 = vrot.lane.b32.xlu0 %v2894, 1
      %v2903 = vpop.permute.xlu0 %2902
      %2904 = vrot.lane.b32.xlu0 %v2895, 1
      %v2905 = vpop.permute.xlu0 %2904
      %2906 = vrot.lane.b32.xlu0 %v2896, 1
      %v2907 = vpop.permute.xlu0 %2906
      %2908 = vrot.lane.b32.xlu0 %v2897, 1
      %v2909 = vpop.permute.xlu0 %2908
      %2910 = vrot.lane.b32.xlu0 %v2898, 1
      %v2911 = vpop.permute.xlu0 %2910
      %2912 = vrot.lane.b32.xlu0 %v2899, 1
      %v2913 = vpop.permute.xlu0 %2912
      %v2914 = vsel %vm767, %v2911, %v2913
      %v2915 = vsel %vm767, %v2909, %v2911
      %v2916 = vsel %vm767, %v2907, %v2909
      %v2917 = vsel %vm767, %v2905, %v2907
      %v2918 = vsel %vm767, %v2903, %v2905
      %v2919 = vsel %vm767, %v2913, %v2903
      %2920 = vrot.lane.b32.xlu0 %v2894, 127
      %v2921 = vpop.permute.xlu0 %2920
      %2922 = vrot.lane.b32.xlu0 %v2895, 127
      %v2923 = vpop.permute.xlu0 %2922
      %2924 = vrot.lane.b32.xlu0 %v2896, 127
      %v2925 = vpop.permute.xlu0 %2924
      %2926 = vrot.lane.b32.xlu0 %v2897, 127
      %v2927 = vpop.permute.xlu0 %2926
      %2928 = vrot.lane.b32.xlu0 %v2898, 127
      %v2929 = vpop.permute.xlu0 %2928
      %2930 = vrot.lane.b32.xlu0 %v2899, 127
      %v2931 = vpop.permute.xlu0 %2930
      %v2932 = vsel %vm786, %v2929, %v2931
      %v2933 = vsel %vm786, %v2927, %v2929
      %v2934 = vsel %vm786, %v2925, %v2927
      %v2935 = vsel %vm786, %v2923, %v2925
      %v2936 = vsel %vm786, %v2921, %v2923
      %v2937 = vsel %vm786, %v2931, %v2921
      %v2938 = vld [vmem:[%s18] sm:$0xff]
      %v2939 = vld [vmem:[%s18 + $0x8] sm:$0xff]
      %2941 = vset.pattern.permute.xlu0 0
      %2942 = vperm.xlu0 %2941, %v2938
      %v2943 = vpop.permute.xlu0 %2942
      %2946 = vset.pattern.permute.xlu0 0
      %2947 = vperm.xlu0 %2946, %v2939
      %v2948 = vpop.permute.xlu0 %2947
      %v2951 = vsel %vm805, %v2900, 0
      %v2954 = vsel %vm805, %v2901, 0
      %2956 = vmatprep.subr.mxu0 %v2918
      %2957 = vmatpush1.msra.mxu0 %v2919
      %2958 = vmatprep.subr.mxu0 %v2895
      %2959 = vmatpush1.msra.mxu0 %v2894
      %2960 = vmatprep.subr.mxu0 %v2935
      %2961 = vmatpush1.msra.mxu0 %v2936
      %2962 = vmatprep.subr.mxu0 0.0
      %2963 = vmatpush1.msra.mxu0 0.0
      %2964 = vmatprep.subr.mxu0 0.0
      %2965 = vmatpush1.msra.mxu0 0.0
      %2966 = vmatprep.subr.mxu0 0.0
      %2967 = vmatpush1.msra.mxu0 0.0
      %2968 = vmatprep.subr.mxu0 0.0
      %2969 = vmatpush1.msra.mxu0 0.0
      %2970 = vmatprep.subr.mxu0 0.0
      %2971 = vmatpush1.msra.mxu0 0.0
      %2972 = vmatprep.subr.mxu0 0.0
      %2973 = vmatpush1.msra.mxu0 0.0
      %2974 = vmatprep.subr.mxu0 0.0
      %2975 = vmatpush1.msra.mxu0 0.0
      %2976 = vmatprep.subr.mxu0 0.0
      %2977 = vmatpush1.msra.mxu0 0.0
      %2978 = vmatprep.subr.mxu0 0.0
      %2979 = vmatpush1.msra.mxu0 0.0
      %2980 = vmatprep.subr.mxu0 0.0
      %2981 = vmatpush1.msra.mxu0 0.0
      %2982 = vmatprep.subr.mxu0 0.0
      %2983 = vmatpush1.msra.mxu0 0.0
      %2984 = vmatprep.subr.mxu0 0.0
      %2985 = vmatpush1.msra.mxu0 0.0
      %2986 = vmatprep.subr.mxu0 0.0
      %2987 = vmatpush1.msra.mxu0 0.0
      %2988 = vmatprep.subr.mxu0 0.0
      %2989 = vmatpush1.msra.mxu0 0.0
      %2990 = vmatprep.subr.mxu0 0.0
      %2991 = vmatpush1.msra.mxu0 0.0
      %2992 = vmatprep.subr.mxu0 0.0
      %2993 = vmatpush1.msra.mxu0 0.0
      %2994 = vmatprep.subr.mxu0 0.0
      %2995 = vmatpush1.msra.mxu0 0.0
      %2996 = vmatprep.subr.mxu0 0.0
      %2997 = vmatpush1.msra.mxu0 0.0
      %2998 = vmatprep.subr.mxu0 0.0
      %2999 = vmatpush1.msra.mxu0 0.0
      %3000 = vmatprep.subr.mxu0 0.0
      %3001 = vmatpush1.msra.mxu0 0.0
      %3002 = vmatprep.subr.mxu0 0.0
      %3003 = vmatpush1.msra.mxu0 0.0
      %3004 = vmatprep.subr.mxu0 0.0
      %3005 = vmatpush1.msra.mxu0 0.0
      %3006 = vmatprep.subr.mxu0 0.0
      %3007 = vmatpush1.msra.mxu0 0.0
      %3008 = vmatprep.subr.mxu0 0.0
      %3009 = vmatpush1.msra.mxu0 0.0
      %3010 = vmatprep.subr.mxu0 0.0
      %3011 = vmatpush1.msra.mxu0 0.0
      %3012 = vmatprep.subr.mxu0 0.0
      %3013 = vmatpush1.msra.mxu0 0.0
      %3014 = vmatprep.subr.mxu0 0.0
      %3015 = vmatpush1.msra.mxu0 0.0
      %3016 = vmatprep.subr.mxu0 0.0
      %3017 = vmatpush1.msra.mxu0 0.0
      %3018 = vmatprep.subr.mxu0 0.0
      %3019 = vmatpush1.msra.mxu0 0.0
      %3020 = vmatprep.mubr.f32.mxu0 0.0
      %3021 = vmatmul.mubr.f32.gmra.mrb[0].mxu0 %v2951
      %v3022 = vpop.f32.mrb[0].mxu0
      %v3023 = vadd.f32 %v2943, %v3022
      %v3024 = vpop.f32.mrb[0].mxu0
      %v3025 = vadd.f32 %v2943, %v3024
      %3026 = vmatprep.mubr.f32.mxu0 0.0
      %3027 = vmatmul.mubr.f32.gmra.mrb[0].mxu0 %v2954
      %v3028 = vpop.f32.mrb[0].mxu0
      %v3029 = vadd.f32 %v2948, %v3028
      %v3030 = vpop.f32.mrb[0].mxu0
      %v3031 = vadd.f32 %v2948, %v3030
      %3032 = vdwg.mxu0
      %3033 = vmatprep.subr.mxu0 %v2916
      %3034 = vmatpush1.msra.mxu0 %v2917
      %3035 = vmatprep.subr.mxu0 %v2897
      %3036 = vmatpush1.msra.mxu0 %v2896
      %3037 = vmatprep.subr.mxu0 %v2933
      %3038 = vmatpush1.msra.mxu0 %v2934
      %3039 = vmatprep.subr.mxu0 0.0
      %3040 = vmatpush1.msra.mxu0 0.0
      %3041 = vmatprep.subr.mxu0 0.0
      %3042 = vmatpush1.msra.mxu0 0.0
      %3043 = vmatprep.subr.mxu0 0.0
      %3044 = vmatpush1.msra.mxu0 0.0
      %3045 = vmatprep.subr.mxu0 0.0
      %3046 = vmatpush1.msra.mxu0 0.0
      %3047 = vmatprep.subr.mxu0 0.0
      %3048 = vmatpush1.msra.mxu0 0.0
      %3049 = vmatprep.subr.mxu0 0.0
      %3050 = vmatpush1.msra.mxu0 0.0
      %3051 = vmatprep.subr.mxu0 0.0
      %3052 = vmatpush1.msra.mxu0 0.0
      %3053 = vmatprep.subr.mxu0 0.0
      %3054 = vmatpush1.msra.mxu0 0.0
      %3055 = vmatprep.subr.mxu0 0.0
      %3056 = vmatpush1.msra.mxu0 0.0
      %3057 = vmatprep.subr.mxu0 0.0
      %3058 = vmatpush1.msra.mxu0 0.0
      %3059 = vmatprep.subr.mxu0 0.0
      %3060 = vmatpush1.msra.mxu0 0.0
      %3061 = vmatprep.subr.mxu0 0.0
      %3062 = vmatpush1.msra.mxu0 0.0
      %3063 = vmatprep.subr.mxu0 0.0
      %3064 = vmatpush1.msra.mxu0 0.0
      %3065 = vmatprep.subr.mxu0 0.0
      %3066 = vmatpush1.msra.mxu0 0.0
      %3067 = vmatprep.subr.mxu0 0.0
      %3068 = vmatpush1.msra.mxu0 0.0
      %3069 = vmatprep.subr.mxu0 0.0
      %3070 = vmatpush1.msra.mxu0 0.0
      %3071 = vmatprep.subr.mxu0 0.0
      %3072 = vmatpush1.msra.mxu0 0.0
      %3073 = vmatprep.subr.mxu0 0.0
      %3074 = vmatpush1.msra.mxu0 0.0
      %3075 = vmatprep.subr.mxu0 0.0
      %3076 = vmatpush1.msra.mxu0 0.0
      %3077 = vmatprep.subr.mxu0 0.0
      %3078 = vmatpush1.msra.mxu0 0.0
      %3079 = vmatprep.subr.mxu0 0.0
      %3080 = vmatpush1.msra.mxu0 0.0
      %3081 = vmatprep.subr.mxu0 0.0
      %3082 = vmatpush1.msra.mxu0 0.0
      %3083 = vmatprep.subr.mxu0 0.0
      %3084 = vmatpush1.msra.mxu0 0.0
      %3085 = vmatprep.subr.mxu0 0.0
      %3086 = vmatpush1.msra.mxu0 0.0
      %3087 = vmatprep.subr.mxu0 0.0
      %3088 = vmatpush1.msra.mxu0 0.0
      %3089 = vmatprep.subr.mxu0 0.0
      %3090 = vmatpush1.msra.mxu0 0.0
      %3091 = vmatprep.subr.mxu0 0.0
      %3092 = vmatpush1.msra.mxu0 0.0
      %3093 = vmatprep.subr.mxu0 0.0
      %3094 = vmatpush1.msra.mxu0 0.0
      %3095 = vmatprep.subr.mxu0 0.0
      %3096 = vmatpush1.msra.mxu0 0.0
      %3097 = vmatprep.mubr.f32.mxu0 0.0
      %3098 = vmatmul.mubr.f32.gmra.mrb[0].mxu0 %v2951
      %v3099 = vpop.f32.mrb[0].mxu0
      %v3100 = vadd.f32 %v2943, %v3099
      %v3101 = vpop.f32.mrb[0].mxu0
      %v3102 = vadd.f32 %v2943, %v3101
      %3103 = vmatprep.mubr.f32.mxu0 0.0
      %3104 = vmatmul.mubr.f32.gmra.mrb[0].mxu0 %v2954
      %v3105 = vpop.f32.mrb[0].mxu0
      %v3106 = vadd.f32 %v2948, %v3105
      %v3107 = vpop.f32.mrb[0].mxu0
      %v3108 = vadd.f32 %v2948, %v3107
      %3109 = vdwg.mxu0
      %3110 = vmatprep.subr.mxu0 %v2914
      %3111 = vmatpush1.msra.mxu0 %v2915
      %3112 = vmatprep.subr.mxu0 %v2899
      %3113 = vmatpush1.msra.mxu0 %v2898
      %3114 = vmatprep.subr.mxu0 %v2937
      %3115 = vmatpush1.msra.mxu0 %v2932
      %3116 = vmatprep.subr.mxu0 0.0
      %3117 = vmatpush1.msra.mxu0 0.0
      %3118 = vmatprep.subr.mxu0 0.0
      %3119 = vmatpush1.msra.mxu0 0.0
      %3120 = vmatprep.subr.mxu0 0.0
      %3121 = vmatpush1.msra.mxu0 0.0
      %3122 = vmatprep.subr.mxu0 0.0
      %3123 = vmatpush1.msra.mxu0 0.0
      %3124 = vmatprep.subr.mxu0 0.0
      %3125 = vmatpush1.msra.mxu0 0.0
      %3126 = vmatprep.subr.mxu0 0.0
      %3127 = vmatpush1.msra.mxu0 0.0
      %3128 = vmatprep.subr.mxu0 0.0
      %3129 = vmatpush1.msra.mxu0 0.0
      %3130 = vmatprep.subr.mxu0 0.0
      %3131 = vmatpush1.msra.mxu0 0.0
      %3132 = vmatprep.subr.mxu0 0.0
      %3133 = vmatpush1.msra.mxu0 0.0
      %3134 = vmatprep.subr.mxu0 0.0
      %3135 = vmatpush1.msra.mxu0 0.0
      %3136 = vmatprep.subr.mxu0 0.0
      %3137 = vmatpush1.msra.mxu0 0.0
      %3138 = vmatprep.subr.mxu0 0.0
      %3139 = vmatpush1.msra.mxu0 0.0
      %3140 = vmatprep.subr.mxu0 0.0
      %3141 = vmatpush1.msra.mxu0 0.0
      %3142 = vmatprep.subr.mxu0 0.0
      %3143 = vmatpush1.msra.mxu0 0.0
      %3144 = vmatprep.subr.mxu0 0.0
      %3145 = vmatpush1.msra.mxu0 0.0
      %3146 = vmatprep.subr.mxu0 0.0
      %3147 = vmatpush1.msra.mxu0 0.0
      %3148 = vmatprep.subr.mxu0 0.0
      %3149 = vmatpush1.msra.mxu0 0.0
      %3150 = vmatprep.subr.mxu0 0.0
      %3151 = vmatpush1.msra.mxu0 0.0
      %3152 = vmatprep.subr.mxu0 0.0
      %3153 = vmatpush1.msra.mxu0 0.0
      %3154 = vmatprep.subr.mxu0 0.0
      %3155 = vmatpush1.msra.mxu0 0.0
      %3156 = vmatprep.subr.mxu0 0.0
      %3157 = vmatpush1.msra.mxu0 0.0
      %3158 = vmatprep.subr.mxu0 0.0
      %3159 = vmatpush1.msra.mxu0 0.0
      %3160 = vmatprep.subr.mxu0 0.0
      %3161 = vmatpush1.msra.mxu0 0.0
      %3162 = vmatprep.subr.mxu0 0.0
      %3163 = vmatpush1.msra.mxu0 0.0
      %3164 = vmatprep.subr.mxu0 0.0
      %3165 = vmatpush1.msra.mxu0 0.0
      %3166 = vmatprep.subr.mxu0 0.0
      %3167 = vmatpush1.msra.mxu0 0.0
      %3168 = vmatprep.subr.mxu0 0.0
      %3169 = vmatpush1.msra.mxu0 0.0
      %3170 = vmatprep.subr.mxu0 0.0
      %3171 = vmatpush1.msra.mxu0 0.0
      %3172 = vmatprep.subr.mxu0 0.0
      %3173 = vmatpush1.msra.mxu0 0.0
      %3174 = vmatprep.mubr.f32.mxu0 0.0
      %3175 = vmatmul.mubr.f32.gmra.mrb[0].mxu0 %v2951
      %v3176 = vpop.f32.mrb[0].mxu0
      %v3177 = vadd.f32 %v2943, %v3176
      %v3178 = vpop.f32.mrb[0].mxu0
      %v3179 = vadd.f32 %v2943, %v3178
      %3180 = vmatprep.mubr.f32.mxu0 0.0
      %3181 = vmatmul.mubr.f32.gmra.mrb[0].mxu0 %v2954
      %v3182 = vpop.f32.mrb[0].mxu0
      %v3183 = vadd.f32 %v2948, %v3182
      %v3184 = vpop.f32.mrb[0].mxu0
      %v3185 = vadd.f32 %v2948, %v3184
      %3186 = vdwg.mxu0
      %vm3187 = vcmp.ge.f32.partialorder %v3023, 0.0
      %vm3188 = vcmp.ge.f32.partialorder %v3025, 0.0
      %vm3189 = vcmp.ge.f32.partialorder %v3100, 0.0
      %vm3190 = vcmp.ge.f32.partialorder %v3102, 0.0
      %vm3191 = vcmp.ge.f32.partialorder %v3177, 0.0
      %vm3192 = vcmp.ge.f32.partialorder %v3179, 0.0
      %vm3193 = vcmp.ge.f32.partialorder %v3029, 0.0
      %vm3194 = vcmp.ge.f32.partialorder %v3031, 0.0
      %vm3195 = vcmp.ge.f32.partialorder %v3106, 0.0
      %vm3196 = vcmp.ge.f32.partialorder %v3108, 0.0
      %vm3197 = vcmp.ge.f32.partialorder %v3183, 0.0
      %vm3198 = vcmp.ge.f32.partialorder %v3185, 0.0
      %v3199 = vmul.f32 %v3023, 0.01
      %v3200 = vmul.f32 %v3025, 0.01
      %v3201 = vmul.f32 %v3100, 0.01
      %v3202 = vmul.f32 %v3102, 0.01
      %v3203 = vmul.f32 %v3177, 0.01
      %v3204 = vmul.f32 %v3179, 0.01
      %v3205 = vmul.f32 %v3029, 0.01
      %v3206 = vmul.f32 %v3031, 0.01
      %v3207 = vmul.f32 %v3106, 0.01
      %v3208 = vmul.f32 %v3108, 0.01
      %v3209 = vmul.f32 %v3183, 0.01
      %v3210 = vmul.f32 %v3185, 0.01
      %v3211 = vsel %vm3187, %v3023, %v3199
      %v3212 = vsel %vm3188, %v3025, %v3200
      %v3213 = vsel %vm3189, %v3100, %v3201
      %v3214 = vsel %vm3190, %v3102, %v3202
      %v3215 = vsel %vm3191, %v3177, %v3203
      %v3216 = vsel %vm3192, %v3179, %v3204
      %v3217 = vsel %vm3193, %v3029, %v3205
      %v3218 = vsel %vm3194, %v3031, %v3206
      %v3219 = vsel %vm3195, %v3106, %v3207
      %v3220 = vsel %vm3196, %v3108, %v3208
      %v3221 = vsel %vm3197, %v3183, %v3209
      %v3222 = vsel %vm3198, %v3185, %v3210
      %v3223 = vsel %vm1085, %v3211, 0.0
      %v3224 = vsel %vm1086, %v3212, 0.0
      %v3225 = vsel %vm1087, %v3213, 0.0
      %v3226 = vsel %vm1088, %v3214, 0.0
      %v3227 = vsel %vm1089, %v3215, 0.0
      %v3228 = vsel %vm1090, %v3216, 0.0
      %v3229 = vsel %vm1085, %v3217, 0.0
      %v3230 = vsel %vm1086, %v3218, 0.0
      %v3231 = vsel %vm1087, %v3219, 0.0
      %v3232 = vsel %vm1088, %v3220, 0.0
      %v3233 = vsel %vm1089, %v3221, 0.0
      %v3234 = vsel %vm1090, %v3222, 0.0
      %v3235 = vld [vmem:[%s19] sm:$0xf]
      %3236 = vrot.lane.b32.xlu0 %v3223, 1
      %v3237 = vpop.permute.xlu0 %3236
      %3238 = vrot.lane.b32.xlu0 %v3229, 1
      %v3239 = vpop.permute.xlu0 %3238
      %3240 = vrot.lane.b32.xlu0 %v3224, 1
      %v3241 = vpop.permute.xlu0 %3240
      %3242 = vrot.lane.b32.xlu0 %v3230, 1
      %v3243 = vpop.permute.xlu0 %3242
      %3244 = vrot.lane.b32.xlu0 %v3225, 1
      %v3245 = vpop.permute.xlu0 %3244
      %3246 = vrot.lane.b32.xlu0 %v3231, 1
      %v3247 = vpop.permute.xlu0 %3246
      %3248 = vrot.lane.b32.xlu0 %v3226, 1
      %v3249 = vpop.permute.xlu0 %3248
      %3250 = vrot.lane.b32.xlu0 %v3232, 1
      %v3251 = vpop.permute.xlu0 %3250
      %3252 = vrot.lane.b32.xlu0 %v3227, 1
      %v3253 = vpop.permute.xlu0 %3252
      %3254 = vrot.lane.b32.xlu0 %v3233, 1
      %v3255 = vpop.permute.xlu0 %3254
      %3256 = vrot.lane.b32.xlu0 %v3228, 1
      %v3257 = vpop.permute.xlu0 %3256
      %3258 = vrot.lane.b32.xlu0 %v3234, 1
      %v3259 = vpop.permute.xlu0 %3258
      %v3260 = vsel %vm767, %v3253, %v3257
      %v3261 = vsel %vm767, %v3255, %v3259
      %v3262 = vsel %vm767, %v3249, %v3253
      %v3263 = vsel %vm767, %v3251, %v3255
      %v3264 = vsel %vm767, %v3245, %v3249
      %v3265 = vsel %vm767, %v3247, %v3251
      %v3266 = vsel %vm767, %v3241, %v3245
      %v3267 = vsel %vm767, %v3243, %v3247
      %v3268 = vsel %vm767, %v3237, %v3241
      %v3269 = vsel %vm767, %v3239, %v3243
      %v3270 = vsel %vm767, %v3257, %v3237
      %v3271 = vsel %vm767, %v3259, %v3239
      %3272 = vrot.lane.b32.xlu0 %v3223, 127
      %v3273 = vpop.permute.xlu0 %3272
      %3274 = vrot.lane.b32.xlu0 %v3229, 127
      %v3275 = vpop.permute.xlu0 %3274
      %3276 = vrot.lane.b32.xlu0 %v3224, 127
      %v3277 = vpop.permute.xlu0 %3276
      %3278 = vrot.lane.b32.xlu0 %v3230, 127
      %v3279 = vpop.permute.xlu0 %3278
      %3280 = vrot.lane.b32.xlu0 %v3225, 127
      %v3281 = vpop.permute.xlu0 %3280
      %3282 = vrot.lane.b32.xlu0 %v3231, 127
      %v3283 = vpop.permute.xlu0 %3282
      %3284 = vrot.lane.b32.xlu0 %v3226, 127
      %v3285 = vpop.permute.xlu0 %3284
      %3286 = vrot.lane.b32.xlu0 %v3232, 127
      %v3287 = vpop.permute.xlu0 %3286
      %3288 = vrot.lane.b32.xlu0 %v3227, 127
      %v3289 = vpop.permute.xlu0 %3288
      %3290 = vrot.lane.b32.xlu0 %v3233, 127
      %v3291 = vpop.permute.xlu0 %3290
      %3292 = vrot.lane.b32.xlu0 %v3228, 127
      %v3293 = vpop.permute.xlu0 %3292
      %3294 = vrot.lane.b32.xlu0 %v3234, 127
      %v3295 = vpop.permute.xlu0 %3294
      %v3296 = vsel %vm786, %v3289, %v3293
      %v3297 = vsel %vm786, %v3291, %v3295
      %v3298 = vsel %vm786, %v3285, %v3289
      %v3299 = vsel %vm786, %v3287, %v3291
      %v3300 = vsel %vm786, %v3281, %v3285
      %v3301 = vsel %vm786, %v3283, %v3287
      %v3302 = vsel %vm786, %v3277, %v3281
      %v3303 = vsel %vm786, %v3279, %v3283
      %v3304 = vsel %vm786, %v3273, %v3277
      %v3305 = vsel %vm786, %v3275, %v3279
      %v3306 = vsel %vm786, %v3293, %v3273
      %v3307 = vsel %vm786, %v3295, %v3275
      %v3308 = vld [vmem:[%s20] sm:$0xf]
      %3310 = vset.pattern.permute.xlu0 0
      %3311 = vperm.xlu0 %3310, %v3308
      %v3312 = vpop.permute.xlu0 %3311
      %v3315 = vsel %vm1182, %v3235, 0
      %3317 = vmatprep.subr.mxu0 %v3268
      %3318 = vmatpush1.msra.mxu0 %v3270
      %3319 = vmatprep.subr.mxu0 %v3269
      %3320 = vmatpush1.msra.mxu0 %v3271
      %3321 = vmatprep.subr.mxu0 %v3224
      %3322 = vmatpush1.msra.mxu0 %v3223
      %3323 = vmatprep.subr.mxu0 %v3230
      %3324 = vmatpush1.msra.mxu0 %v3229
      %3325 = vmatprep.subr.mxu0 %v3302
      %3326 = vmatpush1.msra.mxu0 %v3304
      %3327 = vmatprep.subr.mxu0 %v3303
      %3328 = vmatpush1.msra.mxu0 %v3305
      %3329 = vmatprep.subr.mxu0 0.0
      %3330 = vmatpush1.msra.mxu0 0.0
      %3331 = vmatprep.subr.mxu0 0.0
      %3332 = vmatpush1.msra.mxu0 0.0
      %3333 = vmatprep.subr.mxu0 0.0
      %3334 = vmatpush1.msra.mxu0 0.0
      %3335 = vmatprep.subr.mxu0 0.0
      %3336 = vmatpush1.msra.mxu0 0.0
      %3337 = vmatprep.subr.mxu0 0.0
      %3338 = vmatpush1.msra.mxu0 0.0
      %3339 = vmatprep.subr.mxu0 0.0
      %3340 = vmatpush1.msra.mxu0 0.0
      %3341 = vmatprep.subr.mxu0 0.0
      %3342 = vmatpush1.msra.mxu0 0.0
      %3343 = vmatprep.subr.mxu0 0.0
      %3344 = vmatpush1.msra.mxu0 0.0
      %3345 = vmatprep.subr.mxu0 0.0
      %3346 = vmatpush1.msra.mxu0 0.0
      %3347 = vmatprep.subr.mxu0 0.0
      %3348 = vmatpush1.msra.mxu0 0.0
      %3349 = vmatprep.subr.mxu0 0.0
      %3350 = vmatpush1.msra.mxu0 0.0
      %3351 = vmatprep.subr.mxu0 0.0
      %3352 = vmatpush1.msra.mxu0 0.0
      %3353 = vmatprep.subr.mxu0 0.0
      %3354 = vmatpush1.msra.mxu0 0.0
      %3355 = vmatprep.subr.mxu0 0.0
      %3356 = vmatpush1.msra.mxu0 0.0
      %3357 = vmatprep.subr.mxu0 0.0
      %3358 = vmatpush1.msra.mxu0 0.0
      %3359 = vmatprep.subr.mxu0 0.0
      %3360 = vmatpush1.msra.mxu0 0.0
      %3361 = vmatprep.subr.mxu0 0.0
      %3362 = vmatpush1.msra.mxu0 0.0
      %3363 = vmatprep.subr.mxu0 0.0
      %3364 = vmatpush1.msra.mxu0 0.0
      %3365 = vmatprep.subr.mxu0 0.0
      %3366 = vmatpush1.msra.mxu0 0.0
      %3367 = vmatprep.subr.mxu0 0.0
      %3368 = vmatpush1.msra.mxu0 0.0
      %3369 = vmatprep.subr.mxu0 0.0
      %3370 = vmatpush1.msra.mxu0 0.0
      %3371 = vmatprep.subr.mxu0 0.0
      %3372 = vmatpush1.msra.mxu0 0.0
      %3373 = vmatprep.subr.mxu0 0.0
      %3374 = vmatpush1.msra.mxu0 0.0
      %3375 = vmatprep.subr.mxu0 0.0
      %3376 = vmatpush1.msra.mxu0 0.0
      %3377 = vmatprep.subr.mxu0 0.0
      %3378 = vmatpush1.msra.mxu0 0.0
      %3379 = vmatprep.subr.mxu0 0.0
      %3380 = vmatpush1.msra.mxu0 0.0
      %3381 = vmatprep.mubr.f32.mxu0 0.0
      %3382 = vmatmul.mubr.f32.gmra.mrb[0].mxu0 %v3315
      %v3383 = vpop.f32.mrb[0].mxu0
      %v3384 = vadd.f32 %v3312, %v3383
      %v3385 = vpop.f32.mrb[0].mxu0
      %v3386 = vadd.f32 %v3312, %v3385
      %3387 = vdwg.mxu0
      %3388 = vmatprep.subr.mxu0 %v3264
      %3389 = vmatpush1.msra.mxu0 %v3266
      %3390 = vmatprep.subr.mxu0 %v3265
      %3391 = vmatpush1.msra.mxu0 %v3267
      %3392 = vmatprep.subr.mxu0 %v3226
      %3393 = vmatpush1.msra.mxu0 %v3225
      %3394 = vmatprep.subr.mxu0 %v3232
      %3395 = vmatpush1.msra.mxu0 %v3231
      %3396 = vmatprep.subr.mxu0 %v3298
      %3397 = vmatpush1.msra.mxu0 %v3300
      %3398 = vmatprep.subr.mxu0 %v3299
      %3399 = vmatpush1.msra.mxu0 %v3301
      %3400 = vmatprep.subr.mxu0 0.0
      %3401 = vmatpush1.msra.mxu0 0.0
      %3402 = vmatprep.subr.mxu0 0.0
      %3403 = vmatpush1.msra.mxu0 0.0
      %3404 = vmatprep.subr.mxu0 0.0
      %3405 = vmatpush1.msra.mxu0 0.0
      %3406 = vmatprep.subr.mxu0 0.0
      %3407 = vmatpush1.msra.mxu0 0.0
      %3408 = vmatprep.subr.mxu0 0.0
      %3409 = vmatpush1.msra.mxu0 0.0
      %3410 = vmatprep.subr.mxu0 0.0
      %3411 = vmatpush1.msra.mxu0 0.0
      %3412 = vmatprep.subr.mxu0 0.0
      %3413 = vmatpush1.msra.mxu0 0.0
      %3414 = vmatprep.subr.mxu0 0.0
      %3415 = vmatpush1.msra.mxu0 0.0
      %3416 = vmatprep.subr.mxu0 0.0
      %3417 = vmatpush1.msra.mxu0 0.0
      %3418 = vmatprep.subr.mxu0 0.0
      %3419 = vmatpush1.msra.mxu0 0.0
      %3420 = vmatprep.subr.mxu0 0.0
      %3421 = vmatpush1.msra.mxu0 0.0
      %3422 = vmatprep.subr.mxu0 0.0
      %3423 = vmatpush1.msra.mxu0 0.0
      %3424 = vmatprep.subr.mxu0 0.0
      %3425 = vmatpush1.msra.mxu0 0.0
      %3426 = vmatprep.subr.mxu0 0.0
      %3427 = vmatpush1.msra.mxu0 0.0
      %3428 = vmatprep.subr.mxu0 0.0
      %3429 = vmatpush1.msra.mxu0 0.0
      %3430 = vmatprep.subr.mxu0 0.0
      %3431 = vmatpush1.msra.mxu0 0.0
      %3432 = vmatprep.subr.mxu0 0.0
      %3433 = vmatpush1.msra.mxu0 0.0
      %3434 = vmatprep.subr.mxu0 0.0
      %3435 = vmatpush1.msra.mxu0 0.0
      %3436 = vmatprep.subr.mxu0 0.0
      %3437 = vmatpush1.msra.mxu0 0.0
      %3438 = vmatprep.subr.mxu0 0.0
      %3439 = vmatpush1.msra.mxu0 0.0
      %3440 = vmatprep.subr.mxu0 0.0
      %3441 = vmatpush1.msra.mxu0 0.0
      %3442 = vmatprep.subr.mxu0 0.0
      %3443 = vmatpush1.msra.mxu0 0.0
      %3444 = vmatprep.subr.mxu0 0.0
      %3445 = vmatpush1.msra.mxu0 0.0
      %3446 = vmatprep.subr.mxu0 0.0
      %3447 = vmatpush1.msra.mxu0 0.0
      %3448 = vmatprep.subr.mxu0 0.0
      %3449 = vmatpush1.msra.mxu0 0.0
      %3450 = vmatprep.subr.mxu0 0.0
      %3451 = vmatpush1.msra.mxu0 0.0
      %3452 = vmatprep.mubr.f32.mxu0 0.0
      %3453 = vmatmul.mubr.f32.gmra.mrb[0].mxu0 %v3315
      %v3454 = vpop.f32.mrb[0].mxu0
      %v3455 = vadd.f32 %v3312, %v3454
      %v3456 = vpop.f32.mrb[0].mxu0
      %v3457 = vadd.f32 %v3312, %v3456
      %3458 = vdwg.mxu0
      %3459 = vmatprep.subr.mxu0 %v3260
      %3460 = vmatpush1.msra.mxu0 %v3262
      %3461 = vmatprep.subr.mxu0 %v3261
      %3462 = vmatpush1.msra.mxu0 %v3263
      %3463 = vmatprep.subr.mxu0 %v3228
      %3464 = vmatpush1.msra.mxu0 %v3227
      %3465 = vmatprep.subr.mxu0 %v3234
      %3466 = vmatpush1.msra.mxu0 %v3233
      %3467 = vmatprep.subr.mxu0 %v3306
      %3468 = vmatpush1.msra.mxu0 %v3296
      %3469 = vmatprep.subr.mxu0 %v3307
      %3470 = vmatpush1.msra.mxu0 %v3297
      %3471 = vmatprep.subr.mxu0 0.0
      %3472 = vmatpush1.msra.mxu0 0.0
      %3473 = vmatprep.subr.mxu0 0.0
      %3474 = vmatpush1.msra.mxu0 0.0
      %3475 = vmatprep.subr.mxu0 0.0
      %3476 = vmatpush1.msra.mxu0 0.0
      %3477 = vmatprep.subr.mxu0 0.0
      %3478 = vmatpush1.msra.mxu0 0.0
      %3479 = vmatprep.subr.mxu0 0.0
      %3480 = vmatpush1.msra.mxu0 0.0
      %3481 = vmatprep.subr.mxu0 0.0
      %3482 = vmatpush1.msra.mxu0 0.0
      %3483 = vmatprep.subr.mxu0 0.0
      %3484 = vmatpush1.msra.mxu0 0.0
      %3485 = vmatprep.subr.mxu0 0.0
      %3486 = vmatpush1.msra.mxu0 0.0
      %3487 = vmatprep.subr.mxu0 0.0
      %3488 = vmatpush1.msra.mxu0 0.0
      %3489 = vmatprep.subr.mxu0 0.0
      %3490 = vmatpush1.msra.mxu0 0.0
      %3491 = vmatprep.subr.mxu0 0.0
      %3492 = vmatpush1.msra.mxu0 0.0
      %3493 = vmatprep.subr.mxu0 0.0
      %3494 = vmatpush1.msra.mxu0 0.0
      %3495 = vmatprep.subr.mxu0 0.0
      %3496 = vmatpush1.msra.mxu0 0.0
      %3497 = vmatprep.subr.mxu0 0.0
      %3498 = vmatpush1.msra.mxu0 0.0
      %3499 = vmatprep.subr.mxu0 0.0
      %3500 = vmatpush1.msra.mxu0 0.0
      %3501 = vmatprep.subr.mxu0 0.0
      %3502 = vmatpush1.msra.mxu0 0.0
      %3503 = vmatprep.subr.mxu0 0.0
      %3504 = vmatpush1.msra.mxu0 0.0
      %3505 = vmatprep.subr.mxu0 0.0
      %3506 = vmatpush1.msra.mxu0 0.0
      %3507 = vmatprep.subr.mxu0 0.0
      %3508 = vmatpush1.msra.mxu0 0.0
      %3509 = vmatprep.subr.mxu0 0.0
      %3510 = vmatpush1.msra.mxu0 0.0
      %3511 = vmatprep.subr.mxu0 0.0
      %3512 = vmatpush1.msra.mxu0 0.0
      %3513 = vmatprep.subr.mxu0 0.0
      %3514 = vmatpush1.msra.mxu0 0.0
      %3515 = vmatprep.subr.mxu0 0.0
      %3516 = vmatpush1.msra.mxu0 0.0
      %3517 = vmatprep.subr.mxu0 0.0
      %3518 = vmatpush1.msra.mxu0 0.0
      %3519 = vmatprep.subr.mxu0 0.0
      %3520 = vmatpush1.msra.mxu0 0.0
      %3521 = vmatprep.subr.mxu0 0.0
      %3522 = vmatpush1.msra.mxu0 0.0
      %3523 = vmatprep.mubr.f32.mxu0 0.0
      %3524 = vmatmul.mubr.f32.gmra.mrb[0].mxu0 %v3315
      %v3525 = vpop.f32.mrb[0].mxu0
      %v3526 = vadd.f32 %v3312, %v3525
      %v3527 = vpop.f32.mrb[0].mxu0
      %v3528 = vadd.f32 %v3312, %v3527
      %3529 = vdwg.mxu0
      %v3536 = vcombine.low %v3384, %v3386
      %v3537 = vcombine.low %v3455, %v3457
      %v3538 = vcombine.low %v3526, %v3528
      %3542 = vst [vmem:[%s660] sm:$0xff] %v3536
      %3543 = vst [vmem:[%s660 + $0x8] sm:$0xff] %v3537
      %3544 = vst [vmem:[%s660 + $0x10] sm:$0xff] %v3538
      %s3545 = smul.u32 6, %s34
      %p3546 = scmp.lt.s32.totalorder %s3545, 11
      %s3547 = scalar_select %p3546, %s3545, 11
      %s3548 = smul.addr %s3547, 4
      %s3549 = scalar_lea.vmem %s21, %s3548
      // Predicated region
      $region105: #{_lambda_.1} parent=103 // pred_check
        %p3550 = pneg %p498
      $region106: #{_lambda_.1} parent=103 // pred_check_branch
        %3552 = sbr.rel (%p3550) target = $region108
      $region107: #{_lambda_.1} parent=103 // pred_region
        %s3553 = smul.u32 6, %s34
      $region108: #{_lambda_.1} parent=103 // pred_fallthru
        _
    $region104: #{_lambda_.1} parent=5 // pred_fallthru
      _
    %p3554 = scmp.le.s32.totalorder 2, %s29
    // Predicated region
    $region109: #{_lambda_.1} parent=5 // pred_check
      %p3555 = pneg %p3554
    $region110: #{_lambda_.1} parent=5 // pred_check_branch
      %3557 = sbr.rel (%p3555) target = $region112
    $region111: #{_lambda_.1} parent=5 // pred_region
      %s3558 = ssub.s32 %s29, 2
      // Predicated region
      $region113: #{_lambda_.1} parent=111 // pred_check
        %p3559 = pneg %p504
      $region114: #{_lambda_.1} parent=111 // pred_check_branch
        %3561 = sbr.rel (%p3559) target = $region116
      $region115: #{_lambda_.1} parent=111 // pred_region
        %s3562 = smul.u32 6, %s35
        %p3563 = scmp.lt.s32.totalorder %s3562, 11
        %s3564 = scalar_select %p3563, %s3562, 11
        %s3565 = smul.addr %s3564, 4
        %s3566 = scalar_lea.vmem %s21, %s3565
      $region116: #{_lambda_.1} parent=111 // pred_fallthru
        _
    $region112: #{_lambda_.1} parent=5 // pred_fallthru
      _
  $region6: #{_lambda_.1} parent=0 // loop_footer
    %s33 = sadd.s32 1, %s29
  $region7: #{_lambda_.1} parent=0 // loop_footer_branch
    %28 = sbr.rel target = $region3
  $region8: #{_lambda_.1} parent=0 // loop_exit
    _

</llo_original>
